<compile_context>
chip_gen: v7x
topology: tpu7x:2x2x1
jax: 0.10.0
libtpu: 0.0.40
codegen_flags: <defaults>
</compile_context>

<pallas_src>
import functools

import jax
import jax.numpy as jnp
from jax.experimental import pallas as pl
from jax.experimental.pallas import tpu as pltpu

BN_EPS = 1e-5  # torch.nn.BatchNorm1d default eps
LANE = 128


def _round_up(x, m):
    return (x + m - 1) // m * m


# --------------------------- device query ------------------------------------


def _device_info():
    """Returns (vmem_capacity_bytes, tensorcores_per_device) with safe fallbacks."""
    vmem_cap = 64 * 1024 * 1024          # conservative fallback (v7x physical)
    n_cores = 1
    try:
        vmem_cap = int(getattr(pltpu.get_tpu_info(), "vmem_capacity_bytes",
                               vmem_cap))
    except Exception:
        pass
    try:
        kind = jax.devices()[0].device_kind.lower()
        if "v7" in kind:                 # v7x: 2 TensorCores per chip
            n_cores = 2
    except Exception:
        pass
    return vmem_cap, n_cores


# ----------------------------- kernel ----------------------------------------


def _make_kernel(num_layers, out_widths_padded, activate_output, compute_dtype):
    def kernel(x_ref, *rest):
        o_ref = rest[-1]
        bias_ref = rest[-2]          # (num_layers, max_width) f32, packed
        w_refs = rest[:-2]           # one resident weight block per layer

        x = x_ref[...]               # (batch_tile, in_dim), compute_dtype
        for l in range(num_layers):
            n_p = out_widths_padded[l]
            y = jnp.dot(x, w_refs[l][...],
                        preferred_element_type=jnp.float32)
            y = y + bias_ref[l:l + 1, :n_p]              # f32 epilogue
            last = l == num_layers - 1
            if (not last) or activate_output:
                # relu (module default). Zero-padded lanes rely on relu(0)==0.
                y = jnp.maximum(y, 0.0)
            x = y if last else y.astype(compute_dtype)
        o_ref[...] = x.astype(o_ref.dtype)

    return kernel


# ----------------------------- wrapper ----------------------------------------


def merged_mlp_pallas(inputs, context, flow_time, linears, bns, *,
                      activate_output=False, batch_tile=None,
                      compute_dtype=jnp.float32, out_dtype=jnp.float32,
                      max_batch_tile=1024):
    # ---- MergedMLP.forward: concat inputs / context / flow_time -------------
    # The concat stays *unpadded* (width in_dim); no 128-lane padded HBM
    # round-trip before the kernel.
    parts = [inputs]
    if context is not None:
        parts.append(context)
    if flow_time is not None:
        parts.append(flow_time)
    x = jnp.concatenate(parts, axis=1)
    batch, in_dim = x.shape
    num_layers = len(linears)
    out_dim = linears[-1][0].shape[1]

    # ---- fold eval-mode BatchNorm into the preceding Linear (in f32) --------
    # Fold in f32, cast once afterwards so bf16 quantization only touches the
    # already-folded weights (addresses the BN-fold / bf16 precision concern).
    ws, bs = [], []
    for l, (w, b) in enumerate(linears):
        w = w.astype(jnp.float32)
        b = b.astype(jnp.float32)
        if bns is not None and l < num_layers - 1 and bns[l] is not None:
            gamma, beta, mean, var = bns[l]
            scale = gamma.astype(jnp.float32) / jnp.sqrt(
                var.astype(jnp.float32) + BN_EPS)
            w = w * scale[None, :]
            b = (b - mean.astype(jnp.float32)) * scale + beta.astype(jnp.float32)
        ws.append(w)
        bs.append(b)

    # ---- pad hidden/output widths to 128 lanes; first-layer K stays raw -----
    # Zero padding is only valid because relu(0) == 0 (guarded by using relu).
    ws_p, bs_p = [], []
    prev_p = in_dim
    for w, b in zip(ws, bs):
        k, n = w.shape
        n_pad = _round_up(n, LANE)
        wp = jnp.pad(w, ((0, prev_p - k), (0, n_pad - n)))
        ws_p.append(wp.astype(compute_dtype))
        bs_p.append(jnp.pad(b, (0, n_pad - n)))          # biases stay f32
        prev_p = n_pad
    out_widths_p = [w.shape[1] for w in ws_p]
    out_p = out_widths_p[-1]
    max_np = max(out_widths_p)

    # pack all biases into one small f32 array (one DMA instead of many)
    bias_pack = jnp.stack(
        [jnp.pad(b, (0, max_np - b.shape[0])) for b in bs_p], axis=0)

    # ---- pick batch tile (device-aware) --------------------------------------
    x_item = jnp.dtype(compute_dtype).itemsize
    o_item = jnp.dtype(out_dtype).itemsize
    w_bytes = sum(w.size * x_item for w in ws_p)
    bias_bytes = bias_pack.size * 4

    vmem_cap, n_cores = _device_info()
    vmem_budget = int(vmem_cap * 0.75)

    sub = max(8, 32 // x_item)           # sublane granule (8 f32, 16 bf16)
    if batch_tile is None:
        bp8 = _round_up(batch, sub)
        target = _round_up(-(-bp8 // n_cores), sub)      # >= n_cores grid steps
        # per-row VMEM: streamed x (x2), out (x2), plus fudge for intermediates
        per_row = 2 * in_dim * x_item + 2 * out_p * o_item + 12 * max_np
        fixed = w_bytes + bias_bytes                     # single-buffered
        cap = max(sub, ((vmem_budget - fixed) // per_row) // sub * sub)
        batch_tile = max(sub, min(target, cap, max_batch_tile))
    else:
        batch_tile = max(sub, _round_up(min(batch_tile, _round_up(batch, sub)),
                                        sub))

    bp = _round_up(batch, batch_tile)
    x_p = jnp.pad(x.astype(compute_dtype), ((0, bp - batch), (0, 0)))

    grid = (bp // batch_tile,)

    # ---- specs ----------------------------------------------------------------
    in_specs = [pl.BlockSpec((batch_tile, in_dim), lambda i: (i, 0))]
    for w in ws_p:
        # constant block index -> DMA'd once; single-buffered (resident).
        in_specs.append(pl.BlockSpec(w.shape, lambda i: (0, 0),
                                     pipeline_mode=pl.Buffered(1)))
    in_specs.append(pl.BlockSpec(bias_pack.shape, lambda i: (0, 0),
                                 pipeline_mode=pl.Buffered(1)))
    out_spec = pl.BlockSpec((batch_tile, out_p), lambda i: (i, 0))

    # ---- cost + VMEM budget ----------------------------------------------------
    flops = 2 * bp * sum(w.shape[0] * w.shape[1] for w in ws_p)
    bytes_accessed = (x_p.size * x_item + bp * out_p * o_item
                      + w_bytes + bias_bytes)
    cost = pl.CostEstimate(flops=flops, transcendentals=0,
                           bytes_accessed=bytes_accessed)

    vmem_est = (2 * batch_tile * in_dim * x_item
                + 2 * batch_tile * out_p * o_item
                + w_bytes + bias_bytes
                + 12 * batch_tile * max_np)
    vmem_limit = None
    if vmem_est > 14 * 1024 * 1024:
        vmem_limit = int(min(vmem_budget, max(int(vmem_est * 1.25),
                                              16 * 1024 * 1024)))

    kernel = _make_kernel(num_layers, out_widths_p, activate_output,
                          compute_dtype)

    y_padded = pl.pallas_call(
        kernel,
        out_shape=jax.ShapeDtypeStruct((bp, out_p), out_dtype),
        grid=grid,
        in_specs=in_specs,
        out_specs=out_spec,
        compiler_params=pltpu.CompilerParams(
            dimension_semantics=("parallel",),
            vmem_limit_bytes=vmem_limit,
        ),
        cost_estimate=cost,
    )(x_p, *ws_p, bias_pack)

    return y_padded[:batch, :out_dim]


# --------------------------- parameters ---------------------------------------


def init_params(key, in_total, out_shape, hidden_sizes, batch_norm=True):
    """Linear weights in (in, out) layout (torch stores (out, in); pre-transposed).
    BN params are eval-mode running statistics."""
    linears, bns = [], []
    prev = in_total
    dims = list(hidden_sizes) + [out_shape]
    for i, size in enumerate(dims):
        key, kw, kb = jax.random.split(key, 3)
        lim = 1.0 / (prev ** 0.5)
        w = jax.random.uniform(kw, (prev, size), jnp.float32, -lim, lim)
        b = jax.random.uniform(kb, (size,), jnp.float32, -lim, lim)
        linears.append((w, b))
        if i < len(dims) - 1:
            if batch_norm:
                key, k1, k2, k3, k4 = jax.random.split(key, 5)
                gamma = 1.0 + 0.1 * jax.random.normal(k1, (size,), jnp.float32)
                beta = 0.1 * jax.random.normal(k2, (size,), jnp.float32)
                mean = 0.1 * jax.random.normal(k3, (size,), jnp.float32)
                var = 0.9 + 0.2 * jnp.abs(jax.random.normal(k4, (size,), jnp.float32))
                bns.append((gamma, beta, mean, var))
            else:
                bns.append(None)
        prev = size
    return linears, bns


# --------------------------- pure-JAX reference --------------------------------


def reference_forward(inputs, context, flow_time, linears, bns,
                      activate_output=False):
    parts = [inputs]
    if context is not None:
        parts.append(context)
    if flow_time is not None:
        parts.append(flow_time)
    x = jnp.concatenate(parts, axis=1)
    num_layers = len(linears)
    for l, (w, b) in enumerate(linears):
        x = x @ w + b
        if l < num_layers - 1:
            if bns is not None and bns[l] is not None:
                gamma, beta, mean, var = bns[l]
                x = (x - mean) / jnp.sqrt(var + BN_EPS) * gamma + beta
            # Dropout is identity in eval mode / p=0
            x = jnp.maximum(x, 0.0)
        elif activate_output:
            x = jnp.maximum(x, 0.0)
    return x


# ------------------------------- main -------------------------------------------

if __name__ == "__main__":
    IN_SHAPE = 10
    CONTEXT_FEATURES = 6
    OUT_SHAPE = 5
    HIDDEN_SIZES = (96, 80)
    BATCH = 1024         # auto tile: 1024 rows/step (1 TC) or 512 x 2 (v7x)

    key = jax.random.PRNGKey(0)
    k_in, k_ctx, k_t, k_p = jax.random.split(key, 4)
    inputs = jax.random.normal(k_in, (BATCH, IN_SHAPE), jnp.float32)
    context = jax.random.normal(k_ctx, (BATCH, CONTEXT_FEATURES), jnp.float32)
    flow_time = jax.random.uniform(k_t, (BATCH, 1), jnp.float32)

    in_total = IN_SHAPE + CONTEXT_FEATURES + 1   # time_varying=True
    linears, bns = init_params(k_p, in_total, OUT_SHAPE, HIDDEN_SIZES,
                               batch_norm=True)

    ref = reference_forward(inputs, context, flow_time, linears, bns)

    # exact f32 matmul path
    run_f32 = jax.jit(functools.partial(
        merged_mlp_pallas, compute_dtype=jnp.float32))
    out = jax.block_until_ready(run_f32(inputs, context, flow_time,
                                        linears, bns))
    assert out.shape == (BATCH, OUT_SHAPE), out.shape
    err = float(jnp.max(jnp.abs(out - ref)))
    assert jnp.allclose(out, ref, atol=5e-4, rtol=5e-4), err

    # bf16 matmul operands + bf16 activation stream, f32 accumulation
    run_bf16 = jax.jit(functools.partial(
        merged_mlp_pallas, compute_dtype=jnp.bfloat16))
    out_bf16 = jax.block_until_ready(run_bf16(inputs, context, flow_time,
                                              linears, bns))
    err_bf16 = float(jnp.max(jnp.abs(out_bf16 - ref)))
    assert jnp.allclose(out_bf16, ref, atol=1.5e-1, rtol=1e-1), err_bf16

    print("KERNEL_OK")
</pallas_src>

<mosaic_0001>
module attributes {stable_mosaic.version = 11 : i64} {
  func.func @kernel(%arg0: i32, %arg1: memref<1024x17xf32, #tpu.memory_space<vmem>>, %arg2: memref<17x128xf32, #tpu.memory_space<vmem>>, %arg3: memref<128x128xf32, #tpu.memory_space<vmem>>, %arg4: memref<128x128xf32, #tpu.memory_space<vmem>>, %arg5: memref<3x128xf32, #tpu.memory_space<vmem>>, %arg6: memref<1024x128xf32, #tpu.memory_space<vmem>>) attributes {dimension_semantics = [#tpu.dimension_semantics<parallel>], iteration_bounds = array<i64: 1>, scalar_prefetch = 0 : i64, scratch_operands = 0 : i64, tpu.core_type = #tpu.core_type<tc>, window_params = [{transform_indices = @transform_0, window_bounds = array<i64: 1024, 17>}, {pipeline_mode = #tpu.pipeline_mode<synchronous>, transform_indices = @transform_1, window_bounds = array<i64: 17, 128>}, {pipeline_mode = #tpu.pipeline_mode<synchronous>, transform_indices = @transform_2, window_bounds = array<i64: 128, 128>}, {pipeline_mode = #tpu.pipeline_mode<synchronous>, transform_indices = @transform_3, window_bounds = array<i64: 128, 128>}, {pipeline_mode = #tpu.pipeline_mode<synchronous>, transform_indices = @transform_4, window_bounds = array<i64: 3, 128>}, {transform_indices = @transform_5, window_bounds = array<i64: 1024, 128>}]} {
    %c0 = arith.constant 0 : index
    %c0_0 = arith.constant 0 : index
    %0 = vector.load %arg1[%c0, %c0_0] : memref<1024x17xf32, #tpu.memory_space<vmem>>, vector<1024x17xf32>
    %c0_1 = arith.constant 0 : index
    %c0_2 = arith.constant 0 : index
    %1 = vector.load %arg2[%c0_1, %c0_2] : memref<17x128xf32, #tpu.memory_space<vmem>>, vector<17x128xf32>
    %cst = arith.constant dense<0.000000e+00> : vector<1024x128xf32>
    %2 = tpu.matmul %0, %1, %cst {dimension_numbers = #tpu.dot_dimension_numbers<[1], [0], [0], [1], [0, 0, 1, 1], [], []>} : vector<1024x17xf32>, vector<17x128xf32>, vector<1024x128xf32> -> vector<1024x128xf32>
    %c0_3 = arith.constant 0 : index
    %c0_4 = arith.constant 0 : index
    %3 = vector.load %arg5[%c0_3, %c0_4] : memref<3x128xf32, #tpu.memory_space<vmem>>, vector<1x128xf32>
    %4 = vector.broadcast %3 : vector<1x128xf32> to vector<1024x128xf32>
    %5 = arith.addf %2, %4 : vector<1024x128xf32>
    %cst_5 = arith.constant 0.000000e+00 : f32
    %6 = vector.broadcast %cst_5 : f32 to vector<1024x128xf32>
    %7 = arith.maximumf %5, %6 : vector<1024x128xf32>
    %c0_6 = arith.constant 0 : index
    %c0_7 = arith.constant 0 : index
    %8 = vector.load %arg3[%c0_6, %c0_7] : memref<128x128xf32, #tpu.memory_space<vmem>>, vector<128x128xf32>
    %cst_8 = arith.constant dense<0.000000e+00> : vector<1024x128xf32>
    %9 = tpu.matmul %7, %8, %cst_8 {dimension_numbers = #tpu.dot_dimension_numbers<[1], [0], [0], [1], [0, 0, 1, 1], [], []>} : vector<1024x128xf32>, vector<128x128xf32>, vector<1024x128xf32> -> vector<1024x128xf32>
    %c1 = arith.constant 1 : index
    %c0_9 = arith.constant 0 : index
    %10 = vector.load %arg5[%c1, %c0_9] : memref<3x128xf32, #tpu.memory_space<vmem>>, vector<1x128xf32>
    %11 = vector.broadcast %10 : vector<1x128xf32> to vector<1024x128xf32>
    %12 = arith.addf %9, %11 : vector<1024x128xf32>
    %cst_10 = arith.constant 0.000000e+00 : f32
    %13 = vector.broadcast %cst_10 : f32 to vector<1024x128xf32>
    %14 = arith.maximumf %12, %13 : vector<1024x128xf32>
    %c0_11 = arith.constant 0 : index
    %c0_12 = arith.constant 0 : index
    %15 = vector.load %arg4[%c0_11, %c0_12] : memref<128x128xf32, #tpu.memory_space<vmem>>, vector<128x128xf32>
    %cst_13 = arith.constant dense<0.000000e+00> : vector<1024x128xf32>
    %16 = tpu.matmul %14, %15, %cst_13 {dimension_numbers = #tpu.dot_dimension_numbers<[1], [0], [0], [1], [0, 0, 1, 1], [], []>} : vector<1024x128xf32>, vector<128x128xf32>, vector<1024x128xf32> -> vector<1024x128xf32>
    %c2 = arith.constant 2 : index
    %c0_14 = arith.constant 0 : index
    %17 = vector.load %arg5[%c2, %c0_14] : memref<3x128xf32, #tpu.memory_space<vmem>>, vector<1x128xf32>
    %18 = vector.broadcast %17 : vector<1x128xf32> to vector<1024x128xf32>
    %19 = arith.addf %16, %18 : vector<1024x128xf32>
    %c0_15 = arith.constant 0 : index
    %c0_16 = arith.constant 0 : index
    %20 = vector.load %arg6[%c0_15, %c0_16] : memref<1024x128xf32, #tpu.memory_space<vmem>>, vector<1024x128xf32>
    tpu.vector_store %arg6[%c0_15, %c0_16], %19 {strides = array<i32>} : memref<1024x128xf32, #tpu.memory_space<vmem>>, vector<1024x128xf32>,
    return
  }
  func.func @transform_0(%arg0: i32) -> (i32, i32) {
    %c0_i32 = arith.constant 0 : i32
    %c0_i32_0 = arith.constant 0 : i32
    return %arg0, %c0_i32 : i32, i32
  }
  func.func @transform_1(%arg0: i32) -> (i32, i32) {
    %c0_i32 = arith.constant 0 : i32
    %c0_i32_0 = arith.constant 0 : i32
    %c0_i32_1 = arith.constant 0 : i32
    return %c0_i32, %c0_i32_0 : i32, i32
  }
  func.func @transform_2(%arg0: i32) -> (i32, i32) {
    %c0_i32 = arith.constant 0 : i32
    %c0_i32_0 = arith.constant 0 : i32
    %c0_i32_1 = arith.constant 0 : i32
    return %c0_i32, %c0_i32_0 : i32, i32
  }
  func.func @transform_3(%arg0: i32) -> (i32, i32) {
    %c0_i32 = arith.constant 0 : i32
    %c0_i32_0 = arith.constant 0 : i32
    %c0_i32_1 = arith.constant 0 : i32
    return %c0_i32, %c0_i32_0 : i32, i32
  }
  func.func @transform_4(%arg0: i32) -> (i32, i32) {
    %c0_i32 = arith.constant 0 : i32
    %c0_i32_0 = arith.constant 0 : i32
    %c0_i32_1 = arith.constant 0 : i32
    return %c0_i32, %c0_i32_0 : i32, i32
  }
  func.func @transform_5(%arg0: i32) -> (i32, i32) {
    %c0_i32 = arith.constant 0 : i32
    %c0_i32_0 = arith.constant 0 : i32
    return %arg0, %c0_i32 : i32, i32
  }
}

</mosaic_0001>

<llo_original>
// kernel: merged_mlp_pallas.1
$region0: #{merged_mlp_pallas.1}
  #allocation0 [shape = 'u32[]', space=smem, size = 0x4, offset = 0x4, fixed_abs, tag = 'smem constant byte address 0x4 - core index']
  #allocation1 [shape = 'u32[144,128]{1,0:T(1,128)}', space=vmem, size = 0x12000, scoped, tag = 'internal scratch']
  %s0 = inlined_call_operand.vmem [shape: f32[1024,17], index: 0, kind: input, shape index: {}]
  %s1 = inlined_call_operand.vmem [shape: f32[17,128], index: 1, kind: input, shape index: {}]
  %s2 = inlined_call_operand.vmem [shape: f32[128,128], index: 2, kind: input, shape index: {}]
  %s3 = inlined_call_operand.vmem [shape: f32[128,128], index: 3, kind: input, shape index: {}]
  %s4 = inlined_call_operand.vmem [shape: f32[3,128], index: 4, kind: input, shape index: {}]
  %s5 = inlined_call_operand.vmem [shape: f32[1024,128], index: 5, kind: output, shape index: {}]
  %s6 = sld [smem:[#allocation0]]
  $region30: #{merged_mlp_pallas.1} parent=0
    _
  %s8 = ssub.s32 1, %s6
  %s9 = scalar_select 0, %s8, %s6
  // Predicated region
  $region2: #{merged_mlp_pallas.1} parent=0 // pred_check
    _
  $region3: #{merged_mlp_pallas.1} parent=0 // pred_check_branch
    %11 = sbr.rel (0) target = $region5
  $region4: #{merged_mlp_pallas.1} parent=0 // pred_region
    _
  $region5: #{merged_mlp_pallas.1} parent=0 // pred_fallthru
    _
  // Predicated region
  $region6: #{merged_mlp_pallas.1} parent=0 // pred_check
    _
  $region7: #{merged_mlp_pallas.1} parent=0 // pred_check_branch
    %13 = sbr.rel (0) target = $region9
  $region8: #{merged_mlp_pallas.1} parent=0 // pred_region
    _
  $region9: #{merged_mlp_pallas.1} parent=0 // pred_fallthru
    _
  // Predicated region
  $region10: #{merged_mlp_pallas.1} parent=0 // pred_check
    _
  $region11: #{merged_mlp_pallas.1} parent=0 // pred_check_branch
    %15 = sbr.rel (0) target = $region13
  $region12: #{merged_mlp_pallas.1} parent=0 // pred_region
    _
  $region13: #{merged_mlp_pallas.1} parent=0 // pred_fallthru
    _
  // Predicated region
  $region14: #{merged_mlp_pallas.1} parent=0 // pred_check
    _
  $region15: #{merged_mlp_pallas.1} parent=0 // pred_check_branch
    %17 = sbr.rel (0) target = $region17
  $region16: #{merged_mlp_pallas.1} parent=0 // pred_region
    _
  $region17: #{merged_mlp_pallas.1} parent=0 // pred_fallthru
    _
  // Predicated region
  $region18: #{merged_mlp_pallas.1} parent=0 // pred_check
    _
  $region19: #{merged_mlp_pallas.1} parent=0 // pred_check_branch
    %19 = sbr.rel (0) target = $region21
  $region20: #{merged_mlp_pallas.1} parent=0 // pred_region
    _
  $region21: #{merged_mlp_pallas.1} parent=0 // pred_fallthru
    _
  %v20 = vld [vmem:[%s0] sm:$0xff]
  %v21 = vld [vmem:[%s0 + $0x8] sm:$0xff]
  %v22 = vld [vmem:[%s0 + $0x10] sm:$0xff]
  %v23 = vld [vmem:[%s0 + $0x18] sm:$0xff]
  %v24 = vld [vmem:[%s0 + $0x20] sm:$0xff]
  %v25 = vld [vmem:[%s0 + $0x28] sm:$0xff]
  %v26 = vld [vmem:[%s0 + $0x30] sm:$0xff]
  %v27 = vld [vmem:[%s0 + $0x38] sm:$0xff]
  %v28 = vld [vmem:[%s0 + $0x40] sm:$0xff]
  %v29 = vld [vmem:[%s0 + $0x48] sm:$0xff]
  %v30 = vld [vmem:[%s0 + $0x50] sm:$0xff]
  %v31 = vld [vmem:[%s0 + $0x58] sm:$0xff]
  %v32 = vld [vmem:[%s0 + $0x60] sm:$0xff]
  %v33 = vld [vmem:[%s0 + $0x68] sm:$0xff]
  %v34 = vld [vmem:[%s0 + $0x70] sm:$0xff]
  %v35 = vld [vmem:[%s0 + $0x78] sm:$0xff]
  %v36 = vld [vmem:[%s0 + $0x80] sm:$0xff]
  %v37 = vld [vmem:[%s0 + $0x88] sm:$0xff]
  %v38 = vld [vmem:[%s0 + $0x90] sm:$0xff]
  %v39 = vld [vmem:[%s0 + $0x98] sm:$0xff]
  %v40 = vld [vmem:[%s0 + $0xa0] sm:$0xff]
  %v41 = vld [vmem:[%s0 + $0xa8] sm:$0xff]
  %v42 = vld [vmem:[%s0 + $0xb0] sm:$0xff]
  %v43 = vld [vmem:[%s0 + $0xb8] sm:$0xff]
  %v44 = vld [vmem:[%s0 + $0xc0] sm:$0xff]
  %v45 = vld [vmem:[%s0 + $0xc8] sm:$0xff]
  %v46 = vld [vmem:[%s0 + $0xd0] sm:$0xff]
  %v47 = vld [vmem:[%s0 + $0xd8] sm:$0xff]
  %v48 = vld [vmem:[%s0 + $0xe0] sm:$0xff]
  %v49 = vld [vmem:[%s0 + $0xe8] sm:$0xff]
  %v50 = vld [vmem:[%s0 + $0xf0] sm:$0xff]
  %v51 = vld [vmem:[%s0 + $0xf8] sm:$0xff]
  %v52 = vld [vmem:[%s0 + $0x100] sm:$0xff]
  %v53 = vld [vmem:[%s0 + $0x108] sm:$0xff]
  %v54 = vld [vmem:[%s0 + $0x110] sm:$0xff]
  %v55 = vld [vmem:[%s0 + $0x118] sm:$0xff]
  %v56 = vld [vmem:[%s0 + $0x120] sm:$0xff]
  %v57 = vld [vmem:[%s0 + $0x128] sm:$0xff]
  %v58 = vld [vmem:[%s0 + $0x130] sm:$0xff]
  %v59 = vld [vmem:[%s0 + $0x138] sm:$0xff]
  %v60 = vld [vmem:[%s0 + $0x140] sm:$0xff]
  %v61 = vld [vmem:[%s0 + $0x148] sm:$0xff]
  %v62 = vld [vmem:[%s0 + $0x150] sm:$0xff]
  %v63 = vld [vmem:[%s0 + $0x158] sm:$0xff]
  %v64 = vld [vmem:[%s0 + $0x160] sm:$0xff]
  %v65 = vld [vmem:[%s0 + $0x168] sm:$0xff]
  %v66 = vld [vmem:[%s0 + $0x170] sm:$0xff]
  %v67 = vld [vmem:[%s0 + $0x178] sm:$0xff]
  %v68 = vld [vmem:[%s0 + $0x180] sm:$0xff]
  %v69 = vld [vmem:[%s0 + $0x188] sm:$0xff]
  %v70 = vld [vmem:[%s0 + $0x190] sm:$0xff]
  %v71 = vld [vmem:[%s0 + $0x198] sm:$0xff]
  %v72 = vld [vmem:[%s0 + $0x1a0] sm:$0xff]
  %v73 = vld [vmem:[%s0 + $0x1a8] sm:$0xff]
  %v74 = vld [vmem:[%s0 + $0x1b0] sm:$0xff]
  %v75 = vld [vmem:[%s0 + $0x1b8] sm:$0xff]
  %v76 = vld [vmem:[%s0 + $0x1c0] sm:$0xff]
  %v77 = vld [vmem:[%s0 + $0x1c8] sm:$0xff]
  %v78 = vld [vmem:[%s0 + $0x1d0] sm:$0xff]
  %v79 = vld [vmem:[%s0 + $0x1d8] sm:$0xff]
  %v80 = vld [vmem:[%s0 + $0x1e0] sm:$0xff]
  %v81 = vld [vmem:[%s0 + $0x1e8] sm:$0xff]
  %v82 = vld [vmem:[%s0 + $0x1f0] sm:$0xff]
  %v83 = vld [vmem:[%s0 + $0x1f8] sm:$0xff]
  %v84 = vld [vmem:[%s0 + $0x200] sm:$0xff]
  %v85 = vld [vmem:[%s0 + $0x208] sm:$0xff]
  %v86 = vld [vmem:[%s0 + $0x210] sm:$0xff]
  %v87 = vld [vmem:[%s0 + $0x218] sm:$0xff]
  %v88 = vld [vmem:[%s0 + $0x220] sm:$0xff]
  %v89 = vld [vmem:[%s0 + $0x228] sm:$0xff]
  %v90 = vld [vmem:[%s0 + $0x230] sm:$0xff]
  %v91 = vld [vmem:[%s0 + $0x238] sm:$0xff]
  %v92 = vld [vmem:[%s0 + $0x240] sm:$0xff]
  %v93 = vld [vmem:[%s0 + $0x248] sm:$0xff]
  %v94 = vld [vmem:[%s0 + $0x250] sm:$0xff]
  %v95 = vld [vmem:[%s0 + $0x258] sm:$0xff]
  %v96 = vld [vmem:[%s0 + $0x260] sm:$0xff]
  %v97 = vld [vmem:[%s0 + $0x268] sm:$0xff]
  %v98 = vld [vmem:[%s0 + $0x270] sm:$0xff]
  %v99 = vld [vmem:[%s0 + $0x278] sm:$0xff]
  %v100 = vld [vmem:[%s0 + $0x280] sm:$0xff]
  %v101 = vld [vmem:[%s0 + $0x288] sm:$0xff]
  %v102 = vld [vmem:[%s0 + $0x290] sm:$0xff]
  %v103 = vld [vmem:[%s0 + $0x298] sm:$0xff]
  %v104 = vld [vmem:[%s0 + $0x2a0] sm:$0xff]
  %v105 = vld [vmem:[%s0 + $0x2a8] sm:$0xff]
  %v106 = vld [vmem:[%s0 + $0x2b0] sm:$0xff]
  %v107 = vld [vmem:[%s0 + $0x2b8] sm:$0xff]
  %v108 = vld [vmem:[%s0 + $0x2c0] sm:$0xff]
  %v109 = vld [vmem:[%s0 + $0x2c8] sm:$0xff]
  %v110 = vld [vmem:[%s0 + $0x2d0] sm:$0xff]
  %v111 = vld [vmem:[%s0 + $0x2d8] sm:$0xff]
  %v112 = vld [vmem:[%s0 + $0x2e0] sm:$0xff]
  %v113 = vld [vmem:[%s0 + $0x2e8] sm:$0xff]
  %v114 = vld [vmem:[%s0 + $0x2f0] sm:$0xff]
  %v115 = vld [vmem:[%s0 + $0x2f8] sm:$0xff]
  %v116 = vld [vmem:[%s0 + $0x300] sm:$0xff]
  %v117 = vld [vmem:[%s0 + $0x308] sm:$0xff]
  %v118 = vld [vmem:[%s0 + $0x310] sm:$0xff]
  %v119 = vld [vmem:[%s0 + $0x318] sm:$0xff]
  %v120 = vld [vmem:[%s0 + $0x320] sm:$0xff]
  %v121 = vld [vmem:[%s0 + $0x328] sm:$0xff]
  %v122 = vld [vmem:[%s0 + $0x330] sm:$0xff]
  %v123 = vld [vmem:[%s0 + $0x338] sm:$0xff]
  %v124 = vld [vmem:[%s0 + $0x340] sm:$0xff]
  %v125 = vld [vmem:[%s0 + $0x348] sm:$0xff]
  %v126 = vld [vmem:[%s0 + $0x350] sm:$0xff]
  %v127 = vld [vmem:[%s0 + $0x358] sm:$0xff]
  %v128 = vld [vmem:[%s0 + $0x360] sm:$0xff]
  %v129 = vld [vmem:[%s0 + $0x368] sm:$0xff]
  %v130 = vld [vmem:[%s0 + $0x370] sm:$0xff]
  %v131 = vld [vmem:[%s0 + $0x378] sm:$0xff]
  %v132 = vld [vmem:[%s0 + $0x380] sm:$0xff]
  %v133 = vld [vmem:[%s0 + $0x388] sm:$0xff]
  %v134 = vld [vmem:[%s0 + $0x390] sm:$0xff]
  %v135 = vld [vmem:[%s0 + $0x398] sm:$0xff]
  %v136 = vld [vmem:[%s0 + $0x3a0] sm:$0xff]
  %v137 = vld [vmem:[%s0 + $0x3a8] sm:$0xff]
  %v138 = vld [vmem:[%s0 + $0x3b0] sm:$0xff]
  %v139 = vld [vmem:[%s0 + $0x3b8] sm:$0xff]
  %v140 = vld [vmem:[%s0 + $0x3c0] sm:$0xff]
  %v141 = vld [vmem:[%s0 + $0x3c8] sm:$0xff]
  %v142 = vld [vmem:[%s0 + $0x3d0] sm:$0xff]
  %v143 = vld [vmem:[%s0 + $0x3d8] sm:$0xff]
  %v144 = vld [vmem:[%s0 + $0x3e0] sm:$0xff]
  %v145 = vld [vmem:[%s0 + $0x3e8] sm:$0xff]
  %v146 = vld [vmem:[%s0 + $0x3f0] sm:$0xff]
  %v147 = vld [vmem:[%s0 + $0x3f8] sm:$0xff]
  %v148 = vld [vmem:[%s1] sm:$0xff]
  %v149 = vld [vmem:[%s1 + $0x8] sm:$0xff]
  %v150 = vld [vmem:[%s1 + $0x10] sm:$0x1]
  %v151 = vld [vmem:[%s4] sm:$0x1]
  %v152 = vlaneseq
  %v153 = vshrl.u32 %v152, 7
  %v154 = vsub.s32 0, %v153
  %v155 = vrot.slane %v151, %v154
  %vm156 = vcmask 138240
  %v158 = vsel %vm156, %v20, 0
  %v161 = vsel %vm156, %v21, 0
  %v164 = vsel %vm156, %v22, 0
  %v167 = vsel %vm156, %v23, 0
  %v170 = vsel %vm156, %v24, 0
  %v173 = vsel %vm156, %v25, 0
  %v176 = vsel %vm156, %v26, 0
  %v179 = vsel %vm156, %v27, 0
  %v182 = vsel %vm156, %v28, 0
  %v185 = vsel %vm156, %v29, 0
  %v188 = vsel %vm156, %v30, 0
  %v191 = vsel %vm156, %v31, 0
  %v194 = vsel %vm156, %v32, 0
  %v197 = vsel %vm156, %v33, 0
  %v200 = vsel %vm156, %v34, 0
  %v203 = vsel %vm156, %v35, 0
  %v206 = vsel %vm156, %v36, 0
  %v209 = vsel %vm156, %v37, 0
  %v212 = vsel %vm156, %v38, 0
  %v215 = vsel %vm156, %v39, 0
  %v218 = vsel %vm156, %v40, 0
  %v221 = vsel %vm156, %v41, 0
  %v224 = vsel %vm156, %v42, 0
  %v227 = vsel %vm156, %v43, 0
  %v230 = vsel %vm156, %v44, 0
  %v233 = vsel %vm156, %v45, 0
  %v236 = vsel %vm156, %v46, 0
  %v239 = vsel %vm156, %v47, 0
  %v242 = vsel %vm156, %v48, 0
  %v245 = vsel %vm156, %v49, 0
  %v248 = vsel %vm156, %v50, 0
  %v251 = vsel %vm156, %v51, 0
  %v254 = vsel %vm156, %v52, 0
  %v257 = vsel %vm156, %v53, 0
  %v260 = vsel %vm156, %v54, 0
  %v263 = vsel %vm156, %v55, 0
  %v266 = vsel %vm156, %v56, 0
  %v269 = vsel %vm156, %v57, 0
  %v272 = vsel %vm156, %v58, 0
  %v275 = vsel %vm156, %v59, 0
  %v278 = vsel %vm156, %v60, 0
  %v281 = vsel %vm156, %v61, 0
  %v284 = vsel %vm156, %v62, 0
  %v287 = vsel %vm156, %v63, 0
  %v290 = vsel %vm156, %v64, 0
  %v293 = vsel %vm156, %v65, 0
  %v296 = vsel %vm156, %v66, 0
  %v299 = vsel %vm156, %v67, 0
  %v302 = vsel %vm156, %v68, 0
  %v305 = vsel %vm156, %v69, 0
  %v308 = vsel %vm156, %v70, 0
  %v311 = vsel %vm156, %v71, 0
  %v314 = vsel %vm156, %v72, 0
  %v317 = vsel %vm156, %v73, 0
  %v320 = vsel %vm156, %v74, 0
  %v323 = vsel %vm156, %v75, 0
  %v326 = vsel %vm156, %v76, 0
  %v329 = vsel %vm156, %v77, 0
  %v332 = vsel %vm156, %v78, 0
  %v335 = vsel %vm156, %v79, 0
  %v338 = vsel %vm156, %v80, 0
  %v341 = vsel %vm156, %v81, 0
  %v344 = vsel %vm156, %v82, 0
  %v347 = vsel %vm156, %v83, 0
  %v350 = vsel %vm156, %v84, 0
  %v353 = vsel %vm156, %v85, 0
  %v356 = vsel %vm156, %v86, 0
  %v359 = vsel %vm156, %v87, 0
  %v362 = vsel %vm156, %v88, 0
  %v365 = vsel %vm156, %v89, 0
  %v368 = vsel %vm156, %v90, 0
  %v371 = vsel %vm156, %v91, 0
  %v374 = vsel %vm156, %v92, 0
  %v377 = vsel %vm156, %v93, 0
  %v380 = vsel %vm156, %v94, 0
  %v383 = vsel %vm156, %v95, 0
  %v386 = vsel %vm156, %v96, 0
  %v389 = vsel %vm156, %v97, 0
  %v392 = vsel %vm156, %v98, 0
  %v395 = vsel %vm156, %v99, 0
  %v398 = vsel %vm156, %v100, 0
  %v401 = vsel %vm156, %v101, 0
  %v404 = vsel %vm156, %v102, 0
  %v407 = vsel %vm156, %v103, 0
  %v410 = vsel %vm156, %v104, 0
  %v413 = vsel %vm156, %v105, 0
  %v416 = vsel %vm156, %v106, 0
  %v419 = vsel %vm156, %v107, 0
  %v422 = vsel %vm156, %v108, 0
  %v425 = vsel %vm156, %v109, 0
  %v428 = vsel %vm156, %v110, 0
  %v431 = vsel %vm156, %v111, 0
  %v434 = vsel %vm156, %v112, 0
  %v437 = vsel %vm156, %v113, 0
  %v440 = vsel %vm156, %v114, 0
  %v443 = vsel %vm156, %v115, 0
  %v446 = vsel %vm156, %v116, 0
  %v449 = vsel %vm156, %v117, 0
  %v452 = vsel %vm156, %v118, 0
  %v455 = vsel %vm156, %v119, 0
  %v458 = vsel %vm156, %v120, 0
  %v461 = vsel %vm156, %v121, 0
  %v464 = vsel %vm156, %v122, 0
  %v467 = vsel %vm156, %v123, 0
  %v470 = vsel %vm156, %v124, 0
  %v473 = vsel %vm156, %v125, 0
  %v476 = vsel %vm156, %v126, 0
  %v479 = vsel %vm156, %v127, 0
  %v482 = vsel %vm156, %v128, 0
  %v485 = vsel %vm156, %v129, 0
  %v488 = vsel %vm156, %v130, 0
  %v491 = vsel %vm156, %v131, 0
  %v494 = vsel %vm156, %v132, 0
  %v497 = vsel %vm156, %v133, 0
  %v500 = vsel %vm156, %v134, 0
  %v503 = vsel %vm156, %v135, 0
  %v506 = vsel %vm156, %v136, 0
  %v509 = vsel %vm156, %v137, 0
  %v512 = vsel %vm156, %v138, 0
  %v515 = vsel %vm156, %v139, 0
  %v518 = vsel %vm156, %v140, 0
  %v521 = vsel %vm156, %v141, 0
  %v524 = vsel %vm156, %v142, 0
  %v527 = vsel %vm156, %v143, 0
  %v530 = vsel %vm156, %v144, 0
  %v533 = vsel %vm156, %v145, 0
  %v536 = vsel %vm156, %v146, 0
  %v539 = vsel %vm156, %v147, 0
  %vm541 = vcmask 1040384
  %v543 = vsel %vm541, %v150, 0
  %545 = vmatprep.subr.mxu0 0.0
  %546 = vmatpush1.msra.mxu0 %v148
  %547 = vmatprep.subr.mxu0 0.0
  %548 = vmatpush1.msra.mxu0 %v149
  %549 = vmatprep.subr.mxu0 0.0
  %550 = vmatpush1.msra.mxu0 %v543
  %551 = vmatprep.subr.mxu0 0.0
  %552 = vmatpush1.msra.mxu0 0.0
  %553 = vmatprep.subr.mxu0 0.0
  %554 = vmatpush1.msra.mxu0 0.0
  %555 = vmatprep.subr.mxu0 0.0
  %556 = vmatpush1.msra.mxu0 0.0
  %557 = vmatprep.subr.mxu0 0.0
  %558 = vmatpush1.msra.mxu0 0.0
  %559 = vmatprep.subr.mxu0 0.0
  %560 = vmatpush1.msra.mxu0 0.0
  %561 = vmatprep.subr.mxu0 0.0
  %562 = vmatpush1.msra.mxu0 0.0
  %563 = vmatprep.subr.mxu0 0.0
  %564 = vmatpush1.msra.mxu0 0.0
  %565 = vmatprep.subr.mxu0 0.0
  %566 = vmatpush1.msra.mxu0 0.0
  %567 = vmatprep.subr.mxu0 0.0
  %568 = vmatpush1.msra.mxu0 0.0
  %569 = vmatprep.subr.mxu0 0.0
  %570 = vmatpush1.msra.mxu0 0.0
  %571 = vmatprep.subr.mxu0 0.0
  %572 = vmatpush1.msra.mxu0 0.0
  %573 = vmatprep.subr.mxu0 0.0
  %574 = vmatpush1.msra.mxu0 0.0
  %575 = vmatprep.subr.mxu0 0.0
  %576 = vmatpush1.msra.mxu0 0.0
  %577 = vmatprep.subr.mxu0 0.0
  %578 = vmatpush1.msra.mxu0 0.0
  %579 = vmatprep.subr.mxu0 0.0
  %580 = vmatpush1.msra.mxu0 0.0
  %581 = vmatprep.subr.mxu0 0.0
  %582 = vmatpush1.msra.mxu0 0.0
  %583 = vmatprep.subr.mxu0 0.0
  %584 = vmatpush1.msra.mxu0 0.0
  %585 = vmatprep.subr.mxu0 0.0
  %586 = vmatpush1.msra.mxu0 0.0
  %587 = vmatprep.subr.mxu0 0.0
  %588 = vmatpush1.msra.mxu0 0.0
  %589 = vmatprep.subr.mxu0 0.0
  %590 = vmatpush1.msra.mxu0 0.0
  %591 = vmatprep.subr.mxu0 0.0
  %592 = vmatpush1.msra.mxu0 0.0
  %593 = vmatprep.subr.mxu0 0.0
  %594 = vmatpush1.msra.mxu0 0.0
  %595 = vmatprep.subr.mxu0 0.0
  %596 = vmatpush1.msra.mxu0 0.0
  %597 = vmatprep.subr.mxu0 0.0
  %598 = vmatpush1.msra.mxu0 0.0
  %599 = vmatprep.subr.mxu0 0.0
  %600 = vmatpush1.msra.mxu0 0.0
  %601 = vmatprep.subr.mxu0 0.0
  %602 = vmatpush1.msra.mxu0 0.0
  %603 = vmatprep.subr.mxu0 0.0
  %604 = vmatpush1.msra.mxu0 0.0
  %605 = vmatprep.subr.mxu0 0.0
  %606 = vmatpush1.msra.mxu0 0.0
  %607 = vmatprep.subr.mxu0 0.0
  %608 = vmatpush1.msra.mxu0 0.0
  %609 = vmatprep.mubr.f32.mxu0 0.0
  %610 = vmatmul.mubr.f32.gmra.mrb[0].mxu0 %v158
  %v611 = vpop.f32.mrb[0].mxu0
  %v612 = vadd.f32 %v155, %v611
  %v613 = vpop.f32.mrb[0].mxu0
  %614 = vmatprep.mubr.f32.mxu0 0.0
  %615 = vmatmul.mubr.f32.gmra.mrb[0].mxu0 %v161
  %v616 = vpop.f32.mrb[0].mxu0
  %v617 = vadd.f32 %v155, %v616
  %v618 = vpop.f32.mrb[0].mxu0
  %619 = vmatprep.mubr.f32.mxu0 0.0
  %620 = vmatmul.mubr.f32.gmra.mrb[0].mxu0 %v164
  %v621 = vpop.f32.mrb[0].mxu0
  %v622 = vadd.f32 %v155, %v621
  %v623 = vpop.f32.mrb[0].mxu0
  %624 = vmatprep.mubr.f32.mxu0 0.0
  %625 = vmatmul.mubr.f32.gmra.mrb[0].mxu0 %v167
  %v626 = vpop.f32.mrb[0].mxu0
  %v627 = vadd.f32 %v155, %v626
  %v628 = vpop.f32.mrb[0].mxu0
  %629 = vmatprep.mubr.f32.mxu0 0.0
  %630 = vmatmul.mubr.f32.gmra.mrb[0].mxu0 %v170
  %v631 = vpop.f32.mrb[0].mxu0
  %v632 = vadd.f32 %v155, %v631
  %v633 = vpop.f32.mrb[0].mxu0
  %634 = vmatprep.mubr.f32.mxu0 0.0
  %635 = vmatmul.mubr.f32.gmra.mrb[0].mxu0 %v173
  %v636 = vpop.f32.mrb[0].mxu0
  %v637 = vadd.f32 %v155, %v636
  %v638 = vpop.f32.mrb[0].mxu0
  %639 = vmatprep.mubr.f32.mxu0 0.0
  %640 = vmatmul.mubr.f32.gmra.mrb[0].mxu0 %v176
  %v641 = vpop.f32.mrb[0].mxu0
  %v642 = vadd.f32 %v155, %v641
  %v643 = vpop.f32.mrb[0].mxu0
  %644 = vmatprep.mubr.f32.mxu0 0.0
  %645 = vmatmul.mubr.f32.gmra.mrb[0].mxu0 %v179
  %v646 = vpop.f32.mrb[0].mxu0
  %v647 = vadd.f32 %v155, %v646
  %v648 = vpop.f32.mrb[0].mxu0
  %649 = vmatprep.mubr.f32.mxu0 0.0
  %650 = vmatmul.mubr.f32.gmra.mrb[0].mxu0 %v182
  %v651 = vpop.f32.mrb[0].mxu0
  %v652 = vadd.f32 %v155, %v651
  %v653 = vpop.f32.mrb[0].mxu0
  %654 = vmatprep.mubr.f32.mxu0 0.0
  %655 = vmatmul.mubr.f32.gmra.mrb[0].mxu0 %v185
  %v656 = vpop.f32.mrb[0].mxu0
  %v657 = vadd.f32 %v155, %v656
  %v658 = vpop.f32.mrb[0].mxu0
  %659 = vmatprep.mubr.f32.mxu0 0.0
  %660 = vmatmul.mubr.f32.gmra.mrb[0].mxu0 %v188
  %v661 = vpop.f32.mrb[0].mxu0
  %v662 = vadd.f32 %v155, %v661
  %v663 = vpop.f32.mrb[0].mxu0
  %664 = vmatprep.mubr.f32.mxu0 0.0
  %665 = vmatmul.mubr.f32.gmra.mrb[0].mxu0 %v191
  %v666 = vpop.f32.mrb[0].mxu0
  %v667 = vadd.f32 %v155, %v666
  %v668 = vpop.f32.mrb[0].mxu0
  %669 = vmatprep.mubr.f32.mxu0 0.0
  %670 = vmatmul.mubr.f32.gmra.mrb[0].mxu0 %v194
  %v671 = vpop.f32.mrb[0].mxu0
  %v672 = vadd.f32 %v155, %v671
  %v673 = vpop.f32.mrb[0].mxu0
  %674 = vmatprep.mubr.f32.mxu0 0.0
  %675 = vmatmul.mubr.f32.gmra.mrb[0].mxu0 %v197
  %v676 = vpop.f32.mrb[0].mxu0
  %v677 = vadd.f32 %v155, %v676
  %v678 = vpop.f32.mrb[0].mxu0
  %679 = vmatprep.mubr.f32.mxu0 0.0
  %680 = vmatmul.mubr.f32.gmra.mrb[0].mxu0 %v200
  %v681 = vpop.f32.mrb[0].mxu0
  %v682 = vadd.f32 %v155, %v681
  %v683 = vpop.f32.mrb[0].mxu0
  %684 = vmatprep.mubr.f32.mxu0 0.0
  %685 = vmatmul.mubr.f32.gmra.mrb[0].mxu0 %v203
  %v686 = vpop.f32.mrb[0].mxu0
  %v687 = vadd.f32 %v155, %v686
  %v688 = vpop.f32.mrb[0].mxu0
  %689 = vmatprep.mubr.f32.mxu0 0.0
  %690 = vmatmul.mubr.f32.gmra.mrb[0].mxu0 %v206
  %v691 = vpop.f32.mrb[0].mxu0
  %v692 = vadd.f32 %v155, %v691
  %v693 = vpop.f32.mrb[0].mxu0
  %694 = vmatprep.mubr.f32.mxu0 0.0
  %695 = vmatmul.mubr.f32.gmra.mrb[0].mxu0 %v209
  %v696 = vpop.f32.mrb[0].mxu0
  %v697 = vadd.f32 %v155, %v696
  %v698 = vpop.f32.mrb[0].mxu0
  %699 = vmatprep.mubr.f32.mxu0 0.0
  %700 = vmatmul.mubr.f32.gmra.mrb[0].mxu0 %v212
  %v701 = vpop.f32.mrb[0].mxu0
  %v702 = vadd.f32 %v155, %v701
  %v703 = vpop.f32.mrb[0].mxu0
  %704 = vmatprep.mubr.f32.mxu0 0.0
  %705 = vmatmul.mubr.f32.gmra.mrb[0].mxu0 %v215
  %v706 = vpop.f32.mrb[0].mxu0
  %v707 = vadd.f32 %v155, %v706
  %v708 = vpop.f32.mrb[0].mxu0
  %709 = vmatprep.mubr.f32.mxu0 0.0
  %710 = vmatmul.mubr.f32.gmra.mrb[0].mxu0 %v218
  %v711 = vpop.f32.mrb[0].mxu0
  %v712 = vadd.f32 %v155, %v711
  %v713 = vpop.f32.mrb[0].mxu0
  %714 = vmatprep.mubr.f32.mxu0 0.0
  %715 = vmatmul.mubr.f32.gmra.mrb[0].mxu0 %v221
  %v716 = vpop.f32.mrb[0].mxu0
  %v717 = vadd.f32 %v155, %v716
  %v718 = vpop.f32.mrb[0].mxu0
  %719 = vmatprep.mubr.f32.mxu0 0.0
  %720 = vmatmul.mubr.f32.gmra.mrb[0].mxu0 %v224
  %v721 = vpop.f32.mrb[0].mxu0
  %v722 = vadd.f32 %v155, %v721
  %v723 = vpop.f32.mrb[0].mxu0
  %724 = vmatprep.mubr.f32.mxu0 0.0
  %725 = vmatmul.mubr.f32.gmra.mrb[0].mxu0 %v227
  %v726 = vpop.f32.mrb[0].mxu0
  %v727 = vadd.f32 %v155, %v726
  %v728 = vpop.f32.mrb[0].mxu0
  %729 = vmatprep.mubr.f32.mxu0 0.0
  %730 = vmatmul.mubr.f32.gmra.mrb[0].mxu0 %v230
  %v731 = vpop.f32.mrb[0].mxu0
  %v732 = vadd.f32 %v155, %v731
  %v733 = vpop.f32.mrb[0].mxu0
  %734 = vmatprep.mubr.f32.mxu0 0.0
  %735 = vmatmul.mubr.f32.gmra.mrb[0].mxu0 %v233
  %v736 = vpop.f32.mrb[0].mxu0
  %v737 = vadd.f32 %v155, %v736
  %v738 = vpop.f32.mrb[0].mxu0
  %739 = vmatprep.mubr.f32.mxu0 0.0
  %740 = vmatmul.mubr.f32.gmra.mrb[0].mxu0 %v236
  %v741 = vpop.f32.mrb[0].mxu0
  %v742 = vadd.f32 %v155, %v741
  %v743 = vpop.f32.mrb[0].mxu0
  %744 = vmatprep.mubr.f32.mxu0 0.0
  %745 = vmatmul.mubr.f32.gmra.mrb[0].mxu0 %v239
  %v746 = vpop.f32.mrb[0].mxu0
  %v747 = vadd.f32 %v155, %v746
  %v748 = vpop.f32.mrb[0].mxu0
  %749 = vmatprep.mubr.f32.mxu0 0.0
  %750 = vmatmul.mubr.f32.gmra.mrb[0].mxu0 %v242
  %v751 = vpop.f32.mrb[0].mxu0
  %v752 = vadd.f32 %v155, %v751
  %v753 = vpop.f32.mrb[0].mxu0
  %754 = vmatprep.mubr.f32.mxu0 0.0
  %755 = vmatmul.mubr.f32.gmra.mrb[0].mxu0 %v245
  %v756 = vpop.f32.mrb[0].mxu0
  %v757 = vadd.f32 %v155, %v756
  %v758 = vpop.f32.mrb[0].mxu0
  %759 = vmatprep.mubr.f32.mxu0 0.0
  %760 = vmatmul.mubr.f32.gmra.mrb[0].mxu0 %v248
  %v761 = vpop.f32.mrb[0].mxu0
  %v762 = vadd.f32 %v155, %v761
  %v763 = vpop.f32.mrb[0].mxu0
  %764 = vmatprep.mubr.f32.mxu0 0.0
  %765 = vmatmul.mubr.f32.gmra.mrb[0].mxu0 %v251
  %v766 = vpop.f32.mrb[0].mxu0
  %v767 = vadd.f32 %v155, %v766
  %v768 = vpop.f32.mrb[0].mxu0
  %769 = vmatprep.mubr.f32.mxu0 0.0
  %770 = vmatmul.mubr.f32.gmra.mrb[0].mxu0 %v254
  %v771 = vpop.f32.mrb[0].mxu0
  %v772 = vadd.f32 %v155, %v771
  %v773 = vpop.f32.mrb[0].mxu0
  %774 = vmatprep.mubr.f32.mxu0 0.0
  %775 = vmatmul.mubr.f32.gmra.mrb[0].mxu0 %v257
  %v776 = vpop.f32.mrb[0].mxu0
  %v777 = vadd.f32 %v155, %v776
  %v778 = vpop.f32.mrb[0].mxu0
  %779 = vmatprep.mubr.f32.mxu0 0.0
  %780 = vmatmul.mubr.f32.gmra.mrb[0].mxu0 %v260
  %v781 = vpop.f32.mrb[0].mxu0
  %v782 = vadd.f32 %v155, %v781
  %v783 = vpop.f32.mrb[0].mxu0
  %784 = vmatprep.mubr.f32.mxu0 0.0
  %785 = vmatmul.mubr.f32.gmra.mrb[0].mxu0 %v263
  %v786 = vpop.f32.mrb[0].mxu0
  %v787 = vadd.f32 %v155, %v786
  %v788 = vpop.f32.mrb[0].mxu0
  %789 = vmatprep.mubr.f32.mxu0 0.0
  %790 = vmatmul.mubr.f32.gmra.mrb[0].mxu0 %v266
  %v791 = vpop.f32.mrb[0].mxu0
  %v792 = vadd.f32 %v155, %v791
  %v793 = vpop.f32.mrb[0].mxu0
  %794 = vmatprep.mubr.f32.mxu0 0.0
  %795 = vmatmul.mubr.f32.gmra.mrb[0].mxu0 %v269
  %v796 = vpop.f32.mrb[0].mxu0
  %v797 = vadd.f32 %v155, %v796
  %v798 = vpop.f32.mrb[0].mxu0
  %799 = vmatprep.mubr.f32.mxu0 0.0
  %800 = vmatmul.mubr.f32.gmra.mrb[0].mxu0 %v272
  %v801 = vpop.f32.mrb[0].mxu0
  %v802 = vadd.f32 %v155, %v801
  %v803 = vpop.f32.mrb[0].mxu0
  %804 = vmatprep.mubr.f32.mxu0 0.0
  %805 = vmatmul.mubr.f32.gmra.mrb[0].mxu0 %v275
  %v806 = vpop.f32.mrb[0].mxu0
  %v807 = vadd.f32 %v155, %v806
  %v808 = vpop.f32.mrb[0].mxu0
  %809 = vmatprep.mubr.f32.mxu0 0.0
  %810 = vmatmul.mubr.f32.gmra.mrb[0].mxu0 %v278
  %v811 = vpop.f32.mrb[0].mxu0
  %v812 = vadd.f32 %v155, %v811
  %v813 = vpop.f32.mrb[0].mxu0
  %814 = vmatprep.mubr.f32.mxu0 0.0
  %815 = vmatmul.mubr.f32.gmra.mrb[0].mxu0 %v281
  %v816 = vpop.f32.mrb[0].mxu0
  %v817 = vadd.f32 %v155, %v816
  %v818 = vpop.f32.mrb[0].mxu0
  %819 = vmatprep.mubr.f32.mxu0 0.0
  %820 = vmatmul.mubr.f32.gmra.mrb[0].mxu0 %v284
  %v821 = vpop.f32.mrb[0].mxu0
  %v822 = vadd.f32 %v155, %v821
  %v823 = vpop.f32.mrb[0].mxu0
  %824 = vmatprep.mubr.f32.mxu0 0.0
  %825 = vmatmul.mubr.f32.gmra.mrb[0].mxu0 %v287
  %v826 = vpop.f32.mrb[0].mxu0
  %v827 = vadd.f32 %v155, %v826
  %v828 = vpop.f32.mrb[0].mxu0
  %829 = vmatprep.mubr.f32.mxu0 0.0
  %830 = vmatmul.mubr.f32.gmra.mrb[0].mxu0 %v290
  %v831 = vpop.f32.mrb[0].mxu0
  %v832 = vadd.f32 %v155, %v831
  %v833 = vpop.f32.mrb[0].mxu0
  %834 = vmatprep.mubr.f32.mxu0 0.0
  %835 = vmatmul.mubr.f32.gmra.mrb[0].mxu0 %v293
  %v836 = vpop.f32.mrb[0].mxu0
  %v837 = vadd.f32 %v155, %v836
  %v838 = vpop.f32.mrb[0].mxu0
  %839 = vmatprep.mubr.f32.mxu0 0.0
  %840 = vmatmul.mubr.f32.gmra.mrb[0].mxu0 %v296
  %v841 = vpop.f32.mrb[0].mxu0
  %v842 = vadd.f32 %v155, %v841
  %v843 = vpop.f32.mrb[0].mxu0
  %844 = vmatprep.mubr.f32.mxu0 0.0
  %845 = vmatmul.mubr.f32.gmra.mrb[0].mxu0 %v299
  %v846 = vpop.f32.mrb[0].mxu0
  %v847 = vadd.f32 %v155, %v846
  %v848 = vpop.f32.mrb[0].mxu0
  %849 = vmatprep.mubr.f32.mxu0 0.0
  %850 = vmatmul.mubr.f32.gmra.mrb[0].mxu0 %v302
  %v851 = vpop.f32.mrb[0].mxu0
  %v852 = vadd.f32 %v155, %v851
  %v853 = vpop.f32.mrb[0].mxu0
  %854 = vmatprep.mubr.f32.mxu0 0.0
  %855 = vmatmul.mubr.f32.gmra.mrb[0].mxu0 %v305
  %v856 = vpop.f32.mrb[0].mxu0
  %v857 = vadd.f32 %v155, %v856
  %v858 = vpop.f32.mrb[0].mxu0
  %859 = vmatprep.mubr.f32.mxu0 0.0
  %860 = vmatmul.mubr.f32.gmra.mrb[0].mxu0 %v308
  %v861 = vpop.f32.mrb[0].mxu0
  %v862 = vadd.f32 %v155, %v861
  %v863 = vpop.f32.mrb[0].mxu0
  %864 = vmatprep.mubr.f32.mxu0 0.0
  %865 = vmatmul.mubr.f32.gmra.mrb[0].mxu0 %v311
  %v866 = vpop.f32.mrb[0].mxu0
  %v867 = vadd.f32 %v155, %v866
  %v868 = vpop.f32.mrb[0].mxu0
  %869 = vmatprep.mubr.f32.mxu0 0.0
  %870 = vmatmul.mubr.f32.gmra.mrb[0].mxu0 %v314
  %v871 = vpop.f32.mrb[0].mxu0
  %v872 = vadd.f32 %v155, %v871
  %v873 = vpop.f32.mrb[0].mxu0
  %874 = vmatprep.mubr.f32.mxu0 0.0
  %875 = vmatmul.mubr.f32.gmra.mrb[0].mxu0 %v317
  %v876 = vpop.f32.mrb[0].mxu0
  %v877 = vadd.f32 %v155, %v876
  %v878 = vpop.f32.mrb[0].mxu0
  %879 = vmatprep.mubr.f32.mxu0 0.0
  %880 = vmatmul.mubr.f32.gmra.mrb[0].mxu0 %v320
  %v881 = vpop.f32.mrb[0].mxu0
  %v882 = vadd.f32 %v155, %v881
  %v883 = vpop.f32.mrb[0].mxu0
  %884 = vmatprep.mubr.f32.mxu0 0.0
  %885 = vmatmul.mubr.f32.gmra.mrb[0].mxu0 %v323
  %v886 = vpop.f32.mrb[0].mxu0
  %v887 = vadd.f32 %v155, %v886
  %v888 = vpop.f32.mrb[0].mxu0
  %889 = vmatprep.mubr.f32.mxu0 0.0
  %890 = vmatmul.mubr.f32.gmra.mrb[0].mxu0 %v326
  %v891 = vpop.f32.mrb[0].mxu0
  %v892 = vadd.f32 %v155, %v891
  %v893 = vpop.f32.mrb[0].mxu0
  %894 = vmatprep.mubr.f32.mxu0 0.0
  %895 = vmatmul.mubr.f32.gmra.mrb[0].mxu0 %v329
  %v896 = vpop.f32.mrb[0].mxu0
  %v897 = vadd.f32 %v155, %v896
  %v898 = vpop.f32.mrb[0].mxu0
  %899 = vmatprep.mubr.f32.mxu0 0.0
  %900 = vmatmul.mubr.f32.gmra.mrb[0].mxu0 %v332
  %v901 = vpop.f32.mrb[0].mxu0
  %v902 = vadd.f32 %v155, %v901
  %v903 = vpop.f32.mrb[0].mxu0
  %904 = vmatprep.mubr.f32.mxu0 0.0
  %905 = vmatmul.mubr.f32.gmra.mrb[0].mxu0 %v335
  %v906 = vpop.f32.mrb[0].mxu0
  %v907 = vadd.f32 %v155, %v906
  %v908 = vpop.f32.mrb[0].mxu0
  %909 = vmatprep.mubr.f32.mxu0 0.0
  %910 = vmatmul.mubr.f32.gmra.mrb[0].mxu0 %v338
  %v911 = vpop.f32.mrb[0].mxu0
  %v912 = vadd.f32 %v155, %v911
  %v913 = vpop.f32.mrb[0].mxu0
  %914 = vmatprep.mubr.f32.mxu0 0.0
  %915 = vmatmul.mubr.f32.gmra.mrb[0].mxu0 %v341
  %v916 = vpop.f32.mrb[0].mxu0
  %v917 = vadd.f32 %v155, %v916
  %v918 = vpop.f32.mrb[0].mxu0
  %919 = vmatprep.mubr.f32.mxu0 0.0
  %920 = vmatmul.mubr.f32.gmra.mrb[0].mxu0 %v344
  %v921 = vpop.f32.mrb[0].mxu0
  %v922 = vadd.f32 %v155, %v921
  %v923 = vpop.f32.mrb[0].mxu0
  %924 = vmatprep.mubr.f32.mxu0 0.0
  %925 = vmatmul.mubr.f32.gmra.mrb[0].mxu0 %v347
  %v926 = vpop.f32.mrb[0].mxu0
  %v927 = vadd.f32 %v155, %v926
  %v928 = vpop.f32.mrb[0].mxu0
  %929 = vmatprep.mubr.f32.mxu0 0.0
  %930 = vmatmul.mubr.f32.gmra.mrb[0].mxu0 %v350
  %v931 = vpop.f32.mrb[0].mxu0
  %v932 = vadd.f32 %v155, %v931
  %v933 = vpop.f32.mrb[0].mxu0
  %934 = vmatprep.mubr.f32.mxu0 0.0
  %935 = vmatmul.mubr.f32.gmra.mrb[0].mxu0 %v353
  %v936 = vpop.f32.mrb[0].mxu0
  %v937 = vadd.f32 %v155, %v936
  %v938 = vpop.f32.mrb[0].mxu0
  %939 = vmatprep.mubr.f32.mxu0 0.0
  %940 = vmatmul.mubr.f32.gmra.mrb[0].mxu0 %v356
  %v941 = vpop.f32.mrb[0].mxu0
  %v942 = vadd.f32 %v155, %v941
  %v943 = vpop.f32.mrb[0].mxu0
  %944 = vmatprep.mubr.f32.mxu0 0.0
  %945 = vmatmul.mubr.f32.gmra.mrb[0].mxu0 %v359
  %v946 = vpop.f32.mrb[0].mxu0
  %v947 = vadd.f32 %v155, %v946
  %v948 = vpop.f32.mrb[0].mxu0
  %949 = vmatprep.mubr.f32.mxu0 0.0
  %950 = vmatmul.mubr.f32.gmra.mrb[0].mxu0 %v362
  %v951 = vpop.f32.mrb[0].mxu0
  %v952 = vadd.f32 %v155, %v951
  %v953 = vpop.f32.mrb[0].mxu0
  %954 = vmatprep.mubr.f32.mxu0 0.0
  %955 = vmatmul.mubr.f32.gmra.mrb[0].mxu0 %v365
  %v956 = vpop.f32.mrb[0].mxu0
  %v957 = vadd.f32 %v155, %v956
  %v958 = vpop.f32.mrb[0].mxu0
  %959 = vmatprep.mubr.f32.mxu0 0.0
  %960 = vmatmul.mubr.f32.gmra.mrb[0].mxu0 %v368
  %v961 = vpop.f32.mrb[0].mxu0
  %v962 = vadd.f32 %v155, %v961
  %v963 = vpop.f32.mrb[0].mxu0
  %964 = vmatprep.mubr.f32.mxu0 0.0
  %965 = vmatmul.mubr.f32.gmra.mrb[0].mxu0 %v371
  %v966 = vpop.f32.mrb[0].mxu0
  %v967 = vadd.f32 %v155, %v966
  %v968 = vpop.f32.mrb[0].mxu0
  %969 = vmatprep.mubr.f32.mxu0 0.0
  %970 = vmatmul.mubr.f32.gmra.mrb[0].mxu0 %v374
  %v971 = vpop.f32.mrb[0].mxu0
  %v972 = vadd.f32 %v155, %v971
  %v973 = vpop.f32.mrb[0].mxu0
  %974 = vmatprep.mubr.f32.mxu0 0.0
  %975 = vmatmul.mubr.f32.gmra.mrb[0].mxu0 %v377
  %v976 = vpop.f32.mrb[0].mxu0
  %v977 = vadd.f32 %v155, %v976
  %v978 = vpop.f32.mrb[0].mxu0
  %979 = vmatprep.mubr.f32.mxu0 0.0
  %980 = vmatmul.mubr.f32.gmra.mrb[0].mxu0 %v380
  %v981 = vpop.f32.mrb[0].mxu0
  %v982 = vadd.f32 %v155, %v981
  %v983 = vpop.f32.mrb[0].mxu0
  %984 = vmatprep.mubr.f32.mxu0 0.0
  %985 = vmatmul.mubr.f32.gmra.mrb[0].mxu0 %v383
  %v986 = vpop.f32.mrb[0].mxu0
  %v987 = vadd.f32 %v155, %v986
  %v988 = vpop.f32.mrb[0].mxu0
  %989 = vmatprep.mubr.f32.mxu0 0.0
  %990 = vmatmul.mubr.f32.gmra.mrb[0].mxu0 %v386
  %v991 = vpop.f32.mrb[0].mxu0
  %v992 = vadd.f32 %v155, %v991
  %v993 = vpop.f32.mrb[0].mxu0
  %994 = vmatprep.mubr.f32.mxu0 0.0
  %995 = vmatmul.mubr.f32.gmra.mrb[0].mxu0 %v389
  %v996 = vpop.f32.mrb[0].mxu0
  %v997 = vadd.f32 %v155, %v996
  %v998 = vpop.f32.mrb[0].mxu0
  %999 = vmatprep.mubr.f32.mxu0 0.0
  %1000 = vmatmul.mubr.f32.gmra.mrb[0].mxu0 %v392
  %v1001 = vpop.f32.mrb[0].mxu0
  %v1002 = vadd.f32 %v155, %v1001
  %v1003 = vpop.f32.mrb[0].mxu0
  %1004 = vmatprep.mubr.f32.mxu0 0.0
  %1005 = vmatmul.mubr.f32.gmra.mrb[0].mxu0 %v395
  %v1006 = vpop.f32.mrb[0].mxu0
  %v1007 = vadd.f32 %v155, %v1006
  %v1008 = vpop.f32.mrb[0].mxu0
  %1009 = vmatprep.mubr.f32.mxu0 0.0
  %1010 = vmatmul.mubr.f32.gmra.mrb[0].mxu0 %v398
  %v1011 = vpop.f32.mrb[0].mxu0
  %v1012 = vadd.f32 %v155, %v1011
  %v1013 = vpop.f32.mrb[0].mxu0
  %1014 = vmatprep.mubr.f32.mxu0 0.0
  %1015 = vmatmul.mubr.f32.gmra.mrb[0].mxu0 %v401
  %v1016 = vpop.f32.mrb[0].mxu0
  %v1017 = vadd.f32 %v155, %v1016
  %v1018 = vpop.f32.mrb[0].mxu0
  %1019 = vmatprep.mubr.f32.mxu0 0.0
  %1020 = vmatmul.mubr.f32.gmra.mrb[0].mxu0 %v404
  %v1021 = vpop.f32.mrb[0].mxu0
  %v1022 = vadd.f32 %v155, %v1021
  %v1023 = vpop.f32.mrb[0].mxu0
  %1024 = vmatprep.mubr.f32.mxu0 0.0
  %1025 = vmatmul.mubr.f32.gmra.mrb[0].mxu0 %v407
  %v1026 = vpop.f32.mrb[0].mxu0
  %v1027 = vadd.f32 %v155, %v1026
  %v1028 = vpop.f32.mrb[0].mxu0
  %1029 = vmatprep.mubr.f32.mxu0 0.0
  %1030 = vmatmul.mubr.f32.gmra.mrb[0].mxu0 %v410
  %v1031 = vpop.f32.mrb[0].mxu0
  %v1032 = vadd.f32 %v155, %v1031
  %v1033 = vpop.f32.mrb[0].mxu0
  %1034 = vmatprep.mubr.f32.mxu0 0.0
  %1035 = vmatmul.mubr.f32.gmra.mrb[0].mxu0 %v413
  %v1036 = vpop.f32.mrb[0].mxu0
  %v1037 = vadd.f32 %v155, %v1036
  %v1038 = vpop.f32.mrb[0].mxu0
  %1039 = vmatprep.mubr.f32.mxu0 0.0
  %1040 = vmatmul.mubr.f32.gmra.mrb[0].mxu0 %v416
  %v1041 = vpop.f32.mrb[0].mxu0
  %v1042 = vadd.f32 %v155, %v1041
  %v1043 = vpop.f32.mrb[0].mxu0
  %1044 = vmatprep.mubr.f32.mxu0 0.0
  %1045 = vmatmul.mubr.f32.gmra.mrb[0].mxu0 %v419
  %v1046 = vpop.f32.mrb[0].mxu0
  %v1047 = vadd.f32 %v155, %v1046
  %v1048 = vpop.f32.mrb[0].mxu0
  %1049 = vmatprep.mubr.f32.mxu0 0.0
  %1050 = vmatmul.mubr.f32.gmra.mrb[0].mxu0 %v422
  %v1051 = vpop.f32.mrb[0].mxu0
  %v1052 = vadd.f32 %v155, %v1051
  %v1053 = vpop.f32.mrb[0].mxu0
  %1054 = vmatprep.mubr.f32.mxu0 0.0
  %1055 = vmatmul.mubr.f32.gmra.mrb[0].mxu0 %v425
  %v1056 = vpop.f32.mrb[0].mxu0
  %v1057 = vadd.f32 %v155, %v1056
  %v1058 = vpop.f32.mrb[0].mxu0
  %1059 = vmatprep.mubr.f32.mxu0 0.0
  %1060 = vmatmul.mubr.f32.gmra.mrb[0].mxu0 %v428
  %v1061 = vpop.f32.mrb[0].mxu0
  %v1062 = vadd.f32 %v155, %v1061
  %v1063 = vpop.f32.mrb[0].mxu0
  %1064 = vmatprep.mubr.f32.mxu0 0.0
  %1065 = vmatmul.mubr.f32.gmra.mrb[0].mxu0 %v431
  %v1066 = vpop.f32.mrb[0].mxu0
  %v1067 = vadd.f32 %v155, %v1066
  %v1068 = vpop.f32.mrb[0].mxu0
  %1069 = vmatprep.mubr.f32.mxu0 0.0
  %1070 = vmatmul.mubr.f32.gmra.mrb[0].mxu0 %v434
  %v1071 = vpop.f32.mrb[0].mxu0
  %v1072 = vadd.f32 %v155, %v1071
  %v1073 = vpop.f32.mrb[0].mxu0
  %1074 = vmatprep.mubr.f32.mxu0 0.0
  %1075 = vmatmul.mubr.f32.gmra.mrb[0].mxu0 %v437
  %v1076 = vpop.f32.mrb[0].mxu0
  %v1077 = vadd.f32 %v155, %v1076
  %v1078 = vpop.f32.mrb[0].mxu0
  %1079 = vmatprep.mubr.f32.mxu0 0.0
  %1080 = vmatmul.mubr.f32.gmra.mrb[0].mxu0 %v440
  %v1081 = vpop.f32.mrb[0].mxu0
  %v1082 = vadd.f32 %v155, %v1081
  %v1083 = vpop.f32.mrb[0].mxu0
  %1084 = vmatprep.mubr.f32.mxu0 0.0
  %1085 = vmatmul.mubr.f32.gmra.mrb[0].mxu0 %v443
  %v1086 = vpop.f32.mrb[0].mxu0
  %v1087 = vadd.f32 %v155, %v1086
  %v1088 = vpop.f32.mrb[0].mxu0
  %1089 = vmatprep.mubr.f32.mxu0 0.0
  %1090 = vmatmul.mubr.f32.gmra.mrb[0].mxu0 %v446
  %v1091 = vpop.f32.mrb[0].mxu0
  %v1092 = vadd.f32 %v155, %v1091
  %v1093 = vpop.f32.mrb[0].mxu0
  %1094 = vmatprep.mubr.f32.mxu0 0.0
  %1095 = vmatmul.mubr.f32.gmra.mrb[0].mxu0 %v449
  %v1096 = vpop.f32.mrb[0].mxu0
  %v1097 = vadd.f32 %v155, %v1096
  %v1098 = vpop.f32.mrb[0].mxu0
  %1099 = vmatprep.mubr.f32.mxu0 0.0
  %1100 = vmatmul.mubr.f32.gmra.mrb[0].mxu0 %v452
  %v1101 = vpop.f32.mrb[0].mxu0
  %v1102 = vadd.f32 %v155, %v1101
  %v1103 = vpop.f32.mrb[0].mxu0
  %1104 = vmatprep.mubr.f32.mxu0 0.0
  %1105 = vmatmul.mubr.f32.gmra.mrb[0].mxu0 %v455
  %v1106 = vpop.f32.mrb[0].mxu0
  %v1107 = vadd.f32 %v155, %v1106
  %v1108 = vpop.f32.mrb[0].mxu0
  %1109 = vmatprep.mubr.f32.mxu0 0.0
  %1110 = vmatmul.mubr.f32.gmra.mrb[0].mxu0 %v458
  %v1111 = vpop.f32.mrb[0].mxu0
  %v1112 = vadd.f32 %v155, %v1111
  %v1113 = vpop.f32.mrb[0].mxu0
  %1114 = vmatprep.mubr.f32.mxu0 0.0
  %1115 = vmatmul.mubr.f32.gmra.mrb[0].mxu0 %v461
  %v1116 = vpop.f32.mrb[0].mxu0
  %v1117 = vadd.f32 %v155, %v1116
  %v1118 = vpop.f32.mrb[0].mxu0
  %1119 = vmatprep.mubr.f32.mxu0 0.0
  %1120 = vmatmul.mubr.f32.gmra.mrb[0].mxu0 %v464
  %v1121 = vpop.f32.mrb[0].mxu0
  %v1122 = vadd.f32 %v155, %v1121
  %v1123 = vpop.f32.mrb[0].mxu0
  %1124 = vmatprep.mubr.f32.mxu0 0.0
  %1125 = vmatmul.mubr.f32.gmra.mrb[0].mxu0 %v467
  %v1126 = vpop.f32.mrb[0].mxu0
  %v1127 = vadd.f32 %v155, %v1126
  %v1128 = vpop.f32.mrb[0].mxu0
  %1129 = vmatprep.mubr.f32.mxu0 0.0
  %1130 = vmatmul.mubr.f32.gmra.mrb[0].mxu0 %v470
  %v1131 = vpop.f32.mrb[0].mxu0
  %v1132 = vadd.f32 %v155, %v1131
  %v1133 = vpop.f32.mrb[0].mxu0
  %1134 = vmatprep.mubr.f32.mxu0 0.0
  %1135 = vmatmul.mubr.f32.gmra.mrb[0].mxu0 %v473
  %v1136 = vpop.f32.mrb[0].mxu0
  %v1137 = vadd.f32 %v155, %v1136
  %v1138 = vpop.f32.mrb[0].mxu0
  %1139 = vmatprep.mubr.f32.mxu0 0.0
  %1140 = vmatmul.mubr.f32.gmra.mrb[0].mxu0 %v476
  %v1141 = vpop.f32.mrb[0].mxu0
  %v1142 = vadd.f32 %v155, %v1141
  %v1143 = vpop.f32.mrb[0].mxu0
  %1144 = vmatprep.mubr.f32.mxu0 0.0
  %1145 = vmatmul.mubr.f32.gmra.mrb[0].mxu0 %v479
  %v1146 = vpop.f32.mrb[0].mxu0
  %v1147 = vadd.f32 %v155, %v1146
  %v1148 = vpop.f32.mrb[0].mxu0
  %1149 = vmatprep.mubr.f32.mxu0 0.0
  %1150 = vmatmul.mubr.f32.gmra.mrb[0].mxu0 %v482
  %v1151 = vpop.f32.mrb[0].mxu0
  %v1152 = vadd.f32 %v155, %v1151
  %v1153 = vpop.f32.mrb[0].mxu0
  %1154 = vmatprep.mubr.f32.mxu0 0.0
  %1155 = vmatmul.mubr.f32.gmra.mrb[0].mxu0 %v485
  %v1156 = vpop.f32.mrb[0].mxu0
  %v1157 = vadd.f32 %v155, %v1156
  %v1158 = vpop.f32.mrb[0].mxu0
  %1159 = vmatprep.mubr.f32.mxu0 0.0
  %1160 = vmatmul.mubr.f32.gmra.mrb[0].mxu0 %v488
  %v1161 = vpop.f32.mrb[0].mxu0
  %v1162 = vadd.f32 %v155, %v1161
  %v1163 = vpop.f32.mrb[0].mxu0
  %1164 = vmatprep.mubr.f32.mxu0 0.0
  %1165 = vmatmul.mubr.f32.gmra.mrb[0].mxu0 %v491
  %v1166 = vpop.f32.mrb[0].mxu0
  %v1167 = vadd.f32 %v155, %v1166
  %v1168 = vpop.f32.mrb[0].mxu0
  %1169 = vmatprep.mubr.f32.mxu0 0.0
  %1170 = vmatmul.mubr.f32.gmra.mrb[0].mxu0 %v494
  %v1171 = vpop.f32.mrb[0].mxu0
  %v1172 = vadd.f32 %v155, %v1171
  %v1173 = vpop.f32.mrb[0].mxu0
  %1174 = vmatprep.mubr.f32.mxu0 0.0
  %1175 = vmatmul.mubr.f32.gmra.mrb[0].mxu0 %v497
  %v1176 = vpop.f32.mrb[0].mxu0
  %v1177 = vadd.f32 %v155, %v1176
  %v1178 = vpop.f32.mrb[0].mxu0
  %1179 = vmatprep.mubr.f32.mxu0 0.0
  %1180 = vmatmul.mubr.f32.gmra.mrb[0].mxu0 %v500
  %v1181 = vpop.f32.mrb[0].mxu0
  %v1182 = vadd.f32 %v155, %v1181
  %v1183 = vpop.f32.mrb[0].mxu0
  %1184 = vmatprep.mubr.f32.mxu0 0.0
  %1185 = vmatmul.mubr.f32.gmra.mrb[0].mxu0 %v503
  %v1186 = vpop.f32.mrb[0].mxu0
  %v1187 = vadd.f32 %v155, %v1186
  %v1188 = vpop.f32.mrb[0].mxu0
  %1189 = vmatprep.mubr.f32.mxu0 0.0
  %1190 = vmatmul.mubr.f32.gmra.mrb[0].mxu0 %v506
  %v1191 = vpop.f32.mrb[0].mxu0
  %v1192 = vadd.f32 %v155, %v1191
  %v1193 = vpop.f32.mrb[0].mxu0
  %1194 = vmatprep.mubr.f32.mxu0 0.0
  %1195 = vmatmul.mubr.f32.gmra.mrb[0].mxu0 %v509
  %v1196 = vpop.f32.mrb[0].mxu0
  %v1197 = vadd.f32 %v155, %v1196
  %v1198 = vpop.f32.mrb[0].mxu0
  %1199 = vmatprep.mubr.f32.mxu0 0.0
  %1200 = vmatmul.mubr.f32.gmra.mrb[0].mxu0 %v512
  %v1201 = vpop.f32.mrb[0].mxu0
  %v1202 = vadd.f32 %v155, %v1201
  %v1203 = vpop.f32.mrb[0].mxu0
  %1204 = vmatprep.mubr.f32.mxu0 0.0
  %1205 = vmatmul.mubr.f32.gmra.mrb[0].mxu0 %v515
  %v1206 = vpop.f32.mrb[0].mxu0
  %v1207 = vadd.f32 %v155, %v1206
  %v1208 = vpop.f32.mrb[0].mxu0
  %1209 = vmatprep.mubr.f32.mxu0 0.0
  %1210 = vmatmul.mubr.f32.gmra.mrb[0].mxu0 %v518
  %v1211 = vpop.f32.mrb[0].mxu0
  %v1212 = vadd.f32 %v155, %v1211
  %v1213 = vpop.f32.mrb[0].mxu0
  %1214 = vmatprep.mubr.f32.mxu0 0.0
  %1215 = vmatmul.mubr.f32.gmra.mrb[0].mxu0 %v521
  %v1216 = vpop.f32.mrb[0].mxu0
  %v1217 = vadd.f32 %v155, %v1216
  %v1218 = vpop.f32.mrb[0].mxu0
  %1219 = vmatprep.mubr.f32.mxu0 0.0
  %1220 = vmatmul.mubr.f32.gmra.mrb[0].mxu0 %v524
  %v1221 = vpop.f32.mrb[0].mxu0
  %v1222 = vadd.f32 %v155, %v1221
  %v1223 = vpop.f32.mrb[0].mxu0
  %1224 = vmatprep.mubr.f32.mxu0 0.0
  %1225 = vmatmul.mubr.f32.gmra.mrb[0].mxu0 %v527
  %v1226 = vpop.f32.mrb[0].mxu0
  %v1227 = vadd.f32 %v155, %v1226
  %v1228 = vpop.f32.mrb[0].mxu0
  %1229 = vmatprep.mubr.f32.mxu0 0.0
  %1230 = vmatmul.mubr.f32.gmra.mrb[0].mxu0 %v530
  %v1231 = vpop.f32.mrb[0].mxu0
  %v1232 = vadd.f32 %v155, %v1231
  %v1233 = vpop.f32.mrb[0].mxu0
  %1234 = vmatprep.mubr.f32.mxu0 0.0
  %1235 = vmatmul.mubr.f32.gmra.mrb[0].mxu0 %v533
  %v1236 = vpop.f32.mrb[0].mxu0
  %v1237 = vadd.f32 %v155, %v1236
  %v1238 = vpop.f32.mrb[0].mxu0
  %1239 = vmatprep.mubr.f32.mxu0 0.0
  %1240 = vmatmul.mubr.f32.gmra.mrb[0].mxu0 %v536
  %v1241 = vpop.f32.mrb[0].mxu0
  %v1242 = vadd.f32 %v155, %v1241
  %v1243 = vpop.f32.mrb[0].mxu0
  %1244 = vmatprep.mubr.f32.mxu0 0.0
  %1245 = vmatmul.mubr.f32.gmra.mrb[0].mxu0 %v539
  %v1246 = vpop.f32.mrb[0].mxu0
  %v1247 = vadd.f32 %v155, %v1246
  %v1248 = vpop.f32.mrb[0].mxu0
  %1249 = vdwg.mxu0
  %v1250 = vmax.f32 %v612, 0.0
  %v1251 = vmax.f32 %v617, 0.0
  %v1252 = vmax.f32 %v622, 0.0
  %v1253 = vmax.f32 %v627, 0.0
  %v1254 = vmax.f32 %v632, 0.0
  %v1255 = vmax.f32 %v637, 0.0
  %v1256 = vmax.f32 %v642, 0.0
  %v1257 = vmax.f32 %v647, 0.0
  %v1258 = vmax.f32 %v652, 0.0
  %v1259 = vmax.f32 %v657, 0.0
  %v1260 = vmax.f32 %v662, 0.0
  %v1261 = vmax.f32 %v667, 0.0
  %v1262 = vmax.f32 %v672, 0.0
  %v1263 = vmax.f32 %v677, 0.0
  %v1264 = vmax.f32 %v682, 0.0
  %v1265 = vmax.f32 %v687, 0.0
  %v1266 = vmax.f32 %v692, 0.0
  %v1267 = vmax.f32 %v697, 0.0
  %v1268 = vmax.f32 %v702, 0.0
  %v1269 = vmax.f32 %v707, 0.0
  %v1270 = vmax.f32 %v712, 0.0
  %v1271 = vmax.f32 %v717, 0.0
  %v1272 = vmax.f32 %v722, 0.0
  %v1273 = vmax.f32 %v727, 0.0
  %v1274 = vmax.f32 %v732, 0.0
  %v1275 = vmax.f32 %v737, 0.0
  %v1276 = vmax.f32 %v742, 0.0
  %v1277 = vmax.f32 %v747, 0.0
  %v1278 = vmax.f32 %v752, 0.0
  %v1279 = vmax.f32 %v757, 0.0
  %v1280 = vmax.f32 %v762, 0.0
  %v1281 = vmax.f32 %v767, 0.0
  %v1282 = vmax.f32 %v772, 0.0
  %v1283 = vmax.f32 %v777, 0.0
  %v1284 = vmax.f32 %v782, 0.0
  %v1285 = vmax.f32 %v787, 0.0
  %v1286 = vmax.f32 %v792, 0.0
  %v1287 = vmax.f32 %v797, 0.0
  %v1288 = vmax.f32 %v802, 0.0
  %v1289 = vmax.f32 %v807, 0.0
  %v1290 = vmax.f32 %v812, 0.0
  %v1291 = vmax.f32 %v817, 0.0
  %v1292 = vmax.f32 %v822, 0.0
  %v1293 = vmax.f32 %v827, 0.0
  %v1294 = vmax.f32 %v832, 0.0
  %v1295 = vmax.f32 %v837, 0.0
  %v1296 = vmax.f32 %v842, 0.0
  %v1297 = vmax.f32 %v847, 0.0
  %v1298 = vmax.f32 %v852, 0.0
  %v1299 = vmax.f32 %v857, 0.0
  %v1300 = vmax.f32 %v862, 0.0
  %v1301 = vmax.f32 %v867, 0.0
  %v1302 = vmax.f32 %v872, 0.0
  %v1303 = vmax.f32 %v877, 0.0
  %v1304 = vmax.f32 %v882, 0.0
  %v1305 = vmax.f32 %v887, 0.0
  %v1306 = vmax.f32 %v892, 0.0
  %v1307 = vmax.f32 %v897, 0.0
  %v1308 = vmax.f32 %v902, 0.0
  %v1309 = vmax.f32 %v907, 0.0
  %v1310 = vmax.f32 %v912, 0.0
  %v1311 = vmax.f32 %v917, 0.0
  %v1312 = vmax.f32 %v922, 0.0
  %v1313 = vmax.f32 %v927, 0.0
  %v1314 = vmax.f32 %v932, 0.0
  %v1315 = vmax.f32 %v937, 0.0
  %v1316 = vmax.f32 %v942, 0.0
  %v1317 = vmax.f32 %v947, 0.0
  %v1318 = vmax.f32 %v952, 0.0
  %v1319 = vmax.f32 %v957, 0.0
  %v1320 = vmax.f32 %v962, 0.0
  %v1321 = vmax.f32 %v967, 0.0
  %v1322 = vmax.f32 %v972, 0.0
  %v1323 = vmax.f32 %v977, 0.0
  %v1324 = vmax.f32 %v982, 0.0
  %v1325 = vmax.f32 %v987, 0.0
  %v1326 = vmax.f32 %v992, 0.0
  %v1327 = vmax.f32 %v997, 0.0
  %v1328 = vmax.f32 %v1002, 0.0
  %v1329 = vmax.f32 %v1007, 0.0
  %v1330 = vmax.f32 %v1012, 0.0
  %v1331 = vmax.f32 %v1017, 0.0
  %v1332 = vmax.f32 %v1022, 0.0
  %v1333 = vmax.f32 %v1027, 0.0
  %v1334 = vmax.f32 %v1032, 0.0
  %v1335 = vmax.f32 %v1037, 0.0
  %v1336 = vmax.f32 %v1042, 0.0
  %v1337 = vmax.f32 %v1047, 0.0
  %v1338 = vmax.f32 %v1052, 0.0
  %v1339 = vmax.f32 %v1057, 0.0
  %v1340 = vmax.f32 %v1062, 0.0
  %v1341 = vmax.f32 %v1067, 0.0
  %v1342 = vmax.f32 %v1072, 0.0
  %v1343 = vmax.f32 %v1077, 0.0
  %v1344 = vmax.f32 %v1082, 0.0
  %v1345 = vmax.f32 %v1087, 0.0
  %v1346 = vmax.f32 %v1092, 0.0
  %v1347 = vmax.f32 %v1097, 0.0
  %v1348 = vmax.f32 %v1102, 0.0
  %v1349 = vmax.f32 %v1107, 0.0
  %v1350 = vmax.f32 %v1112, 0.0
  %v1351 = vmax.f32 %v1117, 0.0
  %v1352 = vmax.f32 %v1122, 0.0
  %v1353 = vmax.f32 %v1127, 0.0
  %v1354 = vmax.f32 %v1132, 0.0
  %v1355 = vmax.f32 %v1137, 0.0
  %v1356 = vmax.f32 %v1142, 0.0
  %v1357 = vmax.f32 %v1147, 0.0
  %v1358 = vmax.f32 %v1152, 0.0
  %v1359 = vmax.f32 %v1157, 0.0
  %v1360 = vmax.f32 %v1162, 0.0
  %v1361 = vmax.f32 %v1167, 0.0
  %v1362 = vmax.f32 %v1172, 0.0
  %v1363 = vmax.f32 %v1177, 0.0
  %v1364 = vmax.f32 %v1182, 0.0
  %v1365 = vmax.f32 %v1187, 0.0
  %v1366 = vmax.f32 %v1192, 0.0
  %v1367 = vmax.f32 %v1197, 0.0
  %v1368 = vmax.f32 %v1202, 0.0
  %v1369 = vmax.f32 %v1207, 0.0
  %v1370 = vmax.f32 %v1212, 0.0
  %v1371 = vmax.f32 %v1217, 0.0
  %v1372 = vmax.f32 %v1222, 0.0
  %v1373 = vmax.f32 %v1227, 0.0
  %v1374 = vmax.f32 %v1232, 0.0
  %v1375 = vmax.f32 %v1237, 0.0
  %v1376 = vmax.f32 %v1242, 0.0
  %v1377 = vmax.f32 %v1247, 0.0
  %v1378 = vld [vmem:[%s2] sm:$0xff]
  %v1379 = vld [vmem:[%s2 + $0x8] sm:$0xff]
  %v1380 = vld [vmem:[%s2 + $0x10] sm:$0xff]
  %v1381 = vld [vmem:[%s2 + $0x18] sm:$0xff]
  %v1382 = vld [vmem:[%s2 + $0x20] sm:$0xff]
  %v1383 = vld [vmem:[%s2 + $0x28] sm:$0xff]
  %v1384 = vld [vmem:[%s2 + $0x30] sm:$0xff]
  %v1385 = vld [vmem:[%s2 + $0x38] sm:$0xff]
  %v1386 = vld [vmem:[%s2 + $0x40] sm:$0xff]
  %v1387 = vld [vmem:[%s2 + $0x48] sm:$0xff]
  %v1388 = vld [vmem:[%s2 + $0x50] sm:$0xff]
  %v1389 = vld [vmem:[%s2 + $0x58] sm:$0xff]
  %v1390 = vld [vmem:[%s2 + $0x60] sm:$0xff]
  %v1391 = vld [vmem:[%s2 + $0x68] sm:$0xff]
  %v1392 = vld [vmem:[%s2 + $0x70] sm:$0xff]
  %v1393 = vld [vmem:[%s2 + $0x78] sm:$0xff]
  %v1394 = vld [vmem:[%s4 + $0x1] sm:$0x1]
  %v1395 = vlaneseq
  %v1396 = vshrl.u32 %v1395, 7
  %v1397 = vsub.s32 0, %v1396
  %v1398 = vrot.slane %v1394, %v1397
  %1399 = vmatprep.subr.mxu0 0.0
  %1400 = vmatpush1.msra.mxu0 %v1378
  %1401 = vmatprep.subr.mxu0 0.0
  %1402 = vmatpush1.msra.mxu0 %v1379
  %1403 = vmatprep.subr.mxu0 0.0
  %1404 = vmatpush1.msra.mxu0 %v1380
  %1405 = vmatprep.subr.mxu0 0.0
  %1406 = vmatpush1.msra.mxu0 %v1381
  %1407 = vmatprep.subr.mxu0 0.0
  %1408 = vmatpush1.msra.mxu0 %v1382
  %1409 = vmatprep.subr.mxu0 0.0
  %1410 = vmatpush1.msra.mxu0 %v1383
  %1411 = vmatprep.subr.mxu0 0.0
  %1412 = vmatpush1.msra.mxu0 %v1384
  %1413 = vmatprep.subr.mxu0 0.0
  %1414 = vmatpush1.msra.mxu0 %v1385
  %1415 = vmatprep.subr.mxu0 0.0
  %1416 = vmatpush1.msra.mxu0 %v1386
  %1417 = vmatprep.subr.mxu0 0.0
  %1418 = vmatpush1.msra.mxu0 %v1387
  %1419 = vmatprep.subr.mxu0 0.0
  %1420 = vmatpush1.msra.mxu0 %v1388
  %1421 = vmatprep.subr.mxu0 0.0
  %1422 = vmatpush1.msra.mxu0 %v1389
  %1423 = vmatprep.subr.mxu0 0.0
  %1424 = vmatpush1.msra.mxu0 %v1390
  %1425 = vmatprep.subr.mxu0 0.0
  %1426 = vmatpush1.msra.mxu0 %v1391
  %1427 = vmatprep.subr.mxu0 0.0
  %1428 = vmatpush1.msra.mxu0 %v1392
  %1429 = vmatprep.subr.mxu0 0.0
  %1430 = vmatpush1.msra.mxu0 %v1393
  %1431 = vmatprep.subr.mxu0 0.0
  %1432 = vmatpush1.msra.mxu0 0.0
  %1433 = vmatprep.subr.mxu0 0.0
  %1434 = vmatpush1.msra.mxu0 0.0
  %1435 = vmatprep.subr.mxu0 0.0
  %1436 = vmatpush1.msra.mxu0 0.0
  %1437 = vmatprep.subr.mxu0 0.0
  %1438 = vmatpush1.msra.mxu0 0.0
  %1439 = vmatprep.subr.mxu0 0.0
  %1440 = vmatpush1.msra.mxu0 0.0
  %1441 = vmatprep.subr.mxu0 0.0
  %1442 = vmatpush1.msra.mxu0 0.0
  %1443 = vmatprep.subr.mxu0 0.0
  %1444 = vmatpush1.msra.mxu0 0.0
  %1445 = vmatprep.subr.mxu0 0.0
  %1446 = vmatpush1.msra.mxu0 0.0
  %1447 = vmatprep.subr.mxu0 0.0
  %1448 = vmatpush1.msra.mxu0 0.0
  %1449 = vmatprep.subr.mxu0 0.0
  %1450 = vmatpush1.msra.mxu0 0.0
  %1451 = vmatprep.subr.mxu0 0.0
  %1452 = vmatpush1.msra.mxu0 0.0
  %1453 = vmatprep.subr.mxu0 0.0
  %1454 = vmatpush1.msra.mxu0 0.0
  %1455 = vmatprep.subr.mxu0 0.0
  %1456 = vmatpush1.msra.mxu0 0.0
  %1457 = vmatprep.subr.mxu0 0.0
  %1458 = vmatpush1.msra.mxu0 0.0
  %1459 = vmatprep.subr.mxu0 0.0
  %1460 = vmatpush1.msra.mxu0 0.0
  %1461 = vmatprep.subr.mxu0 0.0
  %1462 = vmatpush1.msra.mxu0 0.0
  %1463 = vmatprep.mubr.f32.mxu0 0.0
  %1464 = vmatmul.mubr.f32.gmra.mrb[0].mxu0 %v1250
  %v1465 = vpop.f32.mrb[0].mxu0
  %v1466 = vadd.f32 %v1398, %v1465
  %v1467 = vpop.f32.mrb[0].mxu0
  %1468 = vmatprep.mubr.f32.mxu0 0.0
  %1469 = vmatmul.mubr.f32.gmra.mrb[0].mxu0 %v1251
  %v1470 = vpop.f32.mrb[0].mxu0
  %v1471 = vadd.f32 %v1398, %v1470
  %v1472 = vpop.f32.mrb[0].mxu0
  %1473 = vmatprep.mubr.f32.mxu0 0.0
  %1474 = vmatmul.mubr.f32.gmra.mrb[0].mxu0 %v1252
  %v1475 = vpop.f32.mrb[0].mxu0
  %v1476 = vadd.f32 %v1398, %v1475
  %v1477 = vpop.f32.mrb[0].mxu0
  %1478 = vmatprep.mubr.f32.mxu0 0.0
  %1479 = vmatmul.mubr.f32.gmra.mrb[0].mxu0 %v1253
  %v1480 = vpop.f32.mrb[0].mxu0
  %v1481 = vadd.f32 %v1398, %v1480
  %v1482 = vpop.f32.mrb[0].mxu0
  %1483 = vmatprep.mubr.f32.mxu0 0.0
  %1484 = vmatmul.mubr.f32.gmra.mrb[0].mxu0 %v1254
  %v1485 = vpop.f32.mrb[0].mxu0
  %v1486 = vadd.f32 %v1398, %v1485
  %v1487 = vpop.f32.mrb[0].mxu0
  %1488 = vmatprep.mubr.f32.mxu0 0.0
  %1489 = vmatmul.mubr.f32.gmra.mrb[0].mxu0 %v1255
  %v1490 = vpop.f32.mrb[0].mxu0
  %v1491 = vadd.f32 %v1398, %v1490
  %v1492 = vpop.f32.mrb[0].mxu0
  %1493 = vmatprep.mubr.f32.mxu0 0.0
  %1494 = vmatmul.mubr.f32.gmra.mrb[0].mxu0 %v1256
  %v1495 = vpop.f32.mrb[0].mxu0
  %v1496 = vadd.f32 %v1398, %v1495
  %v1497 = vpop.f32.mrb[0].mxu0
  %1498 = vmatprep.mubr.f32.mxu0 0.0
  %1499 = vmatmul.mubr.f32.gmra.mrb[0].mxu0 %v1257
  %v1500 = vpop.f32.mrb[0].mxu0
  %v1501 = vadd.f32 %v1398, %v1500
  %v1502 = vpop.f32.mrb[0].mxu0
  %1503 = vmatprep.mubr.f32.mxu0 0.0
  %1504 = vmatmul.mubr.f32.gmra.mrb[0].mxu0 %v1258
  %v1505 = vpop.f32.mrb[0].mxu0
  %v1506 = vadd.f32 %v1398, %v1505
  %v1507 = vpop.f32.mrb[0].mxu0
  %1508 = vmatprep.mubr.f32.mxu0 0.0
  %1509 = vmatmul.mubr.f32.gmra.mrb[0].mxu0 %v1259
  %v1510 = vpop.f32.mrb[0].mxu0
  %v1511 = vadd.f32 %v1398, %v1510
  %v1512 = vpop.f32.mrb[0].mxu0
  %1513 = vmatprep.mubr.f32.mxu0 0.0
  %1514 = vmatmul.mubr.f32.gmra.mrb[0].mxu0 %v1260
  %v1515 = vpop.f32.mrb[0].mxu0
  %v1516 = vadd.f32 %v1398, %v1515
  %v1517 = vpop.f32.mrb[0].mxu0
  %1518 = vmatprep.mubr.f32.mxu0 0.0
  %1519 = vmatmul.mubr.f32.gmra.mrb[0].mxu0 %v1261
  %v1520 = vpop.f32.mrb[0].mxu0
  %v1521 = vadd.f32 %v1398, %v1520
  %v1522 = vpop.f32.mrb[0].mxu0
  %1523 = vmatprep.mubr.f32.mxu0 0.0
  %1524 = vmatmul.mubr.f32.gmra.mrb[0].mxu0 %v1262
  %v1525 = vpop.f32.mrb[0].mxu0
  %v1526 = vadd.f32 %v1398, %v1525
  %v1527 = vpop.f32.mrb[0].mxu0
  %1528 = vmatprep.mubr.f32.mxu0 0.0
  %1529 = vmatmul.mubr.f32.gmra.mrb[0].mxu0 %v1263
  %v1530 = vpop.f32.mrb[0].mxu0
  %v1531 = vadd.f32 %v1398, %v1530
  %v1532 = vpop.f32.mrb[0].mxu0
  %1533 = vmatprep.mubr.f32.mxu0 0.0
  %1534 = vmatmul.mubr.f32.gmra.mrb[0].mxu0 %v1264
  %v1535 = vpop.f32.mrb[0].mxu0
  %v1536 = vadd.f32 %v1398, %v1535
  %v1537 = vpop.f32.mrb[0].mxu0
  %1538 = vmatprep.mubr.f32.mxu0 0.0
  %1539 = vmatmul.mubr.f32.gmra.mrb[0].mxu0 %v1265
  %v1540 = vpop.f32.mrb[0].mxu0
  %v1541 = vadd.f32 %v1398, %v1540
  %v1542 = vpop.f32.mrb[0].mxu0
  %1543 = vmatprep.mubr.f32.mxu0 0.0
  %1544 = vmatmul.mubr.f32.gmra.mrb[0].mxu0 %v1266
  %v1545 = vpop.f32.mrb[0].mxu0
  %v1546 = vadd.f32 %v1398, %v1545
  %v1547 = vpop.f32.mrb[0].mxu0
  %1548 = vmatprep.mubr.f32.mxu0 0.0
  %1549 = vmatmul.mubr.f32.gmra.mrb[0].mxu0 %v1267
  %v1550 = vpop.f32.mrb[0].mxu0
  %v1551 = vadd.f32 %v1398, %v1550
  %v1552 = vpop.f32.mrb[0].mxu0
  %1553 = vmatprep.mubr.f32.mxu0 0.0
  %1554 = vmatmul.mubr.f32.gmra.mrb[0].mxu0 %v1268
  %v1555 = vpop.f32.mrb[0].mxu0
  %v1556 = vadd.f32 %v1398, %v1555
  %v1557 = vpop.f32.mrb[0].mxu0
  %1558 = vmatprep.mubr.f32.mxu0 0.0
  %1559 = vmatmul.mubr.f32.gmra.mrb[0].mxu0 %v1269
  %v1560 = vpop.f32.mrb[0].mxu0
  %v1561 = vadd.f32 %v1398, %v1560
  %v1562 = vpop.f32.mrb[0].mxu0
  %1563 = vmatprep.mubr.f32.mxu0 0.0
  %1564 = vmatmul.mubr.f32.gmra.mrb[0].mxu0 %v1270
  %v1565 = vpop.f32.mrb[0].mxu0
  %v1566 = vadd.f32 %v1398, %v1565
  %v1567 = vpop.f32.mrb[0].mxu0
  %1568 = vmatprep.mubr.f32.mxu0 0.0
  %1569 = vmatmul.mubr.f32.gmra.mrb[0].mxu0 %v1271
  %v1570 = vpop.f32.mrb[0].mxu0
  %v1571 = vadd.f32 %v1398, %v1570
  %v1572 = vpop.f32.mrb[0].mxu0
  %1573 = vmatprep.mubr.f32.mxu0 0.0
  %1574 = vmatmul.mubr.f32.gmra.mrb[0].mxu0 %v1272
  %v1575 = vpop.f32.mrb[0].mxu0
  %v1576 = vadd.f32 %v1398, %v1575
  %v1577 = vpop.f32.mrb[0].mxu0
  %1578 = vmatprep.mubr.f32.mxu0 0.0
  %1579 = vmatmul.mubr.f32.gmra.mrb[0].mxu0 %v1273
  %v1580 = vpop.f32.mrb[0].mxu0
  %v1581 = vadd.f32 %v1398, %v1580
  %v1582 = vpop.f32.mrb[0].mxu0
  %1583 = vmatprep.mubr.f32.mxu0 0.0
  %1584 = vmatmul.mubr.f32.gmra.mrb[0].mxu0 %v1274
  %v1585 = vpop.f32.mrb[0].mxu0
  %v1586 = vadd.f32 %v1398, %v1585
  %v1587 = vpop.f32.mrb[0].mxu0
  %1588 = vmatprep.mubr.f32.mxu0 0.0
  %1589 = vmatmul.mubr.f32.gmra.mrb[0].mxu0 %v1275
  %v1590 = vpop.f32.mrb[0].mxu0
  %v1591 = vadd.f32 %v1398, %v1590
  %v1592 = vpop.f32.mrb[0].mxu0
  %1593 = vmatprep.mubr.f32.mxu0 0.0
  %1594 = vmatmul.mubr.f32.gmra.mrb[0].mxu0 %v1276
  %v1595 = vpop.f32.mrb[0].mxu0
  %v1596 = vadd.f32 %v1398, %v1595
  %v1597 = vpop.f32.mrb[0].mxu0
  %1598 = vmatprep.mubr.f32.mxu0 0.0
  %1599 = vmatmul.mubr.f32.gmra.mrb[0].mxu0 %v1277
  %v1600 = vpop.f32.mrb[0].mxu0
  %v1601 = vadd.f32 %v1398, %v1600
  %v1602 = vpop.f32.mrb[0].mxu0
  %1603 = vmatprep.mubr.f32.mxu0 0.0
  %1604 = vmatmul.mubr.f32.gmra.mrb[0].mxu0 %v1278
  %v1605 = vpop.f32.mrb[0].mxu0
  %v1606 = vadd.f32 %v1398, %v1605
  %v1607 = vpop.f32.mrb[0].mxu0
  %1608 = vmatprep.mubr.f32.mxu0 0.0
  %1609 = vmatmul.mubr.f32.gmra.mrb[0].mxu0 %v1279
  %v1610 = vpop.f32.mrb[0].mxu0
  %v1611 = vadd.f32 %v1398, %v1610
  %v1612 = vpop.f32.mrb[0].mxu0
  %1613 = vmatprep.mubr.f32.mxu0 0.0
  %1614 = vmatmul.mubr.f32.gmra.mrb[0].mxu0 %v1280
  %v1615 = vpop.f32.mrb[0].mxu0
  %v1616 = vadd.f32 %v1398, %v1615
  %v1617 = vpop.f32.mrb[0].mxu0
  %1618 = vmatprep.mubr.f32.mxu0 0.0
  %1619 = vmatmul.mubr.f32.gmra.mrb[0].mxu0 %v1281
  %v1620 = vpop.f32.mrb[0].mxu0
  %v1621 = vadd.f32 %v1398, %v1620
  %v1622 = vpop.f32.mrb[0].mxu0
  %1623 = vmatprep.mubr.f32.mxu0 0.0
  %1624 = vmatmul.mubr.f32.gmra.mrb[0].mxu0 %v1282
  %v1625 = vpop.f32.mrb[0].mxu0
  %v1626 = vadd.f32 %v1398, %v1625
  %v1627 = vpop.f32.mrb[0].mxu0
  %1628 = vmatprep.mubr.f32.mxu0 0.0
  %1629 = vmatmul.mubr.f32.gmra.mrb[0].mxu0 %v1283
  %v1630 = vpop.f32.mrb[0].mxu0
  %v1631 = vadd.f32 %v1398, %v1630
  %v1632 = vpop.f32.mrb[0].mxu0
  %1633 = vmatprep.mubr.f32.mxu0 0.0
  %1634 = vmatmul.mubr.f32.gmra.mrb[0].mxu0 %v1284
  %v1635 = vpop.f32.mrb[0].mxu0
  %v1636 = vadd.f32 %v1398, %v1635
  %v1637 = vpop.f32.mrb[0].mxu0
  %1638 = vmatprep.mubr.f32.mxu0 0.0
  %1639 = vmatmul.mubr.f32.gmra.mrb[0].mxu0 %v1285
  %v1640 = vpop.f32.mrb[0].mxu0
  %v1641 = vadd.f32 %v1398, %v1640
  %v1642 = vpop.f32.mrb[0].mxu0
  %1643 = vmatprep.mubr.f32.mxu0 0.0
  %1644 = vmatmul.mubr.f32.gmra.mrb[0].mxu0 %v1286
  %v1645 = vpop.f32.mrb[0].mxu0
  %v1646 = vadd.f32 %v1398, %v1645
  %v1647 = vpop.f32.mrb[0].mxu0
  %1648 = vmatprep.mubr.f32.mxu0 0.0
  %1649 = vmatmul.mubr.f32.gmra.mrb[0].mxu0 %v1287
  %v1650 = vpop.f32.mrb[0].mxu0
  %v1651 = vadd.f32 %v1398, %v1650
  %v1652 = vpop.f32.mrb[0].mxu0
  %1653 = vmatprep.mubr.f32.mxu0 0.0
  %1654 = vmatmul.mubr.f32.gmra.mrb[0].mxu0 %v1288
  %v1655 = vpop.f32.mrb[0].mxu0
  %v1656 = vadd.f32 %v1398, %v1655
  %v1657 = vpop.f32.mrb[0].mxu0
  %1658 = vmatprep.mubr.f32.mxu0 0.0
  %1659 = vmatmul.mubr.f32.gmra.mrb[0].mxu0 %v1289
  %v1660 = vpop.f32.mrb[0].mxu0
  %v1661 = vadd.f32 %v1398, %v1660
  %v1662 = vpop.f32.mrb[0].mxu0
  %1663 = vmatprep.mubr.f32.mxu0 0.0
  %1664 = vmatmul.mubr.f32.gmra.mrb[0].mxu0 %v1290
  %v1665 = vpop.f32.mrb[0].mxu0
  %v1666 = vadd.f32 %v1398, %v1665
  %v1667 = vpop.f32.mrb[0].mxu0
  %1668 = vmatprep.mubr.f32.mxu0 0.0
  %1669 = vmatmul.mubr.f32.gmra.mrb[0].mxu0 %v1291
  %v1670 = vpop.f32.mrb[0].mxu0
  %v1671 = vadd.f32 %v1398, %v1670
  %v1672 = vpop.f32.mrb[0].mxu0
  %1673 = vmatprep.mubr.f32.mxu0 0.0
  %1674 = vmatmul.mubr.f32.gmra.mrb[0].mxu0 %v1292
  %v1675 = vpop.f32.mrb[0].mxu0
  %v1676 = vadd.f32 %v1398, %v1675
  %v1677 = vpop.f32.mrb[0].mxu0
  %1678 = vmatprep.mubr.f32.mxu0 0.0
  %1679 = vmatmul.mubr.f32.gmra.mrb[0].mxu0 %v1293
  %v1680 = vpop.f32.mrb[0].mxu0
  %v1681 = vadd.f32 %v1398, %v1680
  %v1682 = vpop.f32.mrb[0].mxu0
  %1683 = vmatprep.mubr.f32.mxu0 0.0
  %1684 = vmatmul.mubr.f32.gmra.mrb[0].mxu0 %v1294
  %v1685 = vpop.f32.mrb[0].mxu0
  %v1686 = vadd.f32 %v1398, %v1685
  %v1687 = vpop.f32.mrb[0].mxu0
  %1688 = vmatprep.mubr.f32.mxu0 0.0
  %1689 = vmatmul.mubr.f32.gmra.mrb[0].mxu0 %v1295
  %v1690 = vpop.f32.mrb[0].mxu0
  %v1691 = vadd.f32 %v1398, %v1690
  %v1692 = vpop.f32.mrb[0].mxu0
  %1693 = vmatprep.mubr.f32.mxu0 0.0
  %1694 = vmatmul.mubr.f32.gmra.mrb[0].mxu0 %v1296
  %v1695 = vpop.f32.mrb[0].mxu0
  %v1696 = vadd.f32 %v1398, %v1695
  %v1697 = vpop.f32.mrb[0].mxu0
  %1698 = vmatprep.mubr.f32.mxu0 0.0
  %1699 = vmatmul.mubr.f32.gmra.mrb[0].mxu0 %v1297
  %v1700 = vpop.f32.mrb[0].mxu0
  %v1701 = vadd.f32 %v1398, %v1700
  %v1702 = vpop.f32.mrb[0].mxu0
  %1703 = vmatprep.mubr.f32.mxu0 0.0
  %1704 = vmatmul.mubr.f32.gmra.mrb[0].mxu0 %v1298
  %v1705 = vpop.f32.mrb[0].mxu0
  %v1706 = vadd.f32 %v1398, %v1705
  %v1707 = vpop.f32.mrb[0].mxu0
  %1708 = vmatprep.mubr.f32.mxu0 0.0
  %1709 = vmatmul.mubr.f32.gmra.mrb[0].mxu0 %v1299
  %v1710 = vpop.f32.mrb[0].mxu0
  %v1711 = vadd.f32 %v1398, %v1710
  %v1712 = vpop.f32.mrb[0].mxu0
  %1713 = vmatprep.mubr.f32.mxu0 0.0
  %1714 = vmatmul.mubr.f32.gmra.mrb[0].mxu0 %v1300
  %v1715 = vpop.f32.mrb[0].mxu0
  %v1716 = vadd.f32 %v1398, %v1715
  %v1717 = vpop.f32.mrb[0].mxu0
  %1718 = vmatprep.mubr.f32.mxu0 0.0
  %1719 = vmatmul.mubr.f32.gmra.mrb[0].mxu0 %v1301
  %v1720 = vpop.f32.mrb[0].mxu0
  %v1721 = vadd.f32 %v1398, %v1720
  %v1722 = vpop.f32.mrb[0].mxu0
  %1723 = vmatprep.mubr.f32.mxu0 0.0
  %1724 = vmatmul.mubr.f32.gmra.mrb[0].mxu0 %v1302
  %v1725 = vpop.f32.mrb[0].mxu0
  %v1726 = vadd.f32 %v1398, %v1725
  %v1727 = vpop.f32.mrb[0].mxu0
  %1728 = vmatprep.mubr.f32.mxu0 0.0
  %1729 = vmatmul.mubr.f32.gmra.mrb[0].mxu0 %v1303
  %v1730 = vpop.f32.mrb[0].mxu0
  %v1731 = vadd.f32 %v1398, %v1730
  %v1732 = vpop.f32.mrb[0].mxu0
  %1733 = vmatprep.mubr.f32.mxu0 0.0
  %1734 = vmatmul.mubr.f32.gmra.mrb[0].mxu0 %v1304
  %v1735 = vpop.f32.mrb[0].mxu0
  %v1736 = vadd.f32 %v1398, %v1735
  %v1737 = vpop.f32.mrb[0].mxu0
  %1738 = vmatprep.mubr.f32.mxu0 0.0
  %1739 = vmatmul.mubr.f32.gmra.mrb[0].mxu0 %v1305
  %v1740 = vpop.f32.mrb[0].mxu0
  %v1741 = vadd.f32 %v1398, %v1740
  %v1742 = vpop.f32.mrb[0].mxu0
  %1743 = vmatprep.mubr.f32.mxu0 0.0
  %1744 = vmatmul.mubr.f32.gmra.mrb[0].mxu0 %v1306
  %v1745 = vpop.f32.mrb[0].mxu0
  %v1746 = vadd.f32 %v1398, %v1745
  %v1747 = vpop.f32.mrb[0].mxu0
  %1748 = vmatprep.mubr.f32.mxu0 0.0
  %1749 = vmatmul.mubr.f32.gmra.mrb[0].mxu0 %v1307
  %v1750 = vpop.f32.mrb[0].mxu0
  %v1751 = vadd.f32 %v1398, %v1750
  %v1752 = vpop.f32.mrb[0].mxu0
  %1753 = vmatprep.mubr.f32.mxu0 0.0
  %1754 = vmatmul.mubr.f32.gmra.mrb[0].mxu0 %v1308
  %v1755 = vpop.f32.mrb[0].mxu0
  %v1756 = vadd.f32 %v1398, %v1755
  %v1757 = vpop.f32.mrb[0].mxu0
  %1758 = vmatprep.mubr.f32.mxu0 0.0
  %1759 = vmatmul.mubr.f32.gmra.mrb[0].mxu0 %v1309
  %v1760 = vpop.f32.mrb[0].mxu0
  %v1761 = vadd.f32 %v1398, %v1760
  %v1762 = vpop.f32.mrb[0].mxu0
  %1763 = vmatprep.mubr.f32.mxu0 0.0
  %1764 = vmatmul.mubr.f32.gmra.mrb[0].mxu0 %v1310
  %v1765 = vpop.f32.mrb[0].mxu0
  %v1766 = vadd.f32 %v1398, %v1765
  %v1767 = vpop.f32.mrb[0].mxu0
  %1768 = vmatprep.mubr.f32.mxu0 0.0
  %1769 = vmatmul.mubr.f32.gmra.mrb[0].mxu0 %v1311
  %v1770 = vpop.f32.mrb[0].mxu0
  %v1771 = vadd.f32 %v1398, %v1770
  %v1772 = vpop.f32.mrb[0].mxu0
  %1773 = vmatprep.mubr.f32.mxu0 0.0
  %1774 = vmatmul.mubr.f32.gmra.mrb[0].mxu0 %v1312
  %v1775 = vpop.f32.mrb[0].mxu0
  %v1776 = vadd.f32 %v1398, %v1775
  %v1777 = vpop.f32.mrb[0].mxu0
  %1778 = vmatprep.mubr.f32.mxu0 0.0
  %1779 = vmatmul.mubr.f32.gmra.mrb[0].mxu0 %v1313
  %v1780 = vpop.f32.mrb[0].mxu0
  %v1781 = vadd.f32 %v1398, %v1780
  %v1782 = vpop.f32.mrb[0].mxu0
  %1783 = vmatprep.mubr.f32.mxu0 0.0
  %1784 = vmatmul.mubr.f32.gmra.mrb[0].mxu0 %v1314
  %v1785 = vpop.f32.mrb[0].mxu0
  %v1786 = vadd.f32 %v1398, %v1785
  %v1787 = vpop.f32.mrb[0].mxu0
  %1788 = vmatprep.mubr.f32.mxu0 0.0
  %1789 = vmatmul.mubr.f32.gmra.mrb[0].mxu0 %v1315
  %v1790 = vpop.f32.mrb[0].mxu0
  %v1791 = vadd.f32 %v1398, %v1790
  %v1792 = vpop.f32.mrb[0].mxu0
  %1793 = vmatprep.mubr.f32.mxu0 0.0
  %1794 = vmatmul.mubr.f32.gmra.mrb[0].mxu0 %v1316
  %v1795 = vpop.f32.mrb[0].mxu0
  %v1796 = vadd.f32 %v1398, %v1795
  %v1797 = vpop.f32.mrb[0].mxu0
  %1798 = vmatprep.mubr.f32.mxu0 0.0
  %1799 = vmatmul.mubr.f32.gmra.mrb[0].mxu0 %v1317
  %v1800 = vpop.f32.mrb[0].mxu0
  %v1801 = vadd.f32 %v1398, %v1800
  %v1802 = vpop.f32.mrb[0].mxu0
  %1803 = vmatprep.mubr.f32.mxu0 0.0
  %1804 = vmatmul.mubr.f32.gmra.mrb[0].mxu0 %v1318
  %v1805 = vpop.f32.mrb[0].mxu0
  %v1806 = vadd.f32 %v1398, %v1805
  %v1807 = vpop.f32.mrb[0].mxu0
  %1808 = vmatprep.mubr.f32.mxu0 0.0
  %1809 = vmatmul.mubr.f32.gmra.mrb[0].mxu0 %v1319
  %v1810 = vpop.f32.mrb[0].mxu0
  %v1811 = vadd.f32 %v1398, %v1810
  %v1812 = vpop.f32.mrb[0].mxu0
  %1813 = vmatprep.mubr.f32.mxu0 0.0
  %1814 = vmatmul.mubr.f32.gmra.mrb[0].mxu0 %v1320
  %v1815 = vpop.f32.mrb[0].mxu0
  %v1816 = vadd.f32 %v1398, %v1815
  %v1817 = vpop.f32.mrb[0].mxu0
  %1818 = vmatprep.mubr.f32.mxu0 0.0
  %1819 = vmatmul.mubr.f32.gmra.mrb[0].mxu0 %v1321
  %v1820 = vpop.f32.mrb[0].mxu0
  %v1821 = vadd.f32 %v1398, %v1820
  %v1822 = vpop.f32.mrb[0].mxu0
  %1823 = vmatprep.mubr.f32.mxu0 0.0
  %1824 = vmatmul.mubr.f32.gmra.mrb[0].mxu0 %v1322
  %v1825 = vpop.f32.mrb[0].mxu0
  %v1826 = vadd.f32 %v1398, %v1825
  %v1827 = vpop.f32.mrb[0].mxu0
  %1828 = vmatprep.mubr.f32.mxu0 0.0
  %1829 = vmatmul.mubr.f32.gmra.mrb[0].mxu0 %v1323
  %v1830 = vpop.f32.mrb[0].mxu0
  %v1831 = vadd.f32 %v1398, %v1830
  %v1832 = vpop.f32.mrb[0].mxu0
  %1833 = vmatprep.mubr.f32.mxu0 0.0
  %1834 = vmatmul.mubr.f32.gmra.mrb[0].mxu0 %v1324
  %v1835 = vpop.f32.mrb[0].mxu0
  %v1836 = vadd.f32 %v1398, %v1835
  %v1837 = vpop.f32.mrb[0].mxu0
  %1838 = vmatprep.mubr.f32.mxu0 0.0
  %1839 = vmatmul.mubr.f32.gmra.mrb[0].mxu0 %v1325
  %v1840 = vpop.f32.mrb[0].mxu0
  %v1841 = vadd.f32 %v1398, %v1840
  %v1842 = vpop.f32.mrb[0].mxu0
  %1843 = vmatprep.mubr.f32.mxu0 0.0
  %1844 = vmatmul.mubr.f32.gmra.mrb[0].mxu0 %v1326
  %v1845 = vpop.f32.mrb[0].mxu0
  %v1846 = vadd.f32 %v1398, %v1845
  %v1847 = vpop.f32.mrb[0].mxu0
  %1848 = vmatprep.mubr.f32.mxu0 0.0
  %1849 = vmatmul.mubr.f32.gmra.mrb[0].mxu0 %v1327
  %v1850 = vpop.f32.mrb[0].mxu0
  %v1851 = vadd.f32 %v1398, %v1850
  %v1852 = vpop.f32.mrb[0].mxu0
  %1853 = vmatprep.mubr.f32.mxu0 0.0
  %1854 = vmatmul.mubr.f32.gmra.mrb[0].mxu0 %v1328
  %v1855 = vpop.f32.mrb[0].mxu0
  %v1856 = vadd.f32 %v1398, %v1855
  %v1857 = vpop.f32.mrb[0].mxu0
  %1858 = vmatprep.mubr.f32.mxu0 0.0
  %1859 = vmatmul.mubr.f32.gmra.mrb[0].mxu0 %v1329
  %v1860 = vpop.f32.mrb[0].mxu0
  %v1861 = vadd.f32 %v1398, %v1860
  %v1862 = vpop.f32.mrb[0].mxu0
  %1863 = vmatprep.mubr.f32.mxu0 0.0
  %1864 = vmatmul.mubr.f32.gmra.mrb[0].mxu0 %v1330
  %v1865 = vpop.f32.mrb[0].mxu0
  %v1866 = vadd.f32 %v1398, %v1865
  %v1867 = vpop.f32.mrb[0].mxu0
  %1868 = vmatprep.mubr.f32.mxu0 0.0
  %1869 = vmatmul.mubr.f32.gmra.mrb[0].mxu0 %v1331
  %v1870 = vpop.f32.mrb[0].mxu0
  %v1871 = vadd.f32 %v1398, %v1870
  %v1872 = vpop.f32.mrb[0].mxu0
  %1873 = vmatprep.mubr.f32.mxu0 0.0
  %1874 = vmatmul.mubr.f32.gmra.mrb[0].mxu0 %v1332
  %v1875 = vpop.f32.mrb[0].mxu0
  %v1876 = vadd.f32 %v1398, %v1875
  %v1877 = vpop.f32.mrb[0].mxu0
  %1878 = vmatprep.mubr.f32.mxu0 0.0
  %1879 = vmatmul.mubr.f32.gmra.mrb[0].mxu0 %v1333
  %v1880 = vpop.f32.mrb[0].mxu0
  %v1881 = vadd.f32 %v1398, %v1880
  %v1882 = vpop.f32.mrb[0].mxu0
  %1883 = vmatprep.mubr.f32.mxu0 0.0
  %1884 = vmatmul.mubr.f32.gmra.mrb[0].mxu0 %v1334
  %v1885 = vpop.f32.mrb[0].mxu0
  %v1886 = vadd.f32 %v1398, %v1885
  %v1887 = vpop.f32.mrb[0].mxu0
  %1888 = vmatprep.mubr.f32.mxu0 0.0
  %1889 = vmatmul.mubr.f32.gmra.mrb[0].mxu0 %v1335
  %v1890 = vpop.f32.mrb[0].mxu0
  %v1891 = vadd.f32 %v1398, %v1890
  %v1892 = vpop.f32.mrb[0].mxu0
  %1893 = vmatprep.mubr.f32.mxu0 0.0
  %1894 = vmatmul.mubr.f32.gmra.mrb[0].mxu0 %v1336
  %v1895 = vpop.f32.mrb[0].mxu0
  %v1896 = vadd.f32 %v1398, %v1895
  %v1897 = vpop.f32.mrb[0].mxu0
  %1898 = vmatprep.mubr.f32.mxu0 0.0
  %1899 = vmatmul.mubr.f32.gmra.mrb[0].mxu0 %v1337
  %v1900 = vpop.f32.mrb[0].mxu0
  %v1901 = vadd.f32 %v1398, %v1900
  %v1902 = vpop.f32.mrb[0].mxu0
  %1903 = vmatprep.mubr.f32.mxu0 0.0
  %1904 = vmatmul.mubr.f32.gmra.mrb[0].mxu0 %v1338
  %v1905 = vpop.f32.mrb[0].mxu0
  %v1906 = vadd.f32 %v1398, %v1905
  %v1907 = vpop.f32.mrb[0].mxu0
  %1908 = vmatprep.mubr.f32.mxu0 0.0
  %1909 = vmatmul.mubr.f32.gmra.mrb[0].mxu0 %v1339
  %v1910 = vpop.f32.mrb[0].mxu0
  %v1911 = vadd.f32 %v1398, %v1910
  %v1912 = vpop.f32.mrb[0].mxu0
  %1913 = vmatprep.mubr.f32.mxu0 0.0
  %1914 = vmatmul.mubr.f32.gmra.mrb[0].mxu0 %v1340
  %v1915 = vpop.f32.mrb[0].mxu0
  %v1916 = vadd.f32 %v1398, %v1915
  %v1917 = vpop.f32.mrb[0].mxu0
  %1918 = vmatprep.mubr.f32.mxu0 0.0
  %1919 = vmatmul.mubr.f32.gmra.mrb[0].mxu0 %v1341
  %v1920 = vpop.f32.mrb[0].mxu0
  %v1921 = vadd.f32 %v1398, %v1920
  %v1922 = vpop.f32.mrb[0].mxu0
  %1923 = vmatprep.mubr.f32.mxu0 0.0
  %1924 = vmatmul.mubr.f32.gmra.mrb[0].mxu0 %v1342
  %v1925 = vpop.f32.mrb[0].mxu0
  %v1926 = vadd.f32 %v1398, %v1925
  %v1927 = vpop.f32.mrb[0].mxu0
  %1928 = vmatprep.mubr.f32.mxu0 0.0
  %1929 = vmatmul.mubr.f32.gmra.mrb[0].mxu0 %v1343
  %v1930 = vpop.f32.mrb[0].mxu0
  %v1931 = vadd.f32 %v1398, %v1930
  %v1932 = vpop.f32.mrb[0].mxu0
  %1933 = vmatprep.mubr.f32.mxu0 0.0
  %1934 = vmatmul.mubr.f32.gmra.mrb[0].mxu0 %v1344
  %v1935 = vpop.f32.mrb[0].mxu0
  %v1936 = vadd.f32 %v1398, %v1935
  %v1937 = vpop.f32.mrb[0].mxu0
  %1938 = vmatprep.mubr.f32.mxu0 0.0
  %1939 = vmatmul.mubr.f32.gmra.mrb[0].mxu0 %v1345
  %v1940 = vpop.f32.mrb[0].mxu0
  %v1941 = vadd.f32 %v1398, %v1940
  %v1942 = vpop.f32.mrb[0].mxu0
  %1943 = vmatprep.mubr.f32.mxu0 0.0
  %1944 = vmatmul.mubr.f32.gmra.mrb[0].mxu0 %v1346
  %v1945 = vpop.f32.mrb[0].mxu0
  %v1946 = vadd.f32 %v1398, %v1945
  %v1947 = vpop.f32.mrb[0].mxu0
  %1948 = vmatprep.mubr.f32.mxu0 0.0
  %1949 = vmatmul.mubr.f32.gmra.mrb[0].mxu0 %v1347
  %v1950 = vpop.f32.mrb[0].mxu0
  %v1951 = vadd.f32 %v1398, %v1950
  %v1952 = vpop.f32.mrb[0].mxu0
  %1953 = vmatprep.mubr.f32.mxu0 0.0
  %1954 = vmatmul.mubr.f32.gmra.mrb[0].mxu0 %v1348
  %v1955 = vpop.f32.mrb[0].mxu0
  %v1956 = vadd.f32 %v1398, %v1955
  %v1957 = vpop.f32.mrb[0].mxu0
  %1958 = vmatprep.mubr.f32.mxu0 0.0
  %1959 = vmatmul.mubr.f32.gmra.mrb[0].mxu0 %v1349
  %v1960 = vpop.f32.mrb[0].mxu0
  %v1961 = vadd.f32 %v1398, %v1960
  %v1962 = vpop.f32.mrb[0].mxu0
  %1963 = vmatprep.mubr.f32.mxu0 0.0
  %1964 = vmatmul.mubr.f32.gmra.mrb[0].mxu0 %v1350
  %v1965 = vpop.f32.mrb[0].mxu0
  %v1966 = vadd.f32 %v1398, %v1965
  %v1967 = vpop.f32.mrb[0].mxu0
  %1968 = vmatprep.mubr.f32.mxu0 0.0
  %1969 = vmatmul.mubr.f32.gmra.mrb[0].mxu0 %v1351
  %v1970 = vpop.f32.mrb[0].mxu0
  %v1971 = vadd.f32 %v1398, %v1970
  %v1972 = vpop.f32.mrb[0].mxu0
  %1973 = vmatprep.mubr.f32.mxu0 0.0
  %1974 = vmatmul.mubr.f32.gmra.mrb[0].mxu0 %v1352
  %v1975 = vpop.f32.mrb[0].mxu0
  %v1976 = vadd.f32 %v1398, %v1975
  %v1977 = vpop.f32.mrb[0].mxu0
  %1978 = vmatprep.mubr.f32.mxu0 0.0
  %1979 = vmatmul.mubr.f32.gmra.mrb[0].mxu0 %v1353
  %v1980 = vpop.f32.mrb[0].mxu0
  %v1981 = vadd.f32 %v1398, %v1980
  %v1982 = vpop.f32.mrb[0].mxu0
  %1983 = vmatprep.mubr.f32.mxu0 0.0
  %1984 = vmatmul.mubr.f32.gmra.mrb[0].mxu0 %v1354
  %v1985 = vpop.f32.mrb[0].mxu0
  %v1986 = vadd.f32 %v1398, %v1985
  %v1987 = vpop.f32.mrb[0].mxu0
  %1988 = vmatprep.mubr.f32.mxu0 0.0
  %1989 = vmatmul.mubr.f32.gmra.mrb[0].mxu0 %v1355
  %v1990 = vpop.f32.mrb[0].mxu0
  %v1991 = vadd.f32 %v1398, %v1990
  %v1992 = vpop.f32.mrb[0].mxu0
  %1993 = vmatprep.mubr.f32.mxu0 0.0
  %1994 = vmatmul.mubr.f32.gmra.mrb[0].mxu0 %v1356
  %v1995 = vpop.f32.mrb[0].mxu0
  %v1996 = vadd.f32 %v1398, %v1995
  %v1997 = vpop.f32.mrb[0].mxu0
  %1998 = vmatprep.mubr.f32.mxu0 0.0
  %1999 = vmatmul.mubr.f32.gmra.mrb[0].mxu0 %v1357
  %v2000 = vpop.f32.mrb[0].mxu0
  %v2001 = vadd.f32 %v1398, %v2000
  %v2002 = vpop.f32.mrb[0].mxu0
  %2003 = vmatprep.mubr.f32.mxu0 0.0
  %2004 = vmatmul.mubr.f32.gmra.mrb[0].mxu0 %v1358
  %v2005 = vpop.f32.mrb[0].mxu0
  %v2006 = vadd.f32 %v1398, %v2005
  %v2007 = vpop.f32.mrb[0].mxu0
  %2008 = vmatprep.mubr.f32.mxu0 0.0
  %2009 = vmatmul.mubr.f32.gmra.mrb[0].mxu0 %v1359
  %v2010 = vpop.f32.mrb[0].mxu0
  %v2011 = vadd.f32 %v1398, %v2010
  %v2012 = vpop.f32.mrb[0].mxu0
  %2013 = vmatprep.mubr.f32.mxu0 0.0
  %2014 = vmatmul.mubr.f32.gmra.mrb[0].mxu0 %v1360
  %v2015 = vpop.f32.mrb[0].mxu0
  %v2016 = vadd.f32 %v1398, %v2015
  %v2017 = vpop.f32.mrb[0].mxu0
  %2018 = vmatprep.mubr.f32.mxu0 0.0
  %2019 = vmatmul.mubr.f32.gmra.mrb[0].mxu0 %v1361
  %v2020 = vpop.f32.mrb[0].mxu0
  %v2021 = vadd.f32 %v1398, %v2020
  %v2022 = vpop.f32.mrb[0].mxu0
  %2023 = vmatprep.mubr.f32.mxu0 0.0
  %2024 = vmatmul.mubr.f32.gmra.mrb[0].mxu0 %v1362
  %v2025 = vpop.f32.mrb[0].mxu0
  %v2026 = vadd.f32 %v1398, %v2025
  %v2027 = vpop.f32.mrb[0].mxu0
  %2028 = vmatprep.mubr.f32.mxu0 0.0
  %2029 = vmatmul.mubr.f32.gmra.mrb[0].mxu0 %v1363
  %v2030 = vpop.f32.mrb[0].mxu0
  %v2031 = vadd.f32 %v1398, %v2030
  %v2032 = vpop.f32.mrb[0].mxu0
  %2033 = vmatprep.mubr.f32.mxu0 0.0
  %2034 = vmatmul.mubr.f32.gmra.mrb[0].mxu0 %v1364
  %v2035 = vpop.f32.mrb[0].mxu0
  %v2036 = vadd.f32 %v1398, %v2035
  %v2037 = vpop.f32.mrb[0].mxu0
  %2038 = vmatprep.mubr.f32.mxu0 0.0
  %2039 = vmatmul.mubr.f32.gmra.mrb[0].mxu0 %v1365
  %v2040 = vpop.f32.mrb[0].mxu0
  %v2041 = vadd.f32 %v1398, %v2040
  %v2042 = vpop.f32.mrb[0].mxu0
  %2043 = vmatprep.mubr.f32.mxu0 0.0
  %2044 = vmatmul.mubr.f32.gmra.mrb[0].mxu0 %v1366
  %v2045 = vpop.f32.mrb[0].mxu0
  %v2046 = vadd.f32 %v1398, %v2045
  %v2047 = vpop.f32.mrb[0].mxu0
  %2048 = vmatprep.mubr.f32.mxu0 0.0
  %2049 = vmatmul.mubr.f32.gmra.mrb[0].mxu0 %v1367
  %v2050 = vpop.f32.mrb[0].mxu0
  %v2051 = vadd.f32 %v1398, %v2050
  %v2052 = vpop.f32.mrb[0].mxu0
  %2053 = vmatprep.mubr.f32.mxu0 0.0
  %2054 = vmatmul.mubr.f32.gmra.mrb[0].mxu0 %v1368
  %v2055 = vpop.f32.mrb[0].mxu0
  %v2056 = vadd.f32 %v1398, %v2055
  %v2057 = vpop.f32.mrb[0].mxu0
  %2058 = vmatprep.mubr.f32.mxu0 0.0
  %2059 = vmatmul.mubr.f32.gmra.mrb[0].mxu0 %v1369
  %v2060 = vpop.f32.mrb[0].mxu0
  %v2061 = vadd.f32 %v1398, %v2060
  %v2062 = vpop.f32.mrb[0].mxu0
  %2063 = vmatprep.mubr.f32.mxu0 0.0
  %2064 = vmatmul.mubr.f32.gmra.mrb[0].mxu0 %v1370
  %v2065 = vpop.f32.mrb[0].mxu0
  %v2066 = vadd.f32 %v1398, %v2065
  %v2067 = vpop.f32.mrb[0].mxu0
  %2068 = vmatprep.mubr.f32.mxu0 0.0
  %2069 = vmatmul.mubr.f32.gmra.mrb[0].mxu0 %v1371
  %v2070 = vpop.f32.mrb[0].mxu0
  %v2071 = vadd.f32 %v1398, %v2070
  %v2072 = vpop.f32.mrb[0].mxu0
  %2073 = vmatprep.mubr.f32.mxu0 0.0
  %2074 = vmatmul.mubr.f32.gmra.mrb[0].mxu0 %v1372
  %v2075 = vpop.f32.mrb[0].mxu0
  %v2076 = vadd.f32 %v1398, %v2075
  %v2077 = vpop.f32.mrb[0].mxu0
  %2078 = vmatprep.mubr.f32.mxu0 0.0
  %2079 = vmatmul.mubr.f32.gmra.mrb[0].mxu0 %v1373
  %v2080 = vpop.f32.mrb[0].mxu0
  %v2081 = vadd.f32 %v1398, %v2080
  %v2082 = vpop.f32.mrb[0].mxu0
  %2083 = vmatprep.mubr.f32.mxu0 0.0
  %2084 = vmatmul.mubr.f32.gmra.mrb[0].mxu0 %v1374
  %v2085 = vpop.f32.mrb[0].mxu0
  %v2086 = vadd.f32 %v1398, %v2085
  %v2087 = vpop.f32.mrb[0].mxu0
  %2088 = vmatprep.mubr.f32.mxu0 0.0
  %2089 = vmatmul.mubr.f32.gmra.mrb[0].mxu0 %v1375
  %v2090 = vpop.f32.mrb[0].mxu0
  %v2091 = vadd.f32 %v1398, %v2090
  %v2092 = vpop.f32.mrb[0].mxu0
  %2093 = vmatprep.mubr.f32.mxu0 0.0
  %2094 = vmatmul.mubr.f32.gmra.mrb[0].mxu0 %v1376
  %v2095 = vpop.f32.mrb[0].mxu0
  %v2096 = vadd.f32 %v1398, %v2095
  %v2097 = vpop.f32.mrb[0].mxu0
  %2098 = vmatprep.mubr.f32.mxu0 0.0
  %2099 = vmatmul.mubr.f32.gmra.mrb[0].mxu0 %v1377
  %v2100 = vpop.f32.mrb[0].mxu0
  %v2101 = vadd.f32 %v1398, %v2100
  %v2102 = vpop.f32.mrb[0].mxu0
  %2103 = vdwg.mxu0
  %v2104 = vmax.f32 %v1466, 0.0
  %v2105 = vmax.f32 %v1471, 0.0
  %v2106 = vmax.f32 %v1476, 0.0
  %v2107 = vmax.f32 %v1481, 0.0
  %v2108 = vmax.f32 %v1486, 0.0
  %v2109 = vmax.f32 %v1491, 0.0
  %v2110 = vmax.f32 %v1496, 0.0
  %v2111 = vmax.f32 %v1501, 0.0
  %v2112 = vmax.f32 %v1506, 0.0
  %v2113 = vmax.f32 %v1511, 0.0
  %v2114 = vmax.f32 %v1516, 0.0
  %v2115 = vmax.f32 %v1521, 0.0
  %v2116 = vmax.f32 %v1526, 0.0
  %v2117 = vmax.f32 %v1531, 0.0
  %v2118 = vmax.f32 %v1536, 0.0
  %v2119 = vmax.f32 %v1541, 0.0
  %v2120 = vmax.f32 %v1546, 0.0
  %v2121 = vmax.f32 %v1551, 0.0
  %v2122 = vmax.f32 %v1556, 0.0
  %v2123 = vmax.f32 %v1561, 0.0
  %v2124 = vmax.f32 %v1566, 0.0
  %v2125 = vmax.f32 %v1571, 0.0
  %v2126 = vmax.f32 %v1576, 0.0
  %v2127 = vmax.f32 %v1581, 0.0
  %v2128 = vmax.f32 %v1586, 0.0
  %v2129 = vmax.f32 %v1591, 0.0
  %v2130 = vmax.f32 %v1596, 0.0
  %v2131 = vmax.f32 %v1601, 0.0
  %v2132 = vmax.f32 %v1606, 0.0
  %v2133 = vmax.f32 %v1611, 0.0
  %v2134 = vmax.f32 %v1616, 0.0
  %v2135 = vmax.f32 %v1621, 0.0
  %v2136 = vmax.f32 %v1626, 0.0
  %v2137 = vmax.f32 %v1631, 0.0
  %v2138 = vmax.f32 %v1636, 0.0
  %v2139 = vmax.f32 %v1641, 0.0
  %v2140 = vmax.f32 %v1646, 0.0
  %v2141 = vmax.f32 %v1651, 0.0
  %v2142 = vmax.f32 %v1656, 0.0
  %v2143 = vmax.f32 %v1661, 0.0
  %v2144 = vmax.f32 %v1666, 0.0
  %v2145 = vmax.f32 %v1671, 0.0
  %v2146 = vmax.f32 %v1676, 0.0
  %v2147 = vmax.f32 %v1681, 0.0
  %v2148 = vmax.f32 %v1686, 0.0
  %v2149 = vmax.f32 %v1691, 0.0
  %v2150 = vmax.f32 %v1696, 0.0
  %v2151 = vmax.f32 %v1701, 0.0
  %v2152 = vmax.f32 %v1706, 0.0
  %v2153 = vmax.f32 %v1711, 0.0
  %v2154 = vmax.f32 %v1716, 0.0
  %v2155 = vmax.f32 %v1721, 0.0
  %v2156 = vmax.f32 %v1726, 0.0
  %v2157 = vmax.f32 %v1731, 0.0
  %v2158 = vmax.f32 %v1736, 0.0
  %v2159 = vmax.f32 %v1741, 0.0
  %v2160 = vmax.f32 %v1746, 0.0
  %v2161 = vmax.f32 %v1751, 0.0
  %v2162 = vmax.f32 %v1756, 0.0
  %v2163 = vmax.f32 %v1761, 0.0
  %v2164 = vmax.f32 %v1766, 0.0
  %v2165 = vmax.f32 %v1771, 0.0
  %v2166 = vmax.f32 %v1776, 0.0
  %v2167 = vmax.f32 %v1781, 0.0
  %v2168 = vmax.f32 %v1786, 0.0
  %v2169 = vmax.f32 %v1791, 0.0
  %v2170 = vmax.f32 %v1796, 0.0
  %v2171 = vmax.f32 %v1801, 0.0
  %v2172 = vmax.f32 %v1806, 0.0
  %v2173 = vmax.f32 %v1811, 0.0
  %v2174 = vmax.f32 %v1816, 0.0
  %v2175 = vmax.f32 %v1821, 0.0
  %v2176 = vmax.f32 %v1826, 0.0
  %v2177 = vmax.f32 %v1831, 0.0
  %v2178 = vmax.f32 %v1836, 0.0
  %v2179 = vmax.f32 %v1841, 0.0
  %v2180 = vmax.f32 %v1846, 0.0
  %v2181 = vmax.f32 %v1851, 0.0
  %v2182 = vmax.f32 %v1856, 0.0
  %v2183 = vmax.f32 %v1861, 0.0
  %v2184 = vmax.f32 %v1866, 0.0
  %v2185 = vmax.f32 %v1871, 0.0
  %v2186 = vmax.f32 %v1876, 0.0
  %v2187 = vmax.f32 %v1881, 0.0
  %v2188 = vmax.f32 %v1886, 0.0
  %v2189 = vmax.f32 %v1891, 0.0
  %v2190 = vmax.f32 %v1896, 0.0
  %v2191 = vmax.f32 %v1901, 0.0
  %v2192 = vmax.f32 %v1906, 0.0
  %v2193 = vmax.f32 %v1911, 0.0
  %v2194 = vmax.f32 %v1916, 0.0
  %v2195 = vmax.f32 %v1921, 0.0
  %v2196 = vmax.f32 %v1926, 0.0
  %v2197 = vmax.f32 %v1931, 0.0
  %v2198 = vmax.f32 %v1936, 0.0
  %v2199 = vmax.f32 %v1941, 0.0
  %v2200 = vmax.f32 %v1946, 0.0
  %v2201 = vmax.f32 %v1951, 0.0
  %v2202 = vmax.f32 %v1956, 0.0
  %v2203 = vmax.f32 %v1961, 0.0
  %v2204 = vmax.f32 %v1966, 0.0
  %v2205 = vmax.f32 %v1971, 0.0
  %v2206 = vmax.f32 %v1976, 0.0
  %v2207 = vmax.f32 %v1981, 0.0
  %v2208 = vmax.f32 %v1986, 0.0
  %v2209 = vmax.f32 %v1991, 0.0
  %v2210 = vmax.f32 %v1996, 0.0
  %v2211 = vmax.f32 %v2001, 0.0
  %v2212 = vmax.f32 %v2006, 0.0
  %v2213 = vmax.f32 %v2011, 0.0
  %v2214 = vmax.f32 %v2016, 0.0
  %v2215 = vmax.f32 %v2021, 0.0
  %v2216 = vmax.f32 %v2026, 0.0
  %v2217 = vmax.f32 %v2031, 0.0
  %v2218 = vmax.f32 %v2036, 0.0
  %v2219 = vmax.f32 %v2041, 0.0
  %v2220 = vmax.f32 %v2046, 0.0
  %v2221 = vmax.f32 %v2051, 0.0
  %v2222 = vmax.f32 %v2056, 0.0
  %v2223 = vmax.f32 %v2061, 0.0
  %v2224 = vmax.f32 %v2066, 0.0
  %v2225 = vmax.f32 %v2071, 0.0
  %v2226 = vmax.f32 %v2076, 0.0
  %v2227 = vmax.f32 %v2081, 0.0
  %v2228 = vmax.f32 %v2086, 0.0
  %v2229 = vmax.f32 %v2091, 0.0
  %v2230 = vmax.f32 %v2096, 0.0
  %v2231 = vmax.f32 %v2101, 0.0
  %v2232 = vld [vmem:[%s3] sm:$0xff]
  %v2233 = vld [vmem:[%s3 + $0x8] sm:$0xff]
  %v2234 = vld [vmem:[%s3 + $0x10] sm:$0xff]
  %v2235 = vld [vmem:[%s3 + $0x18] sm:$0xff]
  %v2236 = vld [vmem:[%s3 + $0x20] sm:$0xff]
  %v2237 = vld [vmem:[%s3 + $0x28] sm:$0xff]
  %v2238 = vld [vmem:[%s3 + $0x30] sm:$0xff]
  %v2239 = vld [vmem:[%s3 + $0x38] sm:$0xff]
  %v2240 = vld [vmem:[%s3 + $0x40] sm:$0xff]
  %v2241 = vld [vmem:[%s3 + $0x48] sm:$0xff]
  %v2242 = vld [vmem:[%s3 + $0x50] sm:$0xff]
  %v2243 = vld [vmem:[%s3 + $0x58] sm:$0xff]
  %v2244 = vld [vmem:[%s3 + $0x60] sm:$0xff]
  %v2245 = vld [vmem:[%s3 + $0x68] sm:$0xff]
  %v2246 = vld [vmem:[%s3 + $0x70] sm:$0xff]
  %v2247 = vld [vmem:[%s3 + $0x78] sm:$0xff]
  %v2248 = vld [vmem:[%s4 + $0x2] sm:$0x1]
  %v2249 = vlaneseq
  %v2250 = vshrl.u32 %v2249, 7
  %v2251 = vsub.s32 0, %v2250
  %v2252 = vrot.slane %v2248, %v2251
  %2253 = vmatprep.subr.mxu0 0.0
  %2254 = vmatpush1.msra.mxu0 %v2232
  %2255 = vmatprep.subr.mxu0 0.0
  %2256 = vmatpush1.msra.mxu0 %v2233
  %2257 = vmatprep.subr.mxu0 0.0
  %2258 = vmatpush1.msra.mxu0 %v2234
  %2259 = vmatprep.subr.mxu0 0.0
  %2260 = vmatpush1.msra.mxu0 %v2235
  %2261 = vmatprep.subr.mxu0 0.0
  %2262 = vmatpush1.msra.mxu0 %v2236
  %2263 = vmatprep.subr.mxu0 0.0
  %2264 = vmatpush1.msra.mxu0 %v2237
  %2265 = vmatprep.subr.mxu0 0.0
  %2266 = vmatpush1.msra.mxu0 %v2238
  %2267 = vmatprep.subr.mxu0 0.0
  %2268 = vmatpush1.msra.mxu0 %v2239
  %2269 = vmatprep.subr.mxu0 0.0
  %2270 = vmatpush1.msra.mxu0 %v2240
  %2271 = vmatprep.subr.mxu0 0.0
  %2272 = vmatpush1.msra.mxu0 %v2241
  %2273 = vmatprep.subr.mxu0 0.0
  %2274 = vmatpush1.msra.mxu0 %v2242
  %2275 = vmatprep.subr.mxu0 0.0
  %2276 = vmatpush1.msra.mxu0 %v2243
  %2277 = vmatprep.subr.mxu0 0.0
  %2278 = vmatpush1.msra.mxu0 %v2244
  %2279 = vmatprep.subr.mxu0 0.0
  %2280 = vmatpush1.msra.mxu0 %v2245
  %2281 = vmatprep.subr.mxu0 0.0
  %2282 = vmatpush1.msra.mxu0 %v2246
  %2283 = vmatprep.subr.mxu0 0.0
  %2284 = vmatpush1.msra.mxu0 %v2247
  %2285 = vmatprep.subr.mxu0 0.0
  %2286 = vmatpush1.msra.mxu0 0.0
  %2287 = vmatprep.subr.mxu0 0.0
  %2288 = vmatpush1.msra.mxu0 0.0
  %2289 = vmatprep.subr.mxu0 0.0
  %2290 = vmatpush1.msra.mxu0 0.0
  %2291 = vmatprep.subr.mxu0 0.0
  %2292 = vmatpush1.msra.mxu0 0.0
  %2293 = vmatprep.subr.mxu0 0.0
  %2294 = vmatpush1.msra.mxu0 0.0
  %2295 = vmatprep.subr.mxu0 0.0
  %2296 = vmatpush1.msra.mxu0 0.0
  %2297 = vmatprep.subr.mxu0 0.0
  %2298 = vmatpush1.msra.mxu0 0.0
  %2299 = vmatprep.subr.mxu0 0.0
  %2300 = vmatpush1.msra.mxu0 0.0
  %2301 = vmatprep.subr.mxu0 0.0
  %2302 = vmatpush1.msra.mxu0 0.0
  %2303 = vmatprep.subr.mxu0 0.0
  %2304 = vmatpush1.msra.mxu0 0.0
  %2305 = vmatprep.subr.mxu0 0.0
  %2306 = vmatpush1.msra.mxu0 0.0
  %2307 = vmatprep.subr.mxu0 0.0
  %2308 = vmatpush1.msra.mxu0 0.0
  %2309 = vmatprep.subr.mxu0 0.0
  %2310 = vmatpush1.msra.mxu0 0.0
  %2311 = vmatprep.subr.mxu0 0.0
  %2312 = vmatpush1.msra.mxu0 0.0
  %2313 = vmatprep.subr.mxu0 0.0
  %2314 = vmatpush1.msra.mxu0 0.0
  %2315 = vmatprep.subr.mxu0 0.0
  %2316 = vmatpush1.msra.mxu0 0.0
  %2317 = vmatprep.mubr.f32.mxu0 0.0
  %2318 = vmatmul.mubr.f32.gmra.mrb[0].mxu0 %v2104
  %v2319 = vpop.f32.mrb[0].mxu0
  %v2320 = vadd.f32 %v2252, %v2319
  %v2321 = vpop.f32.mrb[0].mxu0
  %2322 = vmatprep.mubr.f32.mxu0 0.0
  %2323 = vmatmul.mubr.f32.gmra.mrb[0].mxu0 %v2105
  %v2324 = vpop.f32.mrb[0].mxu0
  %v2325 = vadd.f32 %v2252, %v2324
  %v2326 = vpop.f32.mrb[0].mxu0
  %2327 = vmatprep.mubr.f32.mxu0 0.0
  %2328 = vmatmul.mubr.f32.gmra.mrb[0].mxu0 %v2106
  %v2329 = vpop.f32.mrb[0].mxu0
  %v2330 = vadd.f32 %v2252, %v2329
  %v2331 = vpop.f32.mrb[0].mxu0
  %2332 = vmatprep.mubr.f32.mxu0 0.0
  %2333 = vmatmul.mubr.f32.gmra.mrb[0].mxu0 %v2107
  %v2334 = vpop.f32.mrb[0].mxu0
  %v2335 = vadd.f32 %v2252, %v2334
  %v2336 = vpop.f32.mrb[0].mxu0
  %2337 = vmatprep.mubr.f32.mxu0 0.0
  %2338 = vmatmul.mubr.f32.gmra.mrb[0].mxu0 %v2108
  %v2339 = vpop.f32.mrb[0].mxu0
  %v2340 = vadd.f32 %v2252, %v2339
  %v2341 = vpop.f32.mrb[0].mxu0
  %2342 = vmatprep.mubr.f32.mxu0 0.0
  %2343 = vmatmul.mubr.f32.gmra.mrb[0].mxu0 %v2109
  %v2344 = vpop.f32.mrb[0].mxu0
  %v2345 = vadd.f32 %v2252, %v2344
  %v2346 = vpop.f32.mrb[0].mxu0
  %2347 = vmatprep.mubr.f32.mxu0 0.0
  %2348 = vmatmul.mubr.f32.gmra.mrb[0].mxu0 %v2110
  %v2349 = vpop.f32.mrb[0].mxu0
  %v2350 = vadd.f32 %v2252, %v2349
  %v2351 = vpop.f32.mrb[0].mxu0
  %2352 = vmatprep.mubr.f32.mxu0 0.0
  %2353 = vmatmul.mubr.f32.gmra.mrb[0].mxu0 %v2111
  %v2354 = vpop.f32.mrb[0].mxu0
  %v2355 = vadd.f32 %v2252, %v2354
  %v2356 = vpop.f32.mrb[0].mxu0
  %2357 = vmatprep.mubr.f32.mxu0 0.0
  %2358 = vmatmul.mubr.f32.gmra.mrb[0].mxu0 %v2112
  %v2359 = vpop.f32.mrb[0].mxu0
  %v2360 = vadd.f32 %v2252, %v2359
  %v2361 = vpop.f32.mrb[0].mxu0
  %2362 = vmatprep.mubr.f32.mxu0 0.0
  %2363 = vmatmul.mubr.f32.gmra.mrb[0].mxu0 %v2113
  %v2364 = vpop.f32.mrb[0].mxu0
  %v2365 = vadd.f32 %v2252, %v2364
  %v2366 = vpop.f32.mrb[0].mxu0
  %2367 = vmatprep.mubr.f32.mxu0 0.0
  %2368 = vmatmul.mubr.f32.gmra.mrb[0].mxu0 %v2114
  %v2369 = vpop.f32.mrb[0].mxu0
  %v2370 = vadd.f32 %v2252, %v2369
  %v2371 = vpop.f32.mrb[0].mxu0
  %2372 = vmatprep.mubr.f32.mxu0 0.0
  %2373 = vmatmul.mubr.f32.gmra.mrb[0].mxu0 %v2115
  %v2374 = vpop.f32.mrb[0].mxu0
  %v2375 = vadd.f32 %v2252, %v2374
  %v2376 = vpop.f32.mrb[0].mxu0
  %2377 = vmatprep.mubr.f32.mxu0 0.0
  %2378 = vmatmul.mubr.f32.gmra.mrb[0].mxu0 %v2116
  %v2379 = vpop.f32.mrb[0].mxu0
  %v2380 = vadd.f32 %v2252, %v2379
  %v2381 = vpop.f32.mrb[0].mxu0
  %2382 = vmatprep.mubr.f32.mxu0 0.0
  %2383 = vmatmul.mubr.f32.gmra.mrb[0].mxu0 %v2117
  %v2384 = vpop.f32.mrb[0].mxu0
  %v2385 = vadd.f32 %v2252, %v2384
  %v2386 = vpop.f32.mrb[0].mxu0
  %2387 = vmatprep.mubr.f32.mxu0 0.0
  %2388 = vmatmul.mubr.f32.gmra.mrb[0].mxu0 %v2118
  %v2389 = vpop.f32.mrb[0].mxu0
  %v2390 = vadd.f32 %v2252, %v2389
  %v2391 = vpop.f32.mrb[0].mxu0
  %2392 = vmatprep.mubr.f32.mxu0 0.0
  %2393 = vmatmul.mubr.f32.gmra.mrb[0].mxu0 %v2119
  %v2394 = vpop.f32.mrb[0].mxu0
  %v2395 = vadd.f32 %v2252, %v2394
  %v2396 = vpop.f32.mrb[0].mxu0
  %2397 = vmatprep.mubr.f32.mxu0 0.0
  %2398 = vmatmul.mubr.f32.gmra.mrb[0].mxu0 %v2120
  %v2399 = vpop.f32.mrb[0].mxu0
  %v2400 = vadd.f32 %v2252, %v2399
  %v2401 = vpop.f32.mrb[0].mxu0
  %2402 = vmatprep.mubr.f32.mxu0 0.0
  %2403 = vmatmul.mubr.f32.gmra.mrb[0].mxu0 %v2121
  %v2404 = vpop.f32.mrb[0].mxu0
  %v2405 = vadd.f32 %v2252, %v2404
  %v2406 = vpop.f32.mrb[0].mxu0
  %2407 = vmatprep.mubr.f32.mxu0 0.0
  %2408 = vmatmul.mubr.f32.gmra.mrb[0].mxu0 %v2122
  %v2409 = vpop.f32.mrb[0].mxu0
  %v2410 = vadd.f32 %v2252, %v2409
  %v2411 = vpop.f32.mrb[0].mxu0
  %2412 = vmatprep.mubr.f32.mxu0 0.0
  %2413 = vmatmul.mubr.f32.gmra.mrb[0].mxu0 %v2123
  %v2414 = vpop.f32.mrb[0].mxu0
  %v2415 = vadd.f32 %v2252, %v2414
  %v2416 = vpop.f32.mrb[0].mxu0
  %2417 = vmatprep.mubr.f32.mxu0 0.0
  %2418 = vmatmul.mubr.f32.gmra.mrb[0].mxu0 %v2124
  %v2419 = vpop.f32.mrb[0].mxu0
  %v2420 = vadd.f32 %v2252, %v2419
  %v2421 = vpop.f32.mrb[0].mxu0
  %2422 = vmatprep.mubr.f32.mxu0 0.0
  %2423 = vmatmul.mubr.f32.gmra.mrb[0].mxu0 %v2125
  %v2424 = vpop.f32.mrb[0].mxu0
  %v2425 = vadd.f32 %v2252, %v2424
  %v2426 = vpop.f32.mrb[0].mxu0
  %2427 = vmatprep.mubr.f32.mxu0 0.0
  %2428 = vmatmul.mubr.f32.gmra.mrb[0].mxu0 %v2126
  %v2429 = vpop.f32.mrb[0].mxu0
  %v2430 = vadd.f32 %v2252, %v2429
  %v2431 = vpop.f32.mrb[0].mxu0
  %2432 = vmatprep.mubr.f32.mxu0 0.0
  %2433 = vmatmul.mubr.f32.gmra.mrb[0].mxu0 %v2127
  %v2434 = vpop.f32.mrb[0].mxu0
  %v2435 = vadd.f32 %v2252, %v2434
  %v2436 = vpop.f32.mrb[0].mxu0
  %2437 = vmatprep.mubr.f32.mxu0 0.0
  %2438 = vmatmul.mubr.f32.gmra.mrb[0].mxu0 %v2128
  %v2439 = vpop.f32.mrb[0].mxu0
  %v2440 = vadd.f32 %v2252, %v2439
  %v2441 = vpop.f32.mrb[0].mxu0
  %2442 = vmatprep.mubr.f32.mxu0 0.0
  %2443 = vmatmul.mubr.f32.gmra.mrb[0].mxu0 %v2129
  %v2444 = vpop.f32.mrb[0].mxu0
  %v2445 = vadd.f32 %v2252, %v2444
  %v2446 = vpop.f32.mrb[0].mxu0
  %2447 = vmatprep.mubr.f32.mxu0 0.0
  %2448 = vmatmul.mubr.f32.gmra.mrb[0].mxu0 %v2130
  %v2449 = vpop.f32.mrb[0].mxu0
  %v2450 = vadd.f32 %v2252, %v2449
  %v2451 = vpop.f32.mrb[0].mxu0
  %2452 = vmatprep.mubr.f32.mxu0 0.0
  %2453 = vmatmul.mubr.f32.gmra.mrb[0].mxu0 %v2131
  %v2454 = vpop.f32.mrb[0].mxu0
  %v2455 = vadd.f32 %v2252, %v2454
  %v2456 = vpop.f32.mrb[0].mxu0
  %2457 = vmatprep.mubr.f32.mxu0 0.0
  %2458 = vmatmul.mubr.f32.gmra.mrb[0].mxu0 %v2132
  %v2459 = vpop.f32.mrb[0].mxu0
  %v2460 = vadd.f32 %v2252, %v2459
  %v2461 = vpop.f32.mrb[0].mxu0
  %2462 = vmatprep.mubr.f32.mxu0 0.0
  %2463 = vmatmul.mubr.f32.gmra.mrb[0].mxu0 %v2133
  %v2464 = vpop.f32.mrb[0].mxu0
  %v2465 = vadd.f32 %v2252, %v2464
  %v2466 = vpop.f32.mrb[0].mxu0
  %2467 = vmatprep.mubr.f32.mxu0 0.0
  %2468 = vmatmul.mubr.f32.gmra.mrb[0].mxu0 %v2134
  %v2469 = vpop.f32.mrb[0].mxu0
  %v2470 = vadd.f32 %v2252, %v2469
  %v2471 = vpop.f32.mrb[0].mxu0
  %2472 = vmatprep.mubr.f32.mxu0 0.0
  %2473 = vmatmul.mubr.f32.gmra.mrb[0].mxu0 %v2135
  %v2474 = vpop.f32.mrb[0].mxu0
  %v2475 = vadd.f32 %v2252, %v2474
  %v2476 = vpop.f32.mrb[0].mxu0
  %2477 = vmatprep.mubr.f32.mxu0 0.0
  %2478 = vmatmul.mubr.f32.gmra.mrb[0].mxu0 %v2136
  %v2479 = vpop.f32.mrb[0].mxu0
  %v2480 = vadd.f32 %v2252, %v2479
  %v2481 = vpop.f32.mrb[0].mxu0
  %2482 = vmatprep.mubr.f32.mxu0 0.0
  %2483 = vmatmul.mubr.f32.gmra.mrb[0].mxu0 %v2137
  %v2484 = vpop.f32.mrb[0].mxu0
  %v2485 = vadd.f32 %v2252, %v2484
  %v2486 = vpop.f32.mrb[0].mxu0
  %2487 = vmatprep.mubr.f32.mxu0 0.0
  %2488 = vmatmul.mubr.f32.gmra.mrb[0].mxu0 %v2138
  %v2489 = vpop.f32.mrb[0].mxu0
  %v2490 = vadd.f32 %v2252, %v2489
  %v2491 = vpop.f32.mrb[0].mxu0
  %2492 = vmatprep.mubr.f32.mxu0 0.0
  %2493 = vmatmul.mubr.f32.gmra.mrb[0].mxu0 %v2139
  %v2494 = vpop.f32.mrb[0].mxu0
  %v2495 = vadd.f32 %v2252, %v2494
  %v2496 = vpop.f32.mrb[0].mxu0
  %2497 = vmatprep.mubr.f32.mxu0 0.0
  %2498 = vmatmul.mubr.f32.gmra.mrb[0].mxu0 %v2140
  %v2499 = vpop.f32.mrb[0].mxu0
  %v2500 = vadd.f32 %v2252, %v2499
  %v2501 = vpop.f32.mrb[0].mxu0
  %2502 = vmatprep.mubr.f32.mxu0 0.0
  %2503 = vmatmul.mubr.f32.gmra.mrb[0].mxu0 %v2141
  %v2504 = vpop.f32.mrb[0].mxu0
  %v2505 = vadd.f32 %v2252, %v2504
  %v2506 = vpop.f32.mrb[0].mxu0
  %2507 = vmatprep.mubr.f32.mxu0 0.0
  %2508 = vmatmul.mubr.f32.gmra.mrb[0].mxu0 %v2142
  %v2509 = vpop.f32.mrb[0].mxu0
  %v2510 = vadd.f32 %v2252, %v2509
  %v2511 = vpop.f32.mrb[0].mxu0
  %2512 = vmatprep.mubr.f32.mxu0 0.0
  %2513 = vmatmul.mubr.f32.gmra.mrb[0].mxu0 %v2143
  %v2514 = vpop.f32.mrb[0].mxu0
  %v2515 = vadd.f32 %v2252, %v2514
  %v2516 = vpop.f32.mrb[0].mxu0
  %2517 = vmatprep.mubr.f32.mxu0 0.0
  %2518 = vmatmul.mubr.f32.gmra.mrb[0].mxu0 %v2144
  %v2519 = vpop.f32.mrb[0].mxu0
  %v2520 = vadd.f32 %v2252, %v2519
  %v2521 = vpop.f32.mrb[0].mxu0
  %2522 = vmatprep.mubr.f32.mxu0 0.0
  %2523 = vmatmul.mubr.f32.gmra.mrb[0].mxu0 %v2145
  %v2524 = vpop.f32.mrb[0].mxu0
  %v2525 = vadd.f32 %v2252, %v2524
  %v2526 = vpop.f32.mrb[0].mxu0
  %2527 = vmatprep.mubr.f32.mxu0 0.0
  %2528 = vmatmul.mubr.f32.gmra.mrb[0].mxu0 %v2146
  %v2529 = vpop.f32.mrb[0].mxu0
  %v2530 = vadd.f32 %v2252, %v2529
  %v2531 = vpop.f32.mrb[0].mxu0
  %2532 = vmatprep.mubr.f32.mxu0 0.0
  %2533 = vmatmul.mubr.f32.gmra.mrb[0].mxu0 %v2147
  %v2534 = vpop.f32.mrb[0].mxu0
  %v2535 = vadd.f32 %v2252, %v2534
  %v2536 = vpop.f32.mrb[0].mxu0
  %2537 = vmatprep.mubr.f32.mxu0 0.0
  %2538 = vmatmul.mubr.f32.gmra.mrb[0].mxu0 %v2148
  %v2539 = vpop.f32.mrb[0].mxu0
  %v2540 = vadd.f32 %v2252, %v2539
  %v2541 = vpop.f32.mrb[0].mxu0
  %2542 = vmatprep.mubr.f32.mxu0 0.0
  %2543 = vmatmul.mubr.f32.gmra.mrb[0].mxu0 %v2149
  %v2544 = vpop.f32.mrb[0].mxu0
  %v2545 = vadd.f32 %v2252, %v2544
  %v2546 = vpop.f32.mrb[0].mxu0
  %2547 = vmatprep.mubr.f32.mxu0 0.0
  %2548 = vmatmul.mubr.f32.gmra.mrb[0].mxu0 %v2150
  %v2549 = vpop.f32.mrb[0].mxu0
  %v2550 = vadd.f32 %v2252, %v2549
  %v2551 = vpop.f32.mrb[0].mxu0
  %2552 = vmatprep.mubr.f32.mxu0 0.0
  %2553 = vmatmul.mubr.f32.gmra.mrb[0].mxu0 %v2151
  %v2554 = vpop.f32.mrb[0].mxu0
  %v2555 = vadd.f32 %v2252, %v2554
  %v2556 = vpop.f32.mrb[0].mxu0
  %2557 = vmatprep.mubr.f32.mxu0 0.0
  %2558 = vmatmul.mubr.f32.gmra.mrb[0].mxu0 %v2152
  %v2559 = vpop.f32.mrb[0].mxu0
  %v2560 = vadd.f32 %v2252, %v2559
  %v2561 = vpop.f32.mrb[0].mxu0
  %2562 = vmatprep.mubr.f32.mxu0 0.0
  %2563 = vmatmul.mubr.f32.gmra.mrb[0].mxu0 %v2153
  %v2564 = vpop.f32.mrb[0].mxu0
  %v2565 = vadd.f32 %v2252, %v2564
  %v2566 = vpop.f32.mrb[0].mxu0
  %2567 = vmatprep.mubr.f32.mxu0 0.0
  %2568 = vmatmul.mubr.f32.gmra.mrb[0].mxu0 %v2154
  %v2569 = vpop.f32.mrb[0].mxu0
  %v2570 = vadd.f32 %v2252, %v2569
  %v2571 = vpop.f32.mrb[0].mxu0
  %2572 = vmatprep.mubr.f32.mxu0 0.0
  %2573 = vmatmul.mubr.f32.gmra.mrb[0].mxu0 %v2155
  %v2574 = vpop.f32.mrb[0].mxu0
  %v2575 = vadd.f32 %v2252, %v2574
  %v2576 = vpop.f32.mrb[0].mxu0
  %2577 = vmatprep.mubr.f32.mxu0 0.0
  %2578 = vmatmul.mubr.f32.gmra.mrb[0].mxu0 %v2156
  %v2579 = vpop.f32.mrb[0].mxu0
  %v2580 = vadd.f32 %v2252, %v2579
  %v2581 = vpop.f32.mrb[0].mxu0
  %2582 = vmatprep.mubr.f32.mxu0 0.0
  %2583 = vmatmul.mubr.f32.gmra.mrb[0].mxu0 %v2157
  %v2584 = vpop.f32.mrb[0].mxu0
  %v2585 = vadd.f32 %v2252, %v2584
  %v2586 = vpop.f32.mrb[0].mxu0
  %2587 = vmatprep.mubr.f32.mxu0 0.0
  %2588 = vmatmul.mubr.f32.gmra.mrb[0].mxu0 %v2158
  %v2589 = vpop.f32.mrb[0].mxu0
  %v2590 = vadd.f32 %v2252, %v2589
  %v2591 = vpop.f32.mrb[0].mxu0
  %2592 = vmatprep.mubr.f32.mxu0 0.0
  %2593 = vmatmul.mubr.f32.gmra.mrb[0].mxu0 %v2159
  %v2594 = vpop.f32.mrb[0].mxu0
  %v2595 = vadd.f32 %v2252, %v2594
  %v2596 = vpop.f32.mrb[0].mxu0
  %2597 = vmatprep.mubr.f32.mxu0 0.0
  %2598 = vmatmul.mubr.f32.gmra.mrb[0].mxu0 %v2160
  %v2599 = vpop.f32.mrb[0].mxu0
  %v2600 = vadd.f32 %v2252, %v2599
  %v2601 = vpop.f32.mrb[0].mxu0
  %2602 = vmatprep.mubr.f32.mxu0 0.0
  %2603 = vmatmul.mubr.f32.gmra.mrb[0].mxu0 %v2161
  %v2604 = vpop.f32.mrb[0].mxu0
  %v2605 = vadd.f32 %v2252, %v2604
  %v2606 = vpop.f32.mrb[0].mxu0
  %2607 = vmatprep.mubr.f32.mxu0 0.0
  %2608 = vmatmul.mubr.f32.gmra.mrb[0].mxu0 %v2162
  %v2609 = vpop.f32.mrb[0].mxu0
  %v2610 = vadd.f32 %v2252, %v2609
  %v2611 = vpop.f32.mrb[0].mxu0
  %2612 = vmatprep.mubr.f32.mxu0 0.0
  %2613 = vmatmul.mubr.f32.gmra.mrb[0].mxu0 %v2163
  %v2614 = vpop.f32.mrb[0].mxu0
  %v2615 = vadd.f32 %v2252, %v2614
  %v2616 = vpop.f32.mrb[0].mxu0
  %2617 = vmatprep.mubr.f32.mxu0 0.0
  %2618 = vmatmul.mubr.f32.gmra.mrb[0].mxu0 %v2164
  %v2619 = vpop.f32.mrb[0].mxu0
  %v2620 = vadd.f32 %v2252, %v2619
  %v2621 = vpop.f32.mrb[0].mxu0
  %2622 = vmatprep.mubr.f32.mxu0 0.0
  %2623 = vmatmul.mubr.f32.gmra.mrb[0].mxu0 %v2165
  %v2624 = vpop.f32.mrb[0].mxu0
  %v2625 = vadd.f32 %v2252, %v2624
  %v2626 = vpop.f32.mrb[0].mxu0
  %2627 = vmatprep.mubr.f32.mxu0 0.0
  %2628 = vmatmul.mubr.f32.gmra.mrb[0].mxu0 %v2166
  %v2629 = vpop.f32.mrb[0].mxu0
  %v2630 = vadd.f32 %v2252, %v2629
  %v2631 = vpop.f32.mrb[0].mxu0
  %2632 = vmatprep.mubr.f32.mxu0 0.0
  %2633 = vmatmul.mubr.f32.gmra.mrb[0].mxu0 %v2167
  %v2634 = vpop.f32.mrb[0].mxu0
  %v2635 = vadd.f32 %v2252, %v2634
  %v2636 = vpop.f32.mrb[0].mxu0
  %2637 = vmatprep.mubr.f32.mxu0 0.0
  %2638 = vmatmul.mubr.f32.gmra.mrb[0].mxu0 %v2168
  %v2639 = vpop.f32.mrb[0].mxu0
  %v2640 = vadd.f32 %v2252, %v2639
  %v2641 = vpop.f32.mrb[0].mxu0
  %2642 = vmatprep.mubr.f32.mxu0 0.0
  %2643 = vmatmul.mubr.f32.gmra.mrb[0].mxu0 %v2169
  %v2644 = vpop.f32.mrb[0].mxu0
  %v2645 = vadd.f32 %v2252, %v2644
  %v2646 = vpop.f32.mrb[0].mxu0
  %2647 = vmatprep.mubr.f32.mxu0 0.0
  %2648 = vmatmul.mubr.f32.gmra.mrb[0].mxu0 %v2170
  %v2649 = vpop.f32.mrb[0].mxu0
  %v2650 = vadd.f32 %v2252, %v2649
  %v2651 = vpop.f32.mrb[0].mxu0
  %2652 = vmatprep.mubr.f32.mxu0 0.0
  %2653 = vmatmul.mubr.f32.gmra.mrb[0].mxu0 %v2171
  %v2654 = vpop.f32.mrb[0].mxu0
  %v2655 = vadd.f32 %v2252, %v2654
  %v2656 = vpop.f32.mrb[0].mxu0
  %2657 = vmatprep.mubr.f32.mxu0 0.0
  %2658 = vmatmul.mubr.f32.gmra.mrb[0].mxu0 %v2172
  %v2659 = vpop.f32.mrb[0].mxu0
  %v2660 = vadd.f32 %v2252, %v2659
  %v2661 = vpop.f32.mrb[0].mxu0
  %2662 = vmatprep.mubr.f32.mxu0 0.0
  %2663 = vmatmul.mubr.f32.gmra.mrb[0].mxu0 %v2173
  %v2664 = vpop.f32.mrb[0].mxu0
  %v2665 = vadd.f32 %v2252, %v2664
  %v2666 = vpop.f32.mrb[0].mxu0
  %2667 = vmatprep.mubr.f32.mxu0 0.0
  %2668 = vmatmul.mubr.f32.gmra.mrb[0].mxu0 %v2174
  %v2669 = vpop.f32.mrb[0].mxu0
  %v2670 = vadd.f32 %v2252, %v2669
  %v2671 = vpop.f32.mrb[0].mxu0
  %2672 = vmatprep.mubr.f32.mxu0 0.0
  %2673 = vmatmul.mubr.f32.gmra.mrb[0].mxu0 %v2175
  %v2674 = vpop.f32.mrb[0].mxu0
  %v2675 = vadd.f32 %v2252, %v2674
  %v2676 = vpop.f32.mrb[0].mxu0
  %2677 = vmatprep.mubr.f32.mxu0 0.0
  %2678 = vmatmul.mubr.f32.gmra.mrb[0].mxu0 %v2176
  %v2679 = vpop.f32.mrb[0].mxu0
  %v2680 = vadd.f32 %v2252, %v2679
  %v2681 = vpop.f32.mrb[0].mxu0
  %2682 = vmatprep.mubr.f32.mxu0 0.0
  %2683 = vmatmul.mubr.f32.gmra.mrb[0].mxu0 %v2177
  %v2684 = vpop.f32.mrb[0].mxu0
  %v2685 = vadd.f32 %v2252, %v2684
  %v2686 = vpop.f32.mrb[0].mxu0
  %2687 = vmatprep.mubr.f32.mxu0 0.0
  %2688 = vmatmul.mubr.f32.gmra.mrb[0].mxu0 %v2178
  %v2689 = vpop.f32.mrb[0].mxu0
  %v2690 = vadd.f32 %v2252, %v2689
  %v2691 = vpop.f32.mrb[0].mxu0
  %2692 = vmatprep.mubr.f32.mxu0 0.0
  %2693 = vmatmul.mubr.f32.gmra.mrb[0].mxu0 %v2179
  %v2694 = vpop.f32.mrb[0].mxu0
  %v2695 = vadd.f32 %v2252, %v2694
  %v2696 = vpop.f32.mrb[0].mxu0
  %2697 = vmatprep.mubr.f32.mxu0 0.0
  %2698 = vmatmul.mubr.f32.gmra.mrb[0].mxu0 %v2180
  %v2699 = vpop.f32.mrb[0].mxu0
  %v2700 = vadd.f32 %v2252, %v2699
  %v2701 = vpop.f32.mrb[0].mxu0
  %2702 = vmatprep.mubr.f32.mxu0 0.0
  %2703 = vmatmul.mubr.f32.gmra.mrb[0].mxu0 %v2181
  %v2704 = vpop.f32.mrb[0].mxu0
  %v2705 = vadd.f32 %v2252, %v2704
  %v2706 = vpop.f32.mrb[0].mxu0
  %2707 = vmatprep.mubr.f32.mxu0 0.0
  %2708 = vmatmul.mubr.f32.gmra.mrb[0].mxu0 %v2182
  %v2709 = vpop.f32.mrb[0].mxu0
  %v2710 = vadd.f32 %v2252, %v2709
  %v2711 = vpop.f32.mrb[0].mxu0
  %2712 = vmatprep.mubr.f32.mxu0 0.0
  %2713 = vmatmul.mubr.f32.gmra.mrb[0].mxu0 %v2183
  %v2714 = vpop.f32.mrb[0].mxu0
  %v2715 = vadd.f32 %v2252, %v2714
  %v2716 = vpop.f32.mrb[0].mxu0
  %2717 = vmatprep.mubr.f32.mxu0 0.0
  %2718 = vmatmul.mubr.f32.gmra.mrb[0].mxu0 %v2184
  %v2719 = vpop.f32.mrb[0].mxu0
  %v2720 = vadd.f32 %v2252, %v2719
  %v2721 = vpop.f32.mrb[0].mxu0
  %2722 = vmatprep.mubr.f32.mxu0 0.0
  %2723 = vmatmul.mubr.f32.gmra.mrb[0].mxu0 %v2185
  %v2724 = vpop.f32.mrb[0].mxu0
  %v2725 = vadd.f32 %v2252, %v2724
  %v2726 = vpop.f32.mrb[0].mxu0
  %2727 = vmatprep.mubr.f32.mxu0 0.0
  %2728 = vmatmul.mubr.f32.gmra.mrb[0].mxu0 %v2186
  %v2729 = vpop.f32.mrb[0].mxu0
  %v2730 = vadd.f32 %v2252, %v2729
  %v2731 = vpop.f32.mrb[0].mxu0
  %2732 = vmatprep.mubr.f32.mxu0 0.0
  %2733 = vmatmul.mubr.f32.gmra.mrb[0].mxu0 %v2187
  %v2734 = vpop.f32.mrb[0].mxu0
  %v2735 = vadd.f32 %v2252, %v2734
  %v2736 = vpop.f32.mrb[0].mxu0
  %2737 = vmatprep.mubr.f32.mxu0 0.0
  %2738 = vmatmul.mubr.f32.gmra.mrb[0].mxu0 %v2188
  %v2739 = vpop.f32.mrb[0].mxu0
  %v2740 = vadd.f32 %v2252, %v2739
  %v2741 = vpop.f32.mrb[0].mxu0
  %2742 = vmatprep.mubr.f32.mxu0 0.0
  %2743 = vmatmul.mubr.f32.gmra.mrb[0].mxu0 %v2189
  %v2744 = vpop.f32.mrb[0].mxu0
  %v2745 = vadd.f32 %v2252, %v2744
  %v2746 = vpop.f32.mrb[0].mxu0
  %2747 = vmatprep.mubr.f32.mxu0 0.0
  %2748 = vmatmul.mubr.f32.gmra.mrb[0].mxu0 %v2190
  %v2749 = vpop.f32.mrb[0].mxu0
  %v2750 = vadd.f32 %v2252, %v2749
  %v2751 = vpop.f32.mrb[0].mxu0
  %2752 = vmatprep.mubr.f32.mxu0 0.0
  %2753 = vmatmul.mubr.f32.gmra.mrb[0].mxu0 %v2191
  %v2754 = vpop.f32.mrb[0].mxu0
  %v2755 = vadd.f32 %v2252, %v2754
  %v2756 = vpop.f32.mrb[0].mxu0
  %2757 = vmatprep.mubr.f32.mxu0 0.0
  %2758 = vmatmul.mubr.f32.gmra.mrb[0].mxu0 %v2192
  %v2759 = vpop.f32.mrb[0].mxu0
  %v2760 = vadd.f32 %v2252, %v2759
  %v2761 = vpop.f32.mrb[0].mxu0
  %2762 = vmatprep.mubr.f32.mxu0 0.0
  %2763 = vmatmul.mubr.f32.gmra.mrb[0].mxu0 %v2193
  %v2764 = vpop.f32.mrb[0].mxu0
  %v2765 = vadd.f32 %v2252, %v2764
  %v2766 = vpop.f32.mrb[0].mxu0
  %2767 = vmatprep.mubr.f32.mxu0 0.0
  %2768 = vmatmul.mubr.f32.gmra.mrb[0].mxu0 %v2194
  %v2769 = vpop.f32.mrb[0].mxu0
  %v2770 = vadd.f32 %v2252, %v2769
  %v2771 = vpop.f32.mrb[0].mxu0
  %2772 = vmatprep.mubr.f32.mxu0 0.0
  %2773 = vmatmul.mubr.f32.gmra.mrb[0].mxu0 %v2195
  %v2774 = vpop.f32.mrb[0].mxu0
  %v2775 = vadd.f32 %v2252, %v2774
  %v2776 = vpop.f32.mrb[0].mxu0
  %2777 = vmatprep.mubr.f32.mxu0 0.0
  %2778 = vmatmul.mubr.f32.gmra.mrb[0].mxu0 %v2196
  %v2779 = vpop.f32.mrb[0].mxu0
  %v2780 = vadd.f32 %v2252, %v2779
  %v2781 = vpop.f32.mrb[0].mxu0
  %2782 = vmatprep.mubr.f32.mxu0 0.0
  %2783 = vmatmul.mubr.f32.gmra.mrb[0].mxu0 %v2197
  %v2784 = vpop.f32.mrb[0].mxu0
  %v2785 = vadd.f32 %v2252, %v2784
  %v2786 = vpop.f32.mrb[0].mxu0
  %2787 = vmatprep.mubr.f32.mxu0 0.0
  %2788 = vmatmul.mubr.f32.gmra.mrb[0].mxu0 %v2198
  %v2789 = vpop.f32.mrb[0].mxu0
  %v2790 = vadd.f32 %v2252, %v2789
  %v2791 = vpop.f32.mrb[0].mxu0
  %2792 = vmatprep.mubr.f32.mxu0 0.0
  %2793 = vmatmul.mubr.f32.gmra.mrb[0].mxu0 %v2199
  %v2794 = vpop.f32.mrb[0].mxu0
  %v2795 = vadd.f32 %v2252, %v2794
  %v2796 = vpop.f32.mrb[0].mxu0
  %2797 = vmatprep.mubr.f32.mxu0 0.0
  %2798 = vmatmul.mubr.f32.gmra.mrb[0].mxu0 %v2200
  %v2799 = vpop.f32.mrb[0].mxu0
  %v2800 = vadd.f32 %v2252, %v2799
  %v2801 = vpop.f32.mrb[0].mxu0
  %2802 = vmatprep.mubr.f32.mxu0 0.0
  %2803 = vmatmul.mubr.f32.gmra.mrb[0].mxu0 %v2201
  %v2804 = vpop.f32.mrb[0].mxu0
  %v2805 = vadd.f32 %v2252, %v2804
  %v2806 = vpop.f32.mrb[0].mxu0
  %2807 = vmatprep.mubr.f32.mxu0 0.0
  %2808 = vmatmul.mubr.f32.gmra.mrb[0].mxu0 %v2202
  %v2809 = vpop.f32.mrb[0].mxu0
  %v2810 = vadd.f32 %v2252, %v2809
  %v2811 = vpop.f32.mrb[0].mxu0
  %2812 = vmatprep.mubr.f32.mxu0 0.0
  %2813 = vmatmul.mubr.f32.gmra.mrb[0].mxu0 %v2203
  %v2814 = vpop.f32.mrb[0].mxu0
  %v2815 = vadd.f32 %v2252, %v2814
  %v2816 = vpop.f32.mrb[0].mxu0
  %2817 = vmatprep.mubr.f32.mxu0 0.0
  %2818 = vmatmul.mubr.f32.gmra.mrb[0].mxu0 %v2204
  %v2819 = vpop.f32.mrb[0].mxu0
  %v2820 = vadd.f32 %v2252, %v2819
  %v2821 = vpop.f32.mrb[0].mxu0
  %2822 = vmatprep.mubr.f32.mxu0 0.0
  %2823 = vmatmul.mubr.f32.gmra.mrb[0].mxu0 %v2205
  %v2824 = vpop.f32.mrb[0].mxu0
  %v2825 = vadd.f32 %v2252, %v2824
  %v2826 = vpop.f32.mrb[0].mxu0
  %2827 = vmatprep.mubr.f32.mxu0 0.0
  %2828 = vmatmul.mubr.f32.gmra.mrb[0].mxu0 %v2206
  %v2829 = vpop.f32.mrb[0].mxu0
  %v2830 = vadd.f32 %v2252, %v2829
  %v2831 = vpop.f32.mrb[0].mxu0
  %2832 = vmatprep.mubr.f32.mxu0 0.0
  %2833 = vmatmul.mubr.f32.gmra.mrb[0].mxu0 %v2207
  %v2834 = vpop.f32.mrb[0].mxu0
  %v2835 = vadd.f32 %v2252, %v2834
  %v2836 = vpop.f32.mrb[0].mxu0
  %2837 = vmatprep.mubr.f32.mxu0 0.0
  %2838 = vmatmul.mubr.f32.gmra.mrb[0].mxu0 %v2208
  %v2839 = vpop.f32.mrb[0].mxu0
  %v2840 = vadd.f32 %v2252, %v2839
  %v2841 = vpop.f32.mrb[0].mxu0
  %2842 = vmatprep.mubr.f32.mxu0 0.0
  %2843 = vmatmul.mubr.f32.gmra.mrb[0].mxu0 %v2209
  %v2844 = vpop.f32.mrb[0].mxu0
  %v2845 = vadd.f32 %v2252, %v2844
  %v2846 = vpop.f32.mrb[0].mxu0
  %2847 = vmatprep.mubr.f32.mxu0 0.0
  %2848 = vmatmul.mubr.f32.gmra.mrb[0].mxu0 %v2210
  %v2849 = vpop.f32.mrb[0].mxu0
  %v2850 = vadd.f32 %v2252, %v2849
  %v2851 = vpop.f32.mrb[0].mxu0
  %2852 = vmatprep.mubr.f32.mxu0 0.0
  %2853 = vmatmul.mubr.f32.gmra.mrb[0].mxu0 %v2211
  %v2854 = vpop.f32.mrb[0].mxu0
  %v2855 = vadd.f32 %v2252, %v2854
  %v2856 = vpop.f32.mrb[0].mxu0
  %2857 = vmatprep.mubr.f32.mxu0 0.0
  %2858 = vmatmul.mubr.f32.gmra.mrb[0].mxu0 %v2212
  %v2859 = vpop.f32.mrb[0].mxu0
  %v2860 = vadd.f32 %v2252, %v2859
  %v2861 = vpop.f32.mrb[0].mxu0
  %2862 = vmatprep.mubr.f32.mxu0 0.0
  %2863 = vmatmul.mubr.f32.gmra.mrb[0].mxu0 %v2213
  %v2864 = vpop.f32.mrb[0].mxu0
  %v2865 = vadd.f32 %v2252, %v2864
  %v2866 = vpop.f32.mrb[0].mxu0
  %2867 = vmatprep.mubr.f32.mxu0 0.0
  %2868 = vmatmul.mubr.f32.gmra.mrb[0].mxu0 %v2214
  %v2869 = vpop.f32.mrb[0].mxu0
  %v2870 = vadd.f32 %v2252, %v2869
  %v2871 = vpop.f32.mrb[0].mxu0
  %2872 = vmatprep.mubr.f32.mxu0 0.0
  %2873 = vmatmul.mubr.f32.gmra.mrb[0].mxu0 %v2215
  %v2874 = vpop.f32.mrb[0].mxu0
  %v2875 = vadd.f32 %v2252, %v2874
  %v2876 = vpop.f32.mrb[0].mxu0
  %2877 = vmatprep.mubr.f32.mxu0 0.0
  %2878 = vmatmul.mubr.f32.gmra.mrb[0].mxu0 %v2216
  %v2879 = vpop.f32.mrb[0].mxu0
  %v2880 = vadd.f32 %v2252, %v2879
  %v2881 = vpop.f32.mrb[0].mxu0
  %2882 = vmatprep.mubr.f32.mxu0 0.0
  %2883 = vmatmul.mubr.f32.gmra.mrb[0].mxu0 %v2217
  %v2884 = vpop.f32.mrb[0].mxu0
  %v2885 = vadd.f32 %v2252, %v2884
  %v2886 = vpop.f32.mrb[0].mxu0
  %2887 = vmatprep.mubr.f32.mxu0 0.0
  %2888 = vmatmul.mubr.f32.gmra.mrb[0].mxu0 %v2218
  %v2889 = vpop.f32.mrb[0].mxu0
  %v2890 = vadd.f32 %v2252, %v2889
  %v2891 = vpop.f32.mrb[0].mxu0
  %2892 = vmatprep.mubr.f32.mxu0 0.0
  %2893 = vmatmul.mubr.f32.gmra.mrb[0].mxu0 %v2219
  %v2894 = vpop.f32.mrb[0].mxu0
  %v2895 = vadd.f32 %v2252, %v2894
  %v2896 = vpop.f32.mrb[0].mxu0
  %2897 = vmatprep.mubr.f32.mxu0 0.0
  %2898 = vmatmul.mubr.f32.gmra.mrb[0].mxu0 %v2220
  %v2899 = vpop.f32.mrb[0].mxu0
  %v2900 = vadd.f32 %v2252, %v2899
  %v2901 = vpop.f32.mrb[0].mxu0
  %2902 = vmatprep.mubr.f32.mxu0 0.0
  %2903 = vmatmul.mubr.f32.gmra.mrb[0].mxu0 %v2221
  %v2904 = vpop.f32.mrb[0].mxu0
  %v2905 = vadd.f32 %v2252, %v2904
  %v2906 = vpop.f32.mrb[0].mxu0
  %2907 = vmatprep.mubr.f32.mxu0 0.0
  %2908 = vmatmul.mubr.f32.gmra.mrb[0].mxu0 %v2222
  %v2909 = vpop.f32.mrb[0].mxu0
  %v2910 = vadd.f32 %v2252, %v2909
  %v2911 = vpop.f32.mrb[0].mxu0
  %2912 = vmatprep.mubr.f32.mxu0 0.0
  %2913 = vmatmul.mubr.f32.gmra.mrb[0].mxu0 %v2223
  %v2914 = vpop.f32.mrb[0].mxu0
  %v2915 = vadd.f32 %v2252, %v2914
  %v2916 = vpop.f32.mrb[0].mxu0
  %2917 = vmatprep.mubr.f32.mxu0 0.0
  %2918 = vmatmul.mubr.f32.gmra.mrb[0].mxu0 %v2224
  %v2919 = vpop.f32.mrb[0].mxu0
  %v2920 = vadd.f32 %v2252, %v2919
  %v2921 = vpop.f32.mrb[0].mxu0
  %2922 = vmatprep.mubr.f32.mxu0 0.0
  %2923 = vmatmul.mubr.f32.gmra.mrb[0].mxu0 %v2225
  %v2924 = vpop.f32.mrb[0].mxu0
  %v2925 = vadd.f32 %v2252, %v2924
  %v2926 = vpop.f32.mrb[0].mxu0
  %2927 = vmatprep.mubr.f32.mxu0 0.0
  %2928 = vmatmul.mubr.f32.gmra.mrb[0].mxu0 %v2226
  %v2929 = vpop.f32.mrb[0].mxu0
  %v2930 = vadd.f32 %v2252, %v2929
  %v2931 = vpop.f32.mrb[0].mxu0
  %2932 = vmatprep.mubr.f32.mxu0 0.0
  %2933 = vmatmul.mubr.f32.gmra.mrb[0].mxu0 %v2227
  %v2934 = vpop.f32.mrb[0].mxu0
  %v2935 = vadd.f32 %v2252, %v2934
  %v2936 = vpop.f32.mrb[0].mxu0
  %2937 = vmatprep.mubr.f32.mxu0 0.0
  %2938 = vmatmul.mubr.f32.gmra.mrb[0].mxu0 %v2228
  %v2939 = vpop.f32.mrb[0].mxu0
  %v2940 = vadd.f32 %v2252, %v2939
  %v2941 = vpop.f32.mrb[0].mxu0
  %2942 = vmatprep.mubr.f32.mxu0 0.0
  %2943 = vmatmul.mubr.f32.gmra.mrb[0].mxu0 %v2229
  %v2944 = vpop.f32.mrb[0].mxu0
  %v2945 = vadd.f32 %v2252, %v2944
  %v2946 = vpop.f32.mrb[0].mxu0
  %2947 = vmatprep.mubr.f32.mxu0 0.0
  %2948 = vmatmul.mubr.f32.gmra.mrb[0].mxu0 %v2230
  %v2949 = vpop.f32.mrb[0].mxu0
  %v2950 = vadd.f32 %v2252, %v2949
  %v2951 = vpop.f32.mrb[0].mxu0
  %2952 = vmatprep.mubr.f32.mxu0 0.0
  %2953 = vmatmul.mubr.f32.gmra.mrb[0].mxu0 %v2231
  %v2954 = vpop.f32.mrb[0].mxu0
  %v2955 = vadd.f32 %v2252, %v2954
  %v2956 = vpop.f32.mrb[0].mxu0
  %2957 = vdwg.mxu0
  %2958 = vst [vmem:[%s5] sm:$0xff] %v2320
  %2959 = vst [vmem:[%s5 + $0x8] sm:$0xff] %v2325
  %2960 = vst [vmem:[%s5 + $0x10] sm:$0xff] %v2330
  %2961 = vst [vmem:[%s5 + $0x18] sm:$0xff] %v2335
  %2962 = vst [vmem:[%s5 + $0x20] sm:$0xff] %v2340
  %2963 = vst [vmem:[%s5 + $0x28] sm:$0xff] %v2345
  %2964 = vst [vmem:[%s5 + $0x30] sm:$0xff] %v2350
  %2965 = vst [vmem:[%s5 + $0x38] sm:$0xff] %v2355
  %2966 = vst [vmem:[%s5 + $0x40] sm:$0xff] %v2360
  %2967 = vst [vmem:[%s5 + $0x48] sm:$0xff] %v2365
  %2968 = vst [vmem:[%s5 + $0x50] sm:$0xff] %v2370
  %2969 = vst [vmem:[%s5 + $0x58] sm:$0xff] %v2375
  %2970 = vst [vmem:[%s5 + $0x60] sm:$0xff] %v2380
  %2971 = vst [vmem:[%s5 + $0x68] sm:$0xff] %v2385
  %2972 = vst [vmem:[%s5 + $0x70] sm:$0xff] %v2390
  %2973 = vst [vmem:[%s5 + $0x78] sm:$0xff] %v2395
  %2974 = vst [vmem:[%s5 + $0x80] sm:$0xff] %v2400
  %2975 = vst [vmem:[%s5 + $0x88] sm:$0xff] %v2405
  %2976 = vst [vmem:[%s5 + $0x90] sm:$0xff] %v2410
  %2977 = vst [vmem:[%s5 + $0x98] sm:$0xff] %v2415
  %2978 = vst [vmem:[%s5 + $0xa0] sm:$0xff] %v2420
  %2979 = vst [vmem:[%s5 + $0xa8] sm:$0xff] %v2425
  %2980 = vst [vmem:[%s5 + $0xb0] sm:$0xff] %v2430
  %2981 = vst [vmem:[%s5 + $0xb8] sm:$0xff] %v2435
  %2982 = vst [vmem:[%s5 + $0xc0] sm:$0xff] %v2440
  %2983 = vst [vmem:[%s5 + $0xc8] sm:$0xff] %v2445
  %2984 = vst [vmem:[%s5 + $0xd0] sm:$0xff] %v2450
  %2985 = vst [vmem:[%s5 + $0xd8] sm:$0xff] %v2455
  %2986 = vst [vmem:[%s5 + $0xe0] sm:$0xff] %v2460
  %2987 = vst [vmem:[%s5 + $0xe8] sm:$0xff] %v2465
  %2988 = vst [vmem:[%s5 + $0xf0] sm:$0xff] %v2470
  %2989 = vst [vmem:[%s5 + $0xf8] sm:$0xff] %v2475
  %2990 = vst [vmem:[%s5 + $0x100] sm:$0xff] %v2480
  %2991 = vst [vmem:[%s5 + $0x108] sm:$0xff] %v2485
  %2992 = vst [vmem:[%s5 + $0x110] sm:$0xff] %v2490
  %2993 = vst [vmem:[%s5 + $0x118] sm:$0xff] %v2495
  %2994 = vst [vmem:[%s5 + $0x120] sm:$0xff] %v2500
  %2995 = vst [vmem:[%s5 + $0x128] sm:$0xff] %v2505
  %2996 = vst [vmem:[%s5 + $0x130] sm:$0xff] %v2510
  %2997 = vst [vmem:[%s5 + $0x138] sm:$0xff] %v2515
  %2998 = vst [vmem:[%s5 + $0x140] sm:$0xff] %v2520
  %2999 = vst [vmem:[%s5 + $0x148] sm:$0xff] %v2525
  %3000 = vst [vmem:[%s5 + $0x150] sm:$0xff] %v2530
  %3001 = vst [vmem:[%s5 + $0x158] sm:$0xff] %v2535
  %3002 = vst [vmem:[%s5 + $0x160] sm:$0xff] %v2540
  %3003 = vst [vmem:[%s5 + $0x168] sm:$0xff] %v2545
  %3004 = vst [vmem:[%s5 + $0x170] sm:$0xff] %v2550
  %3005 = vst [vmem:[%s5 + $0x178] sm:$0xff] %v2555
  %3006 = vst [vmem:[%s5 + $0x180] sm:$0xff] %v2560
  %3007 = vst [vmem:[%s5 + $0x188] sm:$0xff] %v2565
  %3008 = vst [vmem:[%s5 + $0x190] sm:$0xff] %v2570
  %3009 = vst [vmem:[%s5 + $0x198] sm:$0xff] %v2575
  %3010 = vst [vmem:[%s5 + $0x1a0] sm:$0xff] %v2580
  %3011 = vst [vmem:[%s5 + $0x1a8] sm:$0xff] %v2585
  %3012 = vst [vmem:[%s5 + $0x1b0] sm:$0xff] %v2590
  %3013 = vst [vmem:[%s5 + $0x1b8] sm:$0xff] %v2595
  %3014 = vst [vmem:[%s5 + $0x1c0] sm:$0xff] %v2600
  %3015 = vst [vmem:[%s5 + $0x1c8] sm:$0xff] %v2605
  %3016 = vst [vmem:[%s5 + $0x1d0] sm:$0xff] %v2610
  %3017 = vst [vmem:[%s5 + $0x1d8] sm:$0xff] %v2615
  %3018 = vst [vmem:[%s5 + $0x1e0] sm:$0xff] %v2620
  %3019 = vst [vmem:[%s5 + $0x1e8] sm:$0xff] %v2625
  %3020 = vst [vmem:[%s5 + $0x1f0] sm:$0xff] %v2630
  %3021 = vst [vmem:[%s5 + $0x1f8] sm:$0xff] %v2635
  %3022 = vst [vmem:[%s5 + $0x200] sm:$0xff] %v2640
  %3023 = vst [vmem:[%s5 + $0x208] sm:$0xff] %v2645
  %3024 = vst [vmem:[%s5 + $0x210] sm:$0xff] %v2650
  %3025 = vst [vmem:[%s5 + $0x218] sm:$0xff] %v2655
  %3026 = vst [vmem:[%s5 + $0x220] sm:$0xff] %v2660
  %3027 = vst [vmem:[%s5 + $0x228] sm:$0xff] %v2665
  %3028 = vst [vmem:[%s5 + $0x230] sm:$0xff] %v2670
  %3029 = vst [vmem:[%s5 + $0x238] sm:$0xff] %v2675
  %3030 = vst [vmem:[%s5 + $0x240] sm:$0xff] %v2680
  %3031 = vst [vmem:[%s5 + $0x248] sm:$0xff] %v2685
  %3032 = vst [vmem:[%s5 + $0x250] sm:$0xff] %v2690
  %3033 = vst [vmem:[%s5 + $0x258] sm:$0xff] %v2695
  %3034 = vst [vmem:[%s5 + $0x260] sm:$0xff] %v2700
  %3035 = vst [vmem:[%s5 + $0x268] sm:$0xff] %v2705
  %3036 = vst [vmem:[%s5 + $0x270] sm:$0xff] %v2710
  %3037 = vst [vmem:[%s5 + $0x278] sm:$0xff] %v2715
  %3038 = vst [vmem:[%s5 + $0x280] sm:$0xff] %v2720
  %3039 = vst [vmem:[%s5 + $0x288] sm:$0xff] %v2725
  %3040 = vst [vmem:[%s5 + $0x290] sm:$0xff] %v2730
  %3041 = vst [vmem:[%s5 + $0x298] sm:$0xff] %v2735
  %3042 = vst [vmem:[%s5 + $0x2a0] sm:$0xff] %v2740
  %3043 = vst [vmem:[%s5 + $0x2a8] sm:$0xff] %v2745
  %3044 = vst [vmem:[%s5 + $0x2b0] sm:$0xff] %v2750
  %3045 = vst [vmem:[%s5 + $0x2b8] sm:$0xff] %v2755
  %3046 = vst [vmem:[%s5 + $0x2c0] sm:$0xff] %v2760
  %3047 = vst [vmem:[%s5 + $0x2c8] sm:$0xff] %v2765
  %3048 = vst [vmem:[%s5 + $0x2d0] sm:$0xff] %v2770
  %3049 = vst [vmem:[%s5 + $0x2d8] sm:$0xff] %v2775
  %3050 = vst [vmem:[%s5 + $0x2e0] sm:$0xff] %v2780
  %3051 = vst [vmem:[%s5 + $0x2e8] sm:$0xff] %v2785
  %3052 = vst [vmem:[%s5 + $0x2f0] sm:$0xff] %v2790
  %3053 = vst [vmem:[%s5 + $0x2f8] sm:$0xff] %v2795
  %3054 = vst [vmem:[%s5 + $0x300] sm:$0xff] %v2800
  %3055 = vst [vmem:[%s5 + $0x308] sm:$0xff] %v2805
  %3056 = vst [vmem:[%s5 + $0x310] sm:$0xff] %v2810
  %3057 = vst [vmem:[%s5 + $0x318] sm:$0xff] %v2815
  %3058 = vst [vmem:[%s5 + $0x320] sm:$0xff] %v2820
  %3059 = vst [vmem:[%s5 + $0x328] sm:$0xff] %v2825
  %3060 = vst [vmem:[%s5 + $0x330] sm:$0xff] %v2830
  %3061 = vst [vmem:[%s5 + $0x338] sm:$0xff] %v2835
  %3062 = vst [vmem:[%s5 + $0x340] sm:$0xff] %v2840
  %3063 = vst [vmem:[%s5 + $0x348] sm:$0xff] %v2845
  %3064 = vst [vmem:[%s5 + $0x350] sm:$0xff] %v2850
  %3065 = vst [vmem:[%s5 + $0x358] sm:$0xff] %v2855
  %3066 = vst [vmem:[%s5 + $0x360] sm:$0xff] %v2860
  %3067 = vst [vmem:[%s5 + $0x368] sm:$0xff] %v2865
  %3068 = vst [vmem:[%s5 + $0x370] sm:$0xff] %v2870
  %3069 = vst [vmem:[%s5 + $0x378] sm:$0xff] %v2875
  %3070 = vst [vmem:[%s5 + $0x380] sm:$0xff] %v2880
  %3071 = vst [vmem:[%s5 + $0x388] sm:$0xff] %v2885
  %3072 = vst [vmem:[%s5 + $0x390] sm:$0xff] %v2890
  %3073 = vst [vmem:[%s5 + $0x398] sm:$0xff] %v2895
  %3074 = vst [vmem:[%s5 + $0x3a0] sm:$0xff] %v2900
  %3075 = vst [vmem:[%s5 + $0x3a8] sm:$0xff] %v2905
  %3076 = vst [vmem:[%s5 + $0x3b0] sm:$0xff] %v2910
  %3077 = vst [vmem:[%s5 + $0x3b8] sm:$0xff] %v2915
  %3078 = vst [vmem:[%s5 + $0x3c0] sm:$0xff] %v2920
  %3079 = vst [vmem:[%s5 + $0x3c8] sm:$0xff] %v2925
  %3080 = vst [vmem:[%s5 + $0x3d0] sm:$0xff] %v2930
  %3081 = vst [vmem:[%s5 + $0x3d8] sm:$0xff] %v2935
  %3082 = vst [vmem:[%s5 + $0x3e0] sm:$0xff] %v2940
  %3083 = vst [vmem:[%s5 + $0x3e8] sm:$0xff] %v2945
  %3084 = vst [vmem:[%s5 + $0x3f0] sm:$0xff] %v2950
  %3085 = vst [vmem:[%s5 + $0x3f8] sm:$0xff] %v2955
  // Predicated region
  $region22: #{merged_mlp_pallas.1} parent=0 // pred_check
    _
  $region23: #{merged_mlp_pallas.1} parent=0 // pred_check_branch
    %3087 = sbr.rel (0) target = $region25
  $region24: #{merged_mlp_pallas.1} parent=0 // pred_region
    _
  $region25: #{merged_mlp_pallas.1} parent=0 // pred_fallthru
    _
  // Predicated region
  $region26: #{merged_mlp_pallas.1} parent=0 // pred_check
    _
  $region27: #{merged_mlp_pallas.1} parent=0 // pred_check_branch
    %3089 = sbr.rel (0) target = $region29
  $region28: #{merged_mlp_pallas.1} parent=0 // pred_region
    _
  $region29: #{merged_mlp_pallas.1} parent=0 // pred_fallthru
    _

</llo_original>
